<compile_context>
chip_gen: v7x
topology: tpu7x:2x2x1
jax: 0.10.0
libtpu: 0.0.40
codegen_flags: <defaults>
</compile_context>

<pallas_src>
import functools
import math

import jax
import jax.numpy as jnp
from jax.experimental import pallas as pl
from jax.experimental.pallas import tpu as pltpu


MASK_VALUE = -1e30


def _tile(n, target, align):
    """Largest t <= target with n % t == 0 and t % align == 0; falls back to n (full dim)."""
    if n <= target:
        return n
    t = (min(target, n) // align) * align
    while t >= align:
        if n % t == 0:
            return t
        t -= align
    return n


# ----------------------------- tiled linear ---------------------------------

def _linear_kernel(x_ref, w_ref, o_ref, acc_ref):
    # y = x @ W^T, W passed as [out, in]; contraction on the last dim of both operands.
    @pl.when(pl.program_id(2) == 0)
    def _init():
        acc_ref[...] = jnp.zeros_like(acc_ref)

    acc_ref[...] += jax.lax.dot_general(
        x_ref[...], w_ref[...], (((1,), (1,)), ((), ())),
        preferred_element_type=jnp.float32)

    @pl.when(pl.program_id(2) == pl.num_programs(2) - 1)
    def _finalize():
        o_ref[...] = acc_ref[...].astype(o_ref.dtype)


def linear(x, w, *, bm=512, bn=256, bk=512, out_dtype=None):
    """x: [T, in], w: [out, in] -> [T, out] (bias-free, like *ParallelLinear)."""
    T, K = x.shape
    N = w.shape[0]
    out_dtype = x.dtype if out_dtype is None else out_dtype
    bm, bn, bk = _tile(T, bm, 8), _tile(N, bn, 128), _tile(K, bk, 128)
    cost = pl.CostEstimate(
        flops=int(2 * T * K * N),
        transcendentals=0,
        bytes_accessed=int(x.dtype.itemsize * (T * K + T * N)
                           + w.dtype.itemsize * K * N * (T // bm)),
    )
    return pl.pallas_call(
        _linear_kernel,
        out_shape=jax.ShapeDtypeStruct((T, N), out_dtype),
        grid=(T // bm, N // bn, K // bk),
        in_specs=[
            pl.BlockSpec((bm, bk), lambda i, j, k: (i, k)),   # x tile
            pl.BlockSpec((bn, bk), lambda i, j, k: (j, k)),   # W tile ([out, in], no w.T)
        ],
        out_specs=pl.BlockSpec((bm, bn), lambda i, j, k: (i, j)),
        scratch_shapes=[pltpu.VMEM((bm, bn), jnp.float32)],
        compiler_params=pltpu.CompilerParams(
            dimension_semantics=("parallel", "parallel", "arbitrary")),
        cost_estimate=cost,
    )(x, w)


# ------------------- fused linear + RoPE (q/k projections) -------------------

def _deinterleave_rows(w, n_heads, head_dim):
    """Permute rows of a [n_heads*head_dim, in] projection weight so its output is
    de-interleaved per head (features 0,2,4,...,1,3,5,...).  In that layout the
    reference's interleaved (complex) RoPE becomes a half-rotation:
        x * [cos, cos] + roll(x, head_dim//2) * [-sin, sin]
    and q.k dot products are unchanged (same permutation applied to q and k)."""
    in_dim = w.shape[1]
    w = w.reshape(n_heads, head_dim // 2, 2, in_dim)
    w = jnp.concatenate([w[:, :, 0, :], w[:, :, 1, :]], axis=1)  # (H, head_dim, in)
    return w.reshape(n_heads * head_dim, in_dim)


def _linear_rope_kernel(x_ref, w_ref, cos_ref, sin_ref, o_ref, acc_ref, *, head_dim):
    @pl.when(pl.program_id(2) == 0)
    def _init():
        acc_ref[...] = jnp.zeros_like(acc_ref)

    acc_ref[...] += jax.lax.dot_general(
        x_ref[...], w_ref[...], (((1,), (1,)), ((), ())),
        preferred_element_type=jnp.float32)

    @pl.when(pl.program_id(2) == pl.num_programs(2) - 1)
    def _finalize():
        acc = acc_ref[...]                       # f32 accumulator [bm, bn]
        cos = cos_ref[...]                       # [bm, head_dim] f32
        sin = sin_ref[...]
        parts = []
        for h in range(acc.shape[1] // head_dim):        # per-head half-rotation (XLU roll)
            seg = acc[:, h * head_dim:(h + 1) * head_dim]
            rot = pltpu.roll(seg, shift=head_dim // 2, axis=1)
            parts.append(seg * cos + rot * sin)
        out = parts[0] if len(parts) == 1 else jnp.concatenate(parts, axis=1)
        o_ref[...] = out.astype(o_ref.dtype)


def linear_rope(x, w, cos_full, sin_signed, head_dim, *, bm=512, bn=256, bk=512,
                out_dtype=None):
    """Projection with RoPE fused into the epilogue.  w rows must be de-interleaved."""
    T, K = x.shape
    N = w.shape[0]
    out_dtype = x.dtype if out_dtype is None else out_dtype
    bm, bk = _tile(T, bm, 8), _tile(K, bk, 128)
    bn = _tile(N, bn, head_dim)                   # epilogue needs whole heads per tile
    kernel = functools.partial(_linear_rope_kernel, head_dim=head_dim)
    cost = pl.CostEstimate(
        flops=int(2 * T * K * N + 4 * T * N),
        transcendentals=0,
        bytes_accessed=int(x.dtype.itemsize * (T * K + T * N)
                           + w.dtype.itemsize * K * N * (T // bm)),
    )
    return pl.pallas_call(
        kernel,
        out_shape=jax.ShapeDtypeStruct((T, N), out_dtype),
        grid=(T // bm, N // bn, K // bk),
        in_specs=[
            pl.BlockSpec((bm, bk), lambda i, j, k: (i, k)),          # x tile
            pl.BlockSpec((bn, bk), lambda i, j, k: (j, k)),          # W tile
            pl.BlockSpec((bm, head_dim), lambda i, j, k: (i, 0)),    # cos (per token row)
            pl.BlockSpec((bm, head_dim), lambda i, j, k: (i, 0)),    # sin
        ],
        out_specs=pl.BlockSpec((bm, bn), lambda i, j, k: (i, j)),
        scratch_shapes=[pltpu.VMEM((bm, bn), jnp.float32)],
        compiler_params=pltpu.CompilerParams(
            dimension_semantics=("parallel", "parallel", "arbitrary")),
        cost_estimate=cost,
    )(x, w, cos_full, sin_signed)


# ------------------ flash varlen causal attention (GQA-grouped) --------------

def _flash_attn_kernel(kvs_ref, segq_ref, segk_ref, q_ref, k_ref, v_ref, o_ref,
                       m_sc, l_sc, acc_sc, *, block_q, block_k, n_rep, head_dim):
    qi = pl.program_id(1)
    ki = pl.program_id(2)

    @pl.when(ki == 0)
    def _init():
        m_sc[...] = jnp.full_like(m_sc, MASK_VALUE)
        l_sc[...] = jnp.zeros_like(l_sc)
        acc_sc[...] = jnp.zeros_like(acc_sc)

    # Skip KV tiles entirely above the causal diagonal or before this q-tile's first
    # document (their DMAs are also elided by the clamped index_map).
    needed = (ki >= kvs_ref[qi]) & (ki * block_k <= qi * block_q + (block_q - 1))

    @pl.when(needed)
    def _compute():
        k = k_ref[...]
        v = v_ref[...]

        # Per-tile varlen-causal mask, shared by all n_rep query heads of this KV group.
        row = qi * block_q + jax.lax.broadcasted_iota(jnp.int32, (block_q, block_k), 0)
        col = ki * block_k + jax.lax.broadcasted_iota(jnp.int32, (block_q, block_k), 1)
        mask = (segq_ref[...] == segk_ref[...]) & (col <= row)
        maskf = mask.astype(jnp.float32)

        for r in range(n_rep):                         # static unroll over the GQA group
            hsl = slice(r * head_dim, (r + 1) * head_dim)
            # scores = q_r @ k^T  (scale already folded into wq; f32 MXU accumulate)
            s = jax.lax.dot_general(
                q_ref[:, hsl], k, (((1,), (1,)), ((), ())),
                preferred_element_type=jnp.float32)
            s = jnp.where(mask, s, MASK_VALUE)

            m_prev = m_sc[r]
            m_new = jnp.maximum(m_prev, jnp.max(s, axis=-1, keepdims=True))
            alpha = jnp.exp(m_prev - m_new)
            # maskf zeroes fully-masked rows exactly (no reliance on exp underflow).
            p = jnp.exp(s - m_new) * maskf
            l_sc[r] = alpha * l_sc[r] + jnp.sum(p, axis=-1, keepdims=True)
            acc_sc[:, hsl] = alpha * acc_sc[:, hsl] + jnp.dot(
                p.astype(v.dtype), v, preferred_element_type=jnp.float32)
            m_sc[r] = m_new

    @pl.when(ki == pl.num_programs(2) - 1)
    def _finalize():
        parts = []
        for r in range(n_rep):
            inv = pl.reciprocal(l_sc[r], approx=True)            # EUP, nearly free
            parts.append(acc_sc[:, r * head_dim:(r + 1) * head_dim] * inv)
        out = parts[0] if len(parts) == 1 else jnp.concatenate(parts, axis=1)
        o_ref[...] = out.astype(o_ref.dtype)                     # n_rep*128-lane store


def varlen_causal_attention(q, k, v, seg, kv_start_block, n_heads, n_kv_heads, head_dim,
                            *, block_q=256, block_k=256):
    """q: [Tp, H*D], k/v: [Tp, Hkv*D], seg: [Tp] int32, kv_start_block: [Tp//block_q]."""
    Tp = q.shape[0]
    n_rep = n_heads // n_kv_heads
    num_q, num_k = Tp // block_q, Tp // block_k
    seg_col = seg.reshape(Tp, 1)
    seg_row = seg.reshape(1, Tp)
    kernel = functools.partial(_flash_attn_kernel, block_q=block_q, block_k=block_k,
                               n_rep=n_rep, head_dim=head_dim)

    def _clamped_ki(qi, ki, kvs):
        hi = (qi * block_q + block_q - 1) // block_k          # last causally-needed KV block
        return jnp.clip(ki, kvs[qi], hi)                      # skipped steps -> unchanged idx

    itemsize = q.dtype.itemsize
    cost = pl.CostEstimate(
        flops=int(2 * n_heads * Tp * Tp * head_dim),              # causal ~half of 4*H*T^2*D
        transcendentals=int(n_heads * Tp * Tp // 2),
        bytes_accessed=int(itemsize * (2 * Tp * n_heads * head_dim
                                       + num_q * Tp * n_kv_heads * head_dim)),
    )
    grid_spec = pltpu.PrefetchScalarGridSpec(
        num_scalar_prefetch=1,                                   # kv_start_block in SMEM
        grid=(n_kv_heads, num_q, num_k),
        in_specs=[
            pl.BlockSpec((block_q, 1), lambda g, qi, ki, kvs: (qi, 0)),        # seg (queries)
            pl.BlockSpec((1, block_k),
                         lambda g, qi, ki, kvs: (0, _clamped_ki(qi, ki, kvs))),  # seg (keys)
            pl.BlockSpec((block_q, n_rep * head_dim),
                         lambda g, qi, ki, kvs: (qi, g)),                      # q group g
            pl.BlockSpec((block_k, head_dim),
                         lambda g, qi, ki, kvs: (_clamped_ki(qi, ki, kvs), g)),  # k (GQA)
            pl.BlockSpec((block_k, head_dim),
                         lambda g, qi, ki, kvs: (_clamped_ki(qi, ki, kvs), g)),  # v (GQA)
        ],
        out_specs=pl.BlockSpec((block_q, n_rep * head_dim),
                               lambda g, qi, ki, kvs: (qi, g)),
        scratch_shapes=[
            pltpu.VMEM((n_rep, block_q, 1), jnp.float32),           # running max
            pltpu.VMEM((n_rep, block_q, 1), jnp.float32),           # running denominator
            pltpu.VMEM((block_q, n_rep * head_dim), jnp.float32),   # f32 output accumulator
        ])
    return pl.pallas_call(
        kernel,
        out_shape=jax.ShapeDtypeStruct((Tp, n_heads * head_dim), q.dtype),
        grid_spec=grid_spec,
        compiler_params=pltpu.CompilerParams(
            dimension_semantics=("parallel", "parallel", "arbitrary")),
        cost_estimate=cost,
    )(kv_start_block, seg_col, seg_row, q, k, v)


# ------------------------------- forward glue --------------------------------

def attention_forward(params, x, cu_seqlens, max_seqlen, freqs_cos, freqs_sin,
                      n_heads, n_kv_heads, *, block_q=256, block_k=256,
                      compute_dtype=jnp.bfloat16):
    del max_seqlen  # API parity with flash_attn; masking derives from cu_seqlens
    T, dim = x.shape
    head_dim = dim // n_heads
    assert head_dim % 128 == 0, "lane-dense design assumes head_dim % 128 == 0"
    num_seqs = cu_seqlens.shape[0] - 1

    # Pad the packed token axis to the attention tile size; padded tokens get a segment id
    # past the last real sequence, so they never interact with real tokens.
    blk = max(block_q, block_k)
    Tp = ((T + blk - 1) // blk) * blk
    pad = Tp - T
    x_p = jnp.pad(x, ((0, pad), (0, 0))).astype(compute_dtype)

    # Half-rotation RoPE tables (f32): cos -> [cos, cos], sin -> [-sin, sin].
    cos_p = jnp.pad(freqs_cos.astype(jnp.float32), ((0, pad), (0, 0)), constant_values=1.0)
    sin_p = jnp.pad(freqs_sin.astype(jnp.float32), ((0, pad), (0, 0)))
    cos_full = jnp.concatenate([cos_p, cos_p], axis=-1)       # [Tp, head_dim]
    sin_signed = jnp.concatenate([-sin_p, sin_p], axis=-1)    # [Tp, head_dim]

    # One-time weight prep (would be hoisted to parameter init in practice):
    # de-interleave wq/wk rows, fold 1/sqrt(head_dim) into wq, cast to the bf16 MXU dtype.
    scale = 1.0 / math.sqrt(head_dim)
    wq_d = (_deinterleave_rows(params["wq"], n_heads, head_dim) * scale).astype(compute_dtype)
    wk_d = _deinterleave_rows(params["wk"], n_kv_heads, head_dim).astype(compute_dtype)
    wv = params["wv"].astype(compute_dtype)
    wo = params["wo"].astype(compute_dtype)

    # Projections; RoPE fused into the q/k epilogues (no extra HBM round trip).
    xq = linear_rope(x_p, wq_d, cos_full, sin_signed, head_dim)   # [Tp, H*D]
    xk = linear_rope(x_p, wk_d, cos_full, sin_signed, head_dim)   # [Tp, Hkv*D]
    xv = linear(x_p, wv)                                          # [Tp, Hkv*D]

    # Packed-varlen metadata: per-token segment id and per-q-tile first KV block.
    pos = jnp.arange(Tp, dtype=jnp.int32)
    seg = jnp.searchsorted(cu_seqlens[1:], pos, side="right").astype(jnp.int32)
    num_q, num_k = Tp // block_q, Tp // block_k
    q_starts = jnp.arange(num_q, dtype=jnp.int32) * block_q
    doc = jnp.searchsorted(cu_seqlens[1:], q_starts, side="right")
    doc_start = cu_seqlens[jnp.clip(doc, 0, num_seqs)]
    kv_start_block = jnp.clip(doc_start // block_k, 0, num_k - 1).astype(jnp.int32)

    # Flash-style varlen causal attention (GQA group per grid step, doc + causal pruning).
    o = varlen_causal_attention(xq, xk, xv, seg, kv_start_block, n_heads, n_kv_heads,
                                head_dim, block_q=block_q, block_k=block_k)   # [Tp, H*D]

    # Output projection (f32 result), then drop padded rows.
    out = linear(o, wo, out_dtype=jnp.float32)    # [Tp, dim]
    # TODO(synk): tensor-parallel all-reduce for RowParallelLinear (world_size > 1) and the
    #             kv-cache inference_forward path are not implemented.
    return out[:T]


# ------------------------- pure-JAX reference --------------------------------

def _reference_rope(x, cos, sin):
    """Interleaved (complex) RoPE matching torch.view_as_complex semantics."""
    T, H, D = x.shape
    xr = x.astype(jnp.float32).reshape(T, H, D // 2, 2)
    xe, xo = xr[..., 0], xr[..., 1]
    c = cos[:, None, :]
    s = sin[:, None, :]
    oe = xe * c - xo * s
    oo = xe * s + xo * c
    return jnp.stack([oe, oo], axis=-1).reshape(T, H, D).astype(x.dtype)


def reference_forward(params, x, cu_seqlens, cos, sin, n_heads, n_kv_heads):
    T, dim = x.shape
    hd = dim // n_heads
    n_rep = n_heads // n_kv_heads
    xq = (x @ params["wq"].T).reshape(T, n_heads, hd)
    xk = (x @ params["wk"].T).reshape(T, n_kv_heads, hd)
    xv = (x @ params["wv"].T).reshape(T, n_kv_heads, hd)
    xq = _reference_rope(xq, cos, sin)
    xk = _reference_rope(xk, cos, sin)
    xk = jnp.repeat(xk, n_rep, axis=1)
    xv = jnp.repeat(xv, n_rep, axis=1)
    pos = jnp.arange(T)
    seg = jnp.searchsorted(cu_seqlens[1:], pos, side="right")
    s = jnp.einsum("thd,shd->hts", xq, xk) / math.sqrt(hd)
    mask = (seg[:, None] == seg[None, :]) & (pos[:, None] >= pos[None, :])
    s = jnp.where(mask[None], s, MASK_VALUE)
    p = jax.nn.softmax(s, axis=-1)
    o = jnp.einsum("hts,shd->thd", p, xv).reshape(T, n_heads * hd)
    return o @ params["wo"].T


# --------------------------------- main ---------------------------------------

if __name__ == "__main__":
    # Small config with production-style head_dim=128 (lane-dense): dim=512, 4 q heads,
    # 2 kv heads (GQA, n_rep=2); two packed sequences totaling T=480 (padded to 512 so the
    # causal-skip, doc-pruning, boundary-masking and padding paths are all exercised).
    dim, n_heads, n_kv_heads = 512, 4, 2
    head_dim = dim // n_heads
    rope_theta = 500000.0

    seqlens = [300, 180]
    T = sum(seqlens)
    cu_seqlens = jnp.concatenate(
        [jnp.zeros((1,), jnp.int32), jnp.cumsum(jnp.array(seqlens, jnp.int32))]
    ).astype(jnp.int32)
    max_seqlen = jnp.int32(max(seqlens))   # API parity; masking derives from cu_seqlens

    key = jax.random.PRNGKey(0)
    k1, k2, k3, k4, k5 = jax.random.split(key, 5)
    wscale = 0.02
    params = {
        "wq": jax.random.normal(k1, (n_heads * head_dim, dim), jnp.float32) * wscale,
        "wk": jax.random.normal(k2, (n_kv_heads * head_dim, dim), jnp.float32) * wscale,
        "wv": jax.random.normal(k3, (n_kv_heads * head_dim, dim), jnp.float32) * wscale,
        "wo": jax.random.normal(k4, (dim, n_heads * head_dim), jnp.float32) * wscale,
    }
    x = jax.random.normal(k5, (T, dim), jnp.float32)

    # freqs_cis -> cos/sin, positions reset at each sequence start
    positions = jnp.concatenate([jnp.arange(l, dtype=jnp.float32) for l in seqlens])
    inv_freq = 1.0 / (
        rope_theta ** (jnp.arange(0, head_dim, 2, dtype=jnp.float32) / head_dim)
    )
    angles = positions[:, None] * inv_freq[None, :]         # [T, head_dim//2]
    freqs_cos, freqs_sin = jnp.cos(angles), jnp.sin(angles)

    out = attention_forward(
        params, x, cu_seqlens, max_seqlen, freqs_cos, freqs_sin, n_heads, n_kv_heads
    )
    out = jax.block_until_ready(out)

    ref = reference_forward(
        params, x, cu_seqlens, freqs_cos, freqs_sin, n_heads, n_kv_heads
    )
    assert out.shape == (T, dim), out.shape
    max_err = float(jnp.max(jnp.abs(out - ref)))
    assert jnp.allclose(out, ref, atol=2e-2, rtol=2e-2), ("mismatch vs reference", max_err)
    print("KERNEL_OK")
</pallas_src>

<mosaic_0001>
module attributes {stable_mosaic.version = 11 : i64} {
  func.func @_linear_rope_kernel(%arg0: i32, %arg1: i32, %arg2: i32, %arg3: memref<512x512xbf16, #tpu.memory_space<vmem>>, %arg4: memref<256x512xbf16, #tpu.memory_space<vmem>>, %arg5: memref<512x128xf32, #tpu.memory_space<vmem>>, %arg6: memref<512x128xf32, #tpu.memory_space<vmem>>, %arg7: memref<512x256xbf16, #tpu.memory_space<vmem>>, %arg8: memref<512x256xf32, #tpu.memory_space<vmem>>) attributes {dimension_semantics = [#tpu.dimension_semantics<parallel>, #tpu.dimension_semantics<parallel>, #tpu.dimension_semantics<arbitrary>], iteration_bounds = array<i64: 1, 2, 1>, scalar_prefetch = 0 : i64, scratch_operands = 1 : i64, tpu.core_type = #tpu.core_type<tc>, window_params = [{transform_indices = @transform_0, window_bounds = array<i64: 512, 512>}, {transform_indices = @transform_1, window_bounds = array<i64: 256, 512>}, {transform_indices = @transform_2, window_bounds = array<i64: 512, 128>}, {transform_indices = @transform_3, window_bounds = array<i64: 512, 128>}, {transform_indices = @transform_4, window_bounds = array<i64: 512, 256>}]} {
    %c0_i32 = arith.constant 0 : i32
    %0 = arith.cmpi eq, %arg2, %c0_i32 : i32
    %1 = arith.extui %0 : i1 to i32
    %c0_i32_0 = arith.constant 0 : i32
    %2 = arith.cmpi ne, %1, %c0_i32_0 : i32
    scf.if %2 {
      %cst_10 = arith.constant 0.000000e+00 : f32
      %12 = vector.broadcast %cst_10 : f32 to vector<512x256xf32>
      %c0_11 = arith.constant 0 : index
      %c0_12 = arith.constant 0 : index
      %13 = vector.load %arg8[%c0_11, %c0_12] : memref<512x256xf32, #tpu.memory_space<vmem>>, vector<512x256xf32>
      tpu.vector_store %arg8[%c0_11, %c0_12], %12 {strides = array<i32>} : memref<512x256xf32, #tpu.memory_space<vmem>>, vector<512x256xf32>,
    } else {
    }
    %c0 = arith.constant 0 : index
    %c0_1 = arith.constant 0 : index
    %3 = vector.load %arg8[%c0, %c0_1] : memref<512x256xf32, #tpu.memory_space<vmem>>, vector<512x256xf32>
    %c0_2 = arith.constant 0 : index
    %c0_3 = arith.constant 0 : index
    %4 = vector.load %arg3[%c0_2, %c0_3] : memref<512x512xbf16, #tpu.memory_space<vmem>>, vector<512x512xbf16>
    %c0_4 = arith.constant 0 : index
    %c0_5 = arith.constant 0 : index
    %5 = vector.load %arg4[%c0_4, %c0_5] : memref<256x512xbf16, #tpu.memory_space<vmem>>, vector<256x512xbf16>
    %cst = arith.constant dense<0.000000e+00> : vector<512x256xf32>
    %6 = tpu.matmul %4, %5, %cst {dimension_numbers = #tpu.dot_dimension_numbers<[1], [1], [0], [0], [0, 0, 1, 0], [], []>} : vector<512x512xbf16>, vector<256x512xbf16>, vector<512x256xf32> -> vector<512x256xf32>
    %7 = arith.addf %3, %6 : vector<512x256xf32>
    %c0_6 = arith.constant 0 : index
    %c0_7 = arith.constant 0 : index
    %8 = vector.load %arg8[%c0_6, %c0_7] : memref<512x256xf32, #tpu.memory_space<vmem>>, vector<512x256xf32>
    tpu.vector_store %arg8[%c0_6, %c0_7], %7 {strides = array<i32>} : memref<512x256xf32, #tpu.memory_space<vmem>>, vector<512x256xf32>,
    %c0_i32_8 = arith.constant 0 : i32
    %9 = arith.cmpi eq, %arg2, %c0_i32_8 : i32
    %10 = arith.extui %9 : i1 to i32
    %c0_i32_9 = arith.constant 0 : i32
    %11 = arith.cmpi ne, %10, %c0_i32_9 : i32
    scf.if %11 {
      %c0_10 = arith.constant 0 : index
      %c0_11 = arith.constant 0 : index
      %12 = vector.load %arg8[%c0_10, %c0_11] : memref<512x256xf32, #tpu.memory_space<vmem>>, vector<512x256xf32>
      %c0_12 = arith.constant 0 : index
      %c0_13 = arith.constant 0 : index
      %13 = vector.load %arg5[%c0_12, %c0_13] : memref<512x128xf32, #tpu.memory_space<vmem>>, vector<512x128xf32>
      %c0_14 = arith.constant 0 : index
      %c0_15 = arith.constant 0 : index
      %14 = vector.load %arg6[%c0_14, %c0_15] : memref<512x128xf32, #tpu.memory_space<vmem>>, vector<512x128xf32>
      %15 = vector.extract_strided_slice %12 {offsets = [0, 0], sizes = [512, 128], strides = [1, 1]} : vector<512x256xf32> to vector<512x128xf32>
      %c64_i32 = arith.constant 64 : i32
      %16 = tpu.dynamic_rotate %15 by %c64_i32 dim 1 : vector<512x128xf32>, i32 -> vector<512x128xf32>
      %17 = arith.mulf %15, %13 : vector<512x128xf32>
      %18 = arith.mulf %16, %14 : vector<512x128xf32>
      %19 = arith.addf %17, %18 : vector<512x128xf32>
      %20 = vector.extract_strided_slice %12 {offsets = [0, 128], sizes = [512, 128], strides = [1, 1]} : vector<512x256xf32> to vector<512x128xf32>
      %c64_i32_16 = arith.constant 64 : i32
      %21 = tpu.dynamic_rotate %20 by %c64_i32_16 dim 1 : vector<512x128xf32>, i32 -> vector<512x128xf32>
      %22 = arith.mulf %20, %13 : vector<512x128xf32>
      %23 = arith.mulf %21, %14 : vector<512x128xf32>
      %24 = arith.addf %22, %23 : vector<512x128xf32>
      %25 = tpu.concatenate %19, %24 in 1 : vector<512x128xf32>, vector<512x128xf32> -> vector<512x256xf32>
      %26 = arith.truncf %25 : vector<512x256xf32> to vector<512x256xbf16>
      %c0_17 = arith.constant 0 : index
      %c0_18 = arith.constant 0 : index
      %27 = vector.load %arg7[%c0_17, %c0_18] : memref<512x256xbf16, #tpu.memory_space<vmem>>, vector<512x256xbf16>
      tpu.vector_store %arg7[%c0_17, %c0_18], %26 {strides = array<i32>} : memref<512x256xbf16, #tpu.memory_space<vmem>>, vector<512x256xbf16>,
    } else {
    }
    return
  }
  func.func @transform_0(%arg0: i32, %arg1: i32, %arg2: i32) -> (i32, i32) {
    %c0_i32 = arith.constant 0 : i32
    return %arg0, %arg2 : i32, i32
  }
  func.func @transform_1(%arg0: i32, %arg1: i32, %arg2: i32) -> (i32, i32) {
    %c0_i32 = arith.constant 0 : i32
    return %arg1, %arg2 : i32, i32
  }
  func.func @transform_2(%arg0: i32, %arg1: i32, %arg2: i32) -> (i32, i32) {
    %c0_i32 = arith.constant 0 : i32
    %c0_i32_0 = arith.constant 0 : i32
    return %arg0, %c0_i32 : i32, i32
  }
  func.func @transform_3(%arg0: i32, %arg1: i32, %arg2: i32) -> (i32, i32) {
    %c0_i32 = arith.constant 0 : i32
    %c0_i32_0 = arith.constant 0 : i32
    return %arg0, %c0_i32 : i32, i32
  }
  func.func @transform_4(%arg0: i32, %arg1: i32, %arg2: i32) -> (i32, i32) {
    %c0_i32 = arith.constant 0 : i32
    return %arg0, %arg1 : i32, i32
  }
}

</mosaic_0001>

<llo_original>
// kernel: tpu_custom_call.1
$region0: #{tpu_custom_call.1}
  #allocation0 [shape = 'u32[]', space=smem, size = 0x4, offset = 0x4, fixed_abs, tag = 'smem constant byte address 0x4 - core index']
  #allocation1 [shape = 'u32[144,128]{1,0:T(1,128)}', space=vmem, size = 0x12000, scoped, tag = 'internal scratch']
  #allocation2 [shape = 'f32[512,256]{1,0:T(8,128)}', space=vmem, size = 0x80000, scoped, tag = 'scratch operand']
  %s0 = inlined_call_operand.hbm [shape: bf16[512,512], index: 0, kind: input, shape index: {}]
  %s1 = inlined_call_operand.hbm [shape: bf16[512,512], index: 1, kind: input, shape index: {}]
  %s2 = inlined_call_operand.hbm [shape: f32[512,128], index: 2, kind: input, shape index: {}]
  %s3 = inlined_call_operand.hbm [shape: f32[512,128], index: 3, kind: input, shape index: {}]
  %s4 = inlined_call_operand.hbm [shape: bf16[512,512], index: 4, kind: output, shape index: {}]
  %s5 = sld [smem:[#allocation0]]
  $region73: #{tpu_custom_call.1} parent=0
    _
  %s7 = ssub.s32 1, %s5
  %s8 = scalar_select 0, %s7, %s5
  $region1: #{tpu_custom_call.1} parent=0
    #allocation3 [shape = 'u8[524288]{0}', space=vmem, size = 0x80000, scoped, tag = 'input window, operand 0, single buffered']
    #allocation4 [shape = 's32[2]{0}', space=sflag, size = 0x8, scoped, tag = 'scoped memory for tpu_custom_call.1']
    #allocation5 [shape = 's32[2]{0}', space=sflag, size = 0x8, scoped, tag = 'scoped memory for tpu_custom_call.1']
    #allocation6 [shape = 'u8[524288]{0}', space=vmem, size = 0x80000, scoped, tag = 'input window, operand 1']
    #allocation7 [shape = 's32[2]{0}', space=sflag, size = 0x8, scoped, tag = 'scoped memory for tpu_custom_call.1']
    #allocation8 [shape = 'u8[262144]{0}', space=vmem, size = 0x40000, scoped, tag = 'input window, operand 2, single buffered']
    #allocation9 [shape = 'u8[262144]{0}', space=vmem, size = 0x40000, scoped, tag = 'input window, operand 3, single buffered']
    #allocation10 [shape = 's32[1]{0}', space=sflag, size = 0x4, scoped, tag = 'scoped memory for tpu_custom_call.1']
    #allocation11 [shape = 'u8[524288]{0}', space=vmem, size = 0x80000, scoped, tag = 'output window, operand 0']
    %9 = vsyncpa [#allocation4], 0
    %10 = vsyncpa [#allocation7], 0
    %s11 = scalar_lea.sflag [#allocation7], 1
    %12 = vsyncpa %s11, 0
    %13 = vsyncpa [#allocation10], 0
    %14 = vsyncpa [#allocation5], 0
    %s15 = scalar_lea.sflag [#allocation5], 1
    %16 = vsyncpa %s15, 0
    loop: start=0, step=1, limit=4
    $region2: #{tpu_custom_call.1} parent=1 // loop_pre_header
      _
    $region3: #{tpu_custom_call.1} parent=1 // loop_header
      %s18 = sphi 0, %s22
      %p19 = scmp.ge.s32.totalorder %s18, 4
      %s25 = sphi 0, %s44
      %s26 = sphi 0, %s40
      %s27 = sphi 0, %s36
      %s28 = sphi 0, %s25
      %s29 = sphi 0, %s26
      %s30 = sphi 0, %s27
      %s31 = sphi 0, %s28
      %s32 = sphi 0, %s29
      %s33 = sphi 0, %s30
      %s49 = sphi 0, %s51
      %s52 = sphi 0, %s49
      %s53 = sphi 0, %s52
      %s69 = sphi 0, %s53
      %s77 = sphi 0, %s79
      %s80 = sphi 0, %s77
      %s81 = sphi 0, %s80
      %s97 = sphi 0, %s81
      %s103 = sphi 0, %s105
      %s106 = sphi 0, %s103
      %s107 = sphi 0, %s106
      %s123 = sphi 0, %s107
      %s129 = sphi 0, %s131
      %s132 = sphi 0, %s129
      %s133 = sphi 0, %s132
      %s149 = sphi 0, %s133
      %s157 = sphi 0, %s159
      %s160 = sphi 0, %s157
      %s161 = sphi 0, %s160
      %s177 = sphi 0, %s161
    $region4: #{tpu_custom_call.1} parent=1 // loop_header_branch
      %21 = sbr.rel (%p19) target = $region8
    $region5: #{tpu_custom_call.1} parent=1 // loop_body
      %s23 = ssub.s32 %s18, 1
      %s24 = ssub.s32 %s18, 2
      %s34 = sadd.s32 1, %s27
      %p35 = scmp.ge.s32.totalorder %s34, 1
      %s36 = scalar_select %p35, 0, %s34
      %s37 = sadd.s32 1, %s26
      %s38 = scalar_select %p35, %s37, %s26
      %p39 = scmp.ge.s32.totalorder %s38, 2
      %s40 = scalar_select %p39, 0, %s38
      %s41 = sadd.s32 1, %s25
      %s42 = scalar_select %p39, %s41, %s25
      %p43 = scmp.ge.s32.totalorder %s42, 1
      %s44 = scalar_select %p43, 0, %s42
      %s45 = ssub.s32 %s25, %s44
      %s46 = ssub.s32 %s27, %s36
      %s47 = sor.u32 %s45, %s46
      %p48 = scmp.eq.s32.totalorder %s47, 0
      %s50 = sadd.s32 %s49, 1
      %s51 = scalar_select %p48, %s49, %s50
      %p54 = pneg %p48
      %p55 = scmp.eq.s32.totalorder %s18, 1
      %p56 = por %p54, %p55
      %p57 = scmp.ne.s32.totalorder %s49, %s52
      %p58 = scmp.eq.s32.totalorder %s18, 0
      %p59 = por %p57, %p58
      %p60 = scmp.ne.s32.totalorder %s49, %s52
      %p61 = scmp.eq.s32.totalorder %s23, 1
      %p62 = por %p60, %p61
      %p63 = scmp.ne.s32.totalorder %s52, %s53
      %p64 = scmp.eq.s32.totalorder %s23, 0
      %p65 = por %p63, %p64
      %p66 = scmp.ne.s32.totalorder %s52, %s53
      %p67 = scmp.eq.s32.totalorder %s24, 1
      %p68 = por %p66, %p67
      %p70 = scmp.ne.s32.totalorder %s53, %s69
      %p71 = scmp.eq.s32.totalorder %s24, 0
      %p72 = por %p70, %p71
      %s73 = ssub.s32 %s26, %s40
      %s74 = ssub.s32 %s27, %s36
      %s75 = sor.u32 %s73, %s74
      %p76 = scmp.eq.s32.totalorder %s75, 0
      %s78 = sadd.s32 %s77, 1
      %s79 = scalar_select %p76, %s77, %s78
      %p82 = pneg %p76
      %p83 = scmp.eq.s32.totalorder %s18, 1
      %p84 = por %p82, %p83
      %p85 = scmp.ne.s32.totalorder %s77, %s80
      %p86 = scmp.eq.s32.totalorder %s18, 0
      %p87 = por %p85, %p86
      %p88 = scmp.ne.s32.totalorder %s77, %s80
      %p89 = scmp.eq.s32.totalorder %s23, 1
      %p90 = por %p88, %p89
      %p91 = scmp.ne.s32.totalorder %s80, %s81
      %p92 = scmp.eq.s32.totalorder %s23, 0
      %p93 = por %p91, %p92
      %p94 = scmp.ne.s32.totalorder %s80, %s81
      %p95 = scmp.eq.s32.totalorder %s24, 1
      %p96 = por %p94, %p95
      %p98 = scmp.ne.s32.totalorder %s81, %s97
      %p99 = scmp.eq.s32.totalorder %s24, 0
      %p100 = por %p98, %p99
      %s101 = ssub.s32 %s25, %s44
      %p102 = scmp.eq.s32.totalorder %s101, 0
      %s104 = sadd.s32 %s103, 1
      %s105 = scalar_select %p102, %s103, %s104
      %p108 = pneg %p102
      %p109 = scmp.eq.s32.totalorder %s18, 1
      %p110 = por %p108, %p109
      %p111 = scmp.ne.s32.totalorder %s103, %s106
      %p112 = scmp.eq.s32.totalorder %s18, 0
      %p113 = por %p111, %p112
      %p114 = scmp.ne.s32.totalorder %s103, %s106
      %p115 = scmp.eq.s32.totalorder %s23, 1
      %p116 = por %p114, %p115
      %p117 = scmp.ne.s32.totalorder %s106, %s107
      %p118 = scmp.eq.s32.totalorder %s23, 0
      %p119 = por %p117, %p118
      %p120 = scmp.ne.s32.totalorder %s106, %s107
      %p121 = scmp.eq.s32.totalorder %s24, 1
      %p122 = por %p120, %p121
      %p124 = scmp.ne.s32.totalorder %s107, %s123
      %p125 = scmp.eq.s32.totalorder %s24, 0
      %p126 = por %p124, %p125
      %s127 = ssub.s32 %s25, %s44
      %p128 = scmp.eq.s32.totalorder %s127, 0
      %s130 = sadd.s32 %s129, 1
      %s131 = scalar_select %p128, %s129, %s130
      %p134 = pneg %p128
      %p135 = scmp.eq.s32.totalorder %s18, 1
      %p136 = por %p134, %p135
      %p137 = scmp.ne.s32.totalorder %s129, %s132
      %p138 = scmp.eq.s32.totalorder %s18, 0
      %p139 = por %p137, %p138
      %p140 = scmp.ne.s32.totalorder %s129, %s132
      %p141 = scmp.eq.s32.totalorder %s23, 1
      %p142 = por %p140, %p141
      %p143 = scmp.ne.s32.totalorder %s132, %s133
      %p144 = scmp.eq.s32.totalorder %s23, 0
      %p145 = por %p143, %p144
      %p146 = scmp.ne.s32.totalorder %s132, %s133
      %p147 = scmp.eq.s32.totalorder %s24, 1
      %p148 = por %p146, %p147
      %p150 = scmp.ne.s32.totalorder %s133, %s149
      %p151 = scmp.eq.s32.totalorder %s24, 0
      %p152 = por %p150, %p151
      %s153 = ssub.s32 %s25, %s44
      %s154 = ssub.s32 %s26, %s40
      %s155 = sor.u32 %s153, %s154
      %p156 = scmp.eq.s32.totalorder %s155, 0
      %s158 = sadd.s32 %s157, 1
      %s159 = scalar_select %p156, %s157, %s158
      %p162 = pneg %p156
      %p163 = scmp.eq.s32.totalorder %s18, 1
      %p164 = por %p162, %p163
      %p165 = scmp.ne.s32.totalorder %s157, %s160
      %p166 = scmp.eq.s32.totalorder %s18, 0
      %p167 = por %p165, %p166
      %p168 = scmp.ne.s32.totalorder %s157, %s160
      %p169 = scmp.eq.s32.totalorder %s23, 1
      %p170 = por %p168, %p169
      %p171 = scmp.ne.s32.totalorder %s160, %s161
      %p172 = scmp.eq.s32.totalorder %s23, 0
      %p173 = por %p171, %p172
      %p174 = scmp.ne.s32.totalorder %s160, %s161
      %p175 = scmp.eq.s32.totalorder %s24, 1
      %p176 = por %p174, %p175
      %p178 = scmp.ne.s32.totalorder %s161, %s177
      %p179 = scmp.eq.s32.totalorder %s24, 0
      %p180 = por %p178, %p179
      %p181 = scmp.le.s32.totalorder 1, %s18
      %p182 = scmp.lt.s32.totalorder %s18, 3
      %p183 = pnand %p181, %p182
      %p184 = pneg %p183
      // Predicated region
      $region9: #{tpu_custom_call.1} parent=5 // pred_check
        _
      $region10: #{tpu_custom_call.1} parent=5 // pred_check_branch
        %186 = sbr.rel (%p183) target = $region12
      $region11: #{tpu_custom_call.1} parent=5 // pred_region
        %s187 = ssub.s32 %s18, 1
        // Predicated region
        $region13: #{tpu_custom_call.1} parent=11 // pred_check
          %p188 = pneg %p65
        $region14: #{tpu_custom_call.1} parent=11 // pred_check_branch
          %190 = sbr.rel (%p188) target = $region16
        $region15: #{tpu_custom_call.1} parent=11 // pred_region
          %s191 = smul.u32 64, %s28
          %s192 = smul.u32 4, %s30
          %s194 = ssub.s32 16384, 16384
          %195 = vsyncadd [#allocation4], %s194
          %s196 = smul.addr %s191, 4
          %s197 = sadd.s32 %s192, %s196
          %s198 = smul.addr %s197, 64
          %s199 = scalar_lea.hbm %s0, %s198
          %s200 = sshll.u32 [#allocation3], 4
          %s201 = int_to_ptr.vmem [resolvable:$true] %s200
          %206 = dma.hbm_to_vmem [thread:$0]  %s199, 16384, %s201, [#allocation4], 256, 256, 16
        $region16: #{tpu_custom_call.1} parent=11 // pred_fallthru
          _
        // Predicated region
        $region17: #{tpu_custom_call.1} parent=11 // pred_check
          %p207 = pneg %p119
        $region18: #{tpu_custom_call.1} parent=11 // pred_check_branch
          %209 = sbr.rel (%p207) target = $region20
        $region19: #{tpu_custom_call.1} parent=11 // pred_region
          %s210 = smul.u32 64, %s28
          %s212 = ssub.s32 8192, 8192
          %213 = vsyncadd [#allocation7], %s212
          %s214 = smul.addr %s210, 128
          %s215 = scalar_lea.hbm %s2, %s214
          %s216 = sshll.u32 [#allocation8], 4
          %s217 = int_to_ptr.vmem [resolvable:$true] %s216
          %222 = dma.hbm_to_vmem [thread:$0]  %s215, 8192, %s217, [#allocation7], 128, 128, 8
        $region20: #{tpu_custom_call.1} parent=11 // pred_fallthru
          _
        // Predicated region
        $region21: #{tpu_custom_call.1} parent=11 // pred_check
          %p223 = pneg %p145
        $region22: #{tpu_custom_call.1} parent=11 // pred_check_branch
          %225 = sbr.rel (%p223) target = $region24
        $region23: #{tpu_custom_call.1} parent=11 // pred_region
          %s226 = smul.u32 64, %s28
          %s228 = ssub.s32 8192, 8192
          %229 = vsyncadd [#allocation10], %s228
          %s230 = smul.addr %s226, 128
          %s231 = scalar_lea.hbm %s3, %s230
          %s232 = sshll.u32 [#allocation9], 4
          %s233 = int_to_ptr.vmem [resolvable:$true] %s232
          %238 = dma.hbm_to_vmem [thread:$0]  %s231, 8192, %s233, [#allocation10], 128, 128, 8
        $region24: #{tpu_custom_call.1} parent=11 // pred_fallthru
          _
      $region12: #{tpu_custom_call.1} parent=5 // pred_fallthru
        _
      %p239 = scmp.lt.s32.totalorder %s18, 2
      // Predicated region
      $region25: #{tpu_custom_call.1} parent=5 // pred_check
        %p240 = pneg %p239
      $region26: #{tpu_custom_call.1} parent=5 // pred_check_branch
        %242 = sbr.rel (%p240) target = $region28
      $region27: #{tpu_custom_call.1} parent=5 // pred_region
        // Predicated region
        $region29: #{tpu_custom_call.1} parent=27 // pred_check
          %p243 = pneg %p87
        $region30: #{tpu_custom_call.1} parent=27 // pred_check_branch
          %245 = sbr.rel (%p243) target = $region32
        $region31: #{tpu_custom_call.1} parent=27 // pred_region
          %s246 = sand.u32 %s18, 1
          %s247 = scalar_lea.sflag [#allocation7], %s246
          %s248 = sand.u32 %s77, 1
          %s249 = smul.addr %s248, 512
          %s250 = scalar_lea.vmem [#allocation6], %s249
          %s251 = smul.u32 32, %s26
          %s252 = smul.u32 4, %s27
          %s254 = ssub.s32 8192, 8192
          %255 = vsyncadd %s247, %s254
          %s256 = smul.addr %s251, 4
          %s257 = sadd.s32 %s252, %s256
          %s258 = smul.addr %s257, 64
          %s259 = scalar_lea.hbm %s1, %s258
          %s260 = sshll.u32 %s250, 4
          %s261 = int_to_ptr.vmem [resolvable:$true] %s260
          %266 = dma.hbm_to_vmem [thread:$0]  %s259, 8192, %s261, %s247, 256, 256, 16
        $region32: #{tpu_custom_call.1} parent=27 // pred_fallthru
          _
      $region28: #{tpu_custom_call.1} parent=5 // pred_fallthru
        _
      %p267 = scmp.le.s32.totalorder 1, %s18
      %p268 = scmp.lt.s32.totalorder %s18, 3
      %p269 = pnand %p267, %p268
      %p270 = pneg %p269
      // Predicated region
      $region33: #{tpu_custom_call.1} parent=5 // pred_check
        _
      $region34: #{tpu_custom_call.1} parent=5 // pred_check_branch
        %272 = sbr.rel (%p269) target = $region36
      $region35: #{tpu_custom_call.1} parent=5 // pred_region
        %s273 = ssub.s32 %s18, 1
        // Predicated region
        $region37: #{tpu_custom_call.1} parent=35 // pred_check
          %p274 = pneg %p65
        $region38: #{tpu_custom_call.1} parent=35 // pred_check_branch
          %276 = sbr.rel (%p274) target = $region40
        $region39: #{tpu_custom_call.1} parent=35 // pred_region
          %277 = dma.done [#allocation4], 16384
        $region40: #{tpu_custom_call.1} parent=35 // pred_fallthru
          _
        %s278 = sand.u32 %s23, 1
        %s279 = scalar_lea.sflag [#allocation7], %s278
        %s280 = sand.u32 %s80, 1
        %s281 = smul.addr %s280, 512
        %s282 = scalar_lea.vmem [#allocation6], %s281
        // Predicated region
        $region41: #{tpu_custom_call.1} parent=35 // pred_check
          %p283 = pneg %p93
        $region42: #{tpu_custom_call.1} parent=35 // pred_check_branch
          %285 = sbr.rel (%p283) target = $region44
        $region43: #{tpu_custom_call.1} parent=35 // pred_region
          %286 = dma.done %s279, 8192
        $region44: #{tpu_custom_call.1} parent=35 // pred_fallthru
          _
        // Predicated region
        $region45: #{tpu_custom_call.1} parent=35 // pred_check
          %p287 = pneg %p119
        $region46: #{tpu_custom_call.1} parent=35 // pred_check_branch
          %289 = sbr.rel (%p287) target = $region48
        $region47: #{tpu_custom_call.1} parent=35 // pred_region
          %290 = dma.done [#allocation7], 8192
        $region48: #{tpu_custom_call.1} parent=35 // pred_fallthru
          _
        // Predicated region
        $region49: #{tpu_custom_call.1} parent=35 // pred_check
          %p291 = pneg %p145
        $region50: #{tpu_custom_call.1} parent=35 // pred_check_branch
          %293 = sbr.rel (%p291) target = $region52
        $region51: #{tpu_custom_call.1} parent=35 // pred_region
          %294 = dma.done [#allocation10], 8192
        $region52: #{tpu_custom_call.1} parent=35 // pred_fallthru
          _
        %p295 = pneg %p65
        %p296 = pneg %p62
        %s297 = sand.u32 %s23, 1
        %s298 = scalar_lea.sflag [#allocation7], %s297
        %s299 = sand.u32 %s80, 1
        %s300 = smul.addr %s299, 512
        %s301 = scalar_lea.vmem [#allocation6], %s300
        %p302 = pneg %p93
        %p303 = pneg %p90
        %p304 = pneg %p119
        %p305 = pneg %p116
        %p306 = pneg %p145
        %p307 = pneg %p142
        %p308 = pneg %p173
        %p309 = pneg %p170
        %s310 = sand.u32 %s160, 1
        %s311 = scalar_lea.sflag [#allocation5], %s310
        %s312 = sand.u32 %s160, 1
        %s313 = smul.addr %s312, 512
        %s314 = scalar_lea.vmem [#allocation11], %s313
        %s315 = smul.u32 64, %s28
        %s316 = smul.u32 4, %s30
        %s317 = smul.u32 32, %s29
        %s318 = smul.u32 4, %s30
        %s319 = smul.u32 64, %s28
        %s320 = smul.u32 64, %s28
        %s321 = smul.u32 64, %s28
        %s322 = smul.u32 2, %s29
        %p323 = scmp.eq.s32.totalorder %s30, 0
        // Predicated region
        $region53: #{tpu_custom_call.1} parent=35 // pred_check
          %p324 = pneg %p323
        $region54: #{tpu_custom_call.1} parent=35 // pred_check_branch
          %326 = sbr.rel (%p324) target = $region56
        $region55: #{tpu_custom_call.1} parent=35 // pred_region
          %327 = vst [vmem:[#allocation2] sm:$0xff] 0.0
          %328 = vst [vmem:[#allocation2 + $0x8] sm:$0xff] 0.0
          %329 = vst [vmem:[#allocation2 + $0x10] sm:$0xff] 0.0
          %330 = vst [vmem:[#allocation2 + $0x18] sm:$0xff] 0.0
          %331 = vst [vmem:[#allocation2 + $0x20] sm:$0xff] 0.0
          %332 = vst [vmem:[#allocation2 + $0x28] sm:$0xff] 0.0
          %333 = vst [vmem:[#allocation2 + $0x30] sm:$0xff] 0.0
          %334 = vst [vmem:[#allocation2 + $0x38] sm:$0xff] 0.0
          %335 = vst [vmem:[#allocation2 + $0x40] sm:$0xff] 0.0
          %336 = vst [vmem:[#allocation2 + $0x48] sm:$0xff] 0.0
          %337 = vst [vmem:[#allocation2 + $0x50] sm:$0xff] 0.0
          %338 = vst [vmem:[#allocation2 + $0x58] sm:$0xff] 0.0
          %339 = vst [vmem:[#allocation2 + $0x60] sm:$0xff] 0.0
          %340 = vst [vmem:[#allocation2 + $0x68] sm:$0xff] 0.0
          %341 = vst [vmem:[#allocation2 + $0x70] sm:$0xff] 0.0
          %342 = vst [vmem:[#allocation2 + $0x78] sm:$0xff] 0.0
          %343 = vst [vmem:[#allocation2 + $0x80] sm:$0xff] 0.0
          %344 = vst [vmem:[#allocation2 + $0x88] sm:$0xff] 0.0
          %345 = vst [vmem:[#allocation2 + $0x90] sm:$0xff] 0.0
          %346 = vst [vmem:[#allocation2 + $0x98] sm:$0xff] 0.0
          %347 = vst [vmem:[#allocation2 + $0xa0] sm:$0xff] 0.0
          %348 = vst [vmem:[#allocation2 + $0xa8] sm:$0xff] 0.0
          %349 = vst [vmem:[#allocation2 + $0xb0] sm:$0xff] 0.0
          %350 = vst [vmem:[#allocation2 + $0xb8] sm:$0xff] 0.0
          %351 = vst [vmem:[#allocation2 + $0xc0] sm:$0xff] 0.0
          %352 = vst [vmem:[#allocation2 + $0xc8] sm:$0xff] 0.0
          %353 = vst [vmem:[#allocation2 + $0xd0] sm:$0xff] 0.0
          %354 = vst [vmem:[#allocation2 + $0xd8] sm:$0xff] 0.0
          %355 = vst [vmem:[#allocation2 + $0xe0] sm:$0xff] 0.0
          %356 = vst [vmem:[#allocation2 + $0xe8] sm:$0xff] 0.0
          %357 = vst [vmem:[#allocation2 + $0xf0] sm:$0xff] 0.0
          %358 = vst [vmem:[#allocation2 + $0xf8] sm:$0xff] 0.0
          %359 = vst [vmem:[#allocation2 + $0x100] sm:$0xff] 0.0
          %360 = vst [vmem:[#allocation2 + $0x108] sm:$0xff] 0.0
          %361 = vst [vmem:[#allocation2 + $0x110] sm:$0xff] 0.0
          %362 = vst [vmem:[#allocation2 + $0x118] sm:$0xff] 0.0
          %363 = vst [vmem:[#allocation2 + $0x120] sm:$0xff] 0.0
          %364 = vst [vmem:[#allocation2 + $0x128] sm:$0xff] 0.0
          %365 = vst [vmem:[#allocation2 + $0x130] sm:$0xff] 0.0
          %366 = vst [vmem:[#allocation2 + $0x138] sm:$0xff] 0.0
          %367 = vst [vmem:[#allocation2 + $0x140] sm:$0xff] 0.0
          %368 = vst [vmem:[#allocation2 + $0x148] sm:$0xff] 0.0
          %369 = vst [vmem:[#allocation2 + $0x150] sm:$0xff] 0.0
          %370 = vst [vmem:[#allocation2 + $0x158] sm:$0xff] 0.0
          %371 = vst [vmem:[#allocation2 + $0x160] sm:$0xff] 0.0
          %372 = vst [vmem:[#allocation2 + $0x168] sm:$0xff] 0.0
          %373 = vst [vmem:[#allocation2 + $0x170] sm:$0xff] 0.0
          %374 = vst [vmem:[#allocation2 + $0x178] sm:$0xff] 0.0
          %375 = vst [vmem:[#allocation2 + $0x180] sm:$0xff] 0.0
          %376 = vst [vmem:[#allocation2 + $0x188] sm:$0xff] 0.0
          %377 = vst [vmem:[#allocation2 + $0x190] sm:$0xff] 0.0
          %378 = vst [vmem:[#allocation2 + $0x198] sm:$0xff] 0.0
          %379 = vst [vmem:[#allocation2 + $0x1a0] sm:$0xff] 0.0
          %380 = vst [vmem:[#allocation2 + $0x1a8] sm:$0xff] 0.0
          %381 = vst [vmem:[#allocation2 + $0x1b0] sm:$0xff] 0.0
          %382 = vst [vmem:[#allocation2 + $0x1b8] sm:$0xff] 0.0
          %383 = vst [vmem:[#allocation2 + $0x1c0] sm:$0xff] 0.0
          %384 = vst [vmem:[#allocation2 + $0x1c8] sm:$0xff] 0.0
          %385 = vst [vmem:[#allocation2 + $0x1d0] sm:$0xff] 0.0
          %386 = vst [vmem:[#allocation2 + $0x1d8] sm:$0xff] 0.0
          %387 = vst [vmem:[#allocation2 + $0x1e0] sm:$0xff] 0.0
          %388 = vst [vmem:[#allocation2 + $0x1e8] sm:$0xff] 0.0
          %389 = vst [vmem:[#allocation2 + $0x1f0] sm:$0xff] 0.0
          %390 = vst [vmem:[#allocation2 + $0x1f8] sm:$0xff] 0.0
          %391 = vst [vmem:[#allocation2 + $0x200] sm:$0xff] 0.0
          %392 = vst [vmem:[#allocation2 + $0x208] sm:$0xff] 0.0
          %393 = vst [vmem:[#allocation2 + $0x210] sm:$0xff] 0.0
          %394 = vst [vmem:[#allocation2 + $0x218] sm:$0xff] 0.0
          %395 = vst [vmem:[#allocation2 + $0x220] sm:$0xff] 0.0
          %396 = vst [vmem:[#allocation2 + $0x228] sm:$0xff] 0.0
          %397 = vst [vmem:[#allocation2 + $0x230] sm:$0xff] 0.0
          %398 = vst [vmem:[#allocation2 + $0x238] sm:$0xff] 0.0
          %399 = vst [vmem:[#allocation2 + $0x240] sm:$0xff] 0.0
          %400 = vst [vmem:[#allocation2 + $0x248] sm:$0xff] 0.0
          %401 = vst [vmem:[#allocation2 + $0x250] sm:$0xff] 0.0
          %402 = vst [vmem:[#allocation2 + $0x258] sm:$0xff] 0.0
          %403 = vst [vmem:[#allocation2 + $0x260] sm:$0xff] 0.0
          %404 = vst [vmem:[#allocation2 + $0x268] sm:$0xff] 0.0
          %405 = vst [vmem:[#allocation2 + $0x270] sm:$0xff] 0.0
          %406 = vst [vmem:[#allocation2 + $0x278] sm:$0xff] 0.0
          %407 = vst [vmem:[#allocation2 + $0x280] sm:$0xff] 0.0
          %408 = vst [vmem:[#allocation2 + $0x288] sm:$0xff] 0.0
          %409 = vst [vmem:[#allocation2 + $0x290] sm:$0xff] 0.0
          %410 = vst [vmem:[#allocation2 + $0x298] sm:$0xff] 0.0
          %411 = vst [vmem:[#allocation2 + $0x2a0] sm:$0xff] 0.0
          %412 = vst [vmem:[#allocation2 + $0x2a8] sm:$0xff] 0.0
          %413 = vst [vmem:[#allocation2 + $0x2b0] sm:$0xff] 0.0
          %414 = vst [vmem:[#allocation2 + $0x2b8] sm:$0xff] 0.0
          %415 = vst [vmem:[#allocation2 + $0x2c0] sm:$0xff] 0.0
          %416 = vst [vmem:[#allocation2 + $0x2c8] sm:$0xff] 0.0
          %417 = vst [vmem:[#allocation2 + $0x2d0] sm:$0xff] 0.0
          %418 = vst [vmem:[#allocation2 + $0x2d8] sm:$0xff] 0.0
          %419 = vst [vmem:[#allocation2 + $0x2e0] sm:$0xff] 0.0
          %420 = vst [vmem:[#allocation2 + $0x2e8] sm:$0xff] 0.0
          %421 = vst [vmem:[#allocation2 + $0x2f0] sm:$0xff] 0.0
          %422 = vst [vmem:[#allocation2 + $0x2f8] sm:$0xff] 0.0
          %423 = vst [vmem:[#allocation2 + $0x300] sm:$0xff] 0.0
          %424 = vst [vmem:[#allocation2 + $0x308] sm:$0xff] 0.0
          %425 = vst [vmem:[#allocation2 + $0x310] sm:$0xff] 0.0
          %426 = vst [vmem:[#allocation2 + $0x318] sm:$0xff] 0.0
          %427 = vst [vmem:[#allocation2 + $0x320] sm:$0xff] 0.0
          %428 = vst [vmem:[#allocation2 + $0x328] sm:$0xff] 0.0
          %429 = vst [vmem:[#allocation2 + $0x330] sm:$0xff] 0.0
          %430 = vst [vmem:[#allocation2 + $0x338] sm:$0xff] 0.0
          %431 = vst [vmem:[#allocation2 + $0x340] sm:$0xff] 0.0
          %432 = vst [vmem:[#allocation2 + $0x348] sm:$0xff] 0.0
          %433 = vst [vmem:[#allocation2 + $0x350] sm:$0xff] 0.0
          %434 = vst [vmem:[#allocation2 + $0x358] sm:$0xff] 0.0
          %435 = vst [vmem:[#allocation2 + $0x360] sm:$0xff] 0.0
          %436 = vst [vmem:[#allocation2 + $0x368] sm:$0xff] 0.0
          %437 = vst [vmem:[#allocation2 + $0x370] sm:$0xff] 0.0
          %438 = vst [vmem:[#allocation2 + $0x378] sm:$0xff] 0.0
          %439 = vst [vmem:[#allocation2 + $0x380] sm:$0xff] 0.0
          %440 = vst [vmem:[#allocation2 + $0x388] sm:$0xff] 0.0
          %441 = vst [vmem:[#allocation2 + $0x390] sm:$0xff] 0.0
          %442 = vst [vmem:[#allocation2 + $0x398] sm:$0xff] 0.0
          %443 = vst [vmem:[#allocation2 + $0x3a0] sm:$0xff] 0.0
          %444 = vst [vmem:[#allocation2 + $0x3a8] sm:$0xff] 0.0
          %445 = vst [vmem:[#allocation2 + $0x3b0] sm:$0xff] 0.0
          %446 = vst [vmem:[#allocation2 + $0x3b8] sm:$0xff] 0.0
          %447 = vst [vmem:[#allocation2 + $0x3c0] sm:$0xff] 0.0
          %448 = vst [vmem:[#allocation2 + $0x3c8] sm:$0xff] 0.0
          %449 = vst [vmem:[#allocation2 + $0x3d0] sm:$0xff] 0.0
          %450 = vst [vmem:[#allocation2 + $0x3d8] sm:$0xff] 0.0
          %451 = vst [vmem:[#allocation2 + $0x3e0] sm:$0xff] 0.0
          %452 = vst [vmem:[#allocation2 + $0x3e8] sm:$0xff] 0.0
          %453 = vst [vmem:[#allocation2 + $0x3f0] sm:$0xff] 0.0
          %454 = vst [vmem:[#allocation2 + $0x3f8] sm:$0xff] 0.0
        $region56: #{tpu_custom_call.1} parent=35 // pred_fallthru
          _
        %v455 = vld [vmem:[#allocation2] sm:$0xff]
        %v456 = vld [vmem:[#allocation2 + $0x8] sm:$0xff]
        %v457 = vld [vmem:[#allocation2 + $0x10] sm:$0xff]
        %v458 = vld [vmem:[#allocation2 + $0x18] sm:$0xff]
        %v459 = vld [vmem:[#allocation2 + $0x20] sm:$0xff]
        %v460 = vld [vmem:[#allocation2 + $0x28] sm:$0xff]
        %v461 = vld [vmem:[#allocation2 + $0x30] sm:$0xff]
        %v462 = vld [vmem:[#allocation2 + $0x38] sm:$0xff]
        %v463 = vld [vmem:[#allocation2 + $0x40] sm:$0xff]
        %v464 = vld [vmem:[#allocation2 + $0x48] sm:$0xff]
        %v465 = vld [vmem:[#allocation2 + $0x50] sm:$0xff]
        %v466 = vld [vmem:[#allocation2 + $0x58] sm:$0xff]
        %v467 = vld [vmem:[#allocation2 + $0x60] sm:$0xff]
        %v468 = vld [vmem:[#allocation2 + $0x68] sm:$0xff]
        %v469 = vld [vmem:[#allocation2 + $0x70] sm:$0xff]
        %v470 = vld [vmem:[#allocation2 + $0x78] sm:$0xff]
        %v471 = vld [vmem:[#allocation2 + $0x80] sm:$0xff]
        %v472 = vld [vmem:[#allocation2 + $0x88] sm:$0xff]
        %v473 = vld [vmem:[#allocation2 + $0x90] sm:$0xff]
        %v474 = vld [vmem:[#allocation2 + $0x98] sm:$0xff]
        %v475 = vld [vmem:[#allocation2 + $0xa0] sm:$0xff]
        %v476 = vld [vmem:[#allocation2 + $0xa8] sm:$0xff]
        %v477 = vld [vmem:[#allocation2 + $0xb0] sm:$0xff]
        %v478 = vld [vmem:[#allocation2 + $0xb8] sm:$0xff]
        %v479 = vld [vmem:[#allocation2 + $0xc0] sm:$0xff]
        %v480 = vld [vmem:[#allocation2 + $0xc8] sm:$0xff]
        %v481 = vld [vmem:[#allocation2 + $0xd0] sm:$0xff]
        %v482 = vld [vmem:[#allocation2 + $0xd8] sm:$0xff]
        %v483 = vld [vmem:[#allocation2 + $0xe0] sm:$0xff]
        %v484 = vld [vmem:[#allocation2 + $0xe8] sm:$0xff]
        %v485 = vld [vmem:[#allocation2 + $0xf0] sm:$0xff]
        %v486 = vld [vmem:[#allocation2 + $0xf8] sm:$0xff]
        %v487 = vld [vmem:[#allocation2 + $0x100] sm:$0xff]
        %v488 = vld [vmem:[#allocation2 + $0x108] sm:$0xff]
        %v489 = vld [vmem:[#allocation2 + $0x110] sm:$0xff]
        %v490 = vld [vmem:[#allocation2 + $0x118] sm:$0xff]
        %v491 = vld [vmem:[#allocation2 + $0x120] sm:$0xff]
        %v492 = vld [vmem:[#allocation2 + $0x128] sm:$0xff]
        %v493 = vld [vmem:[#allocation2 + $0x130] sm:$0xff]
        %v494 = vld [vmem:[#allocation2 + $0x138] sm:$0xff]
        %v495 = vld [vmem:[#allocation2 + $0x140] sm:$0xff]
        %v496 = vld [vmem:[#allocation2 + $0x148] sm:$0xff]
        %v497 = vld [vmem:[#allocation2 + $0x150] sm:$0xff]
        %v498 = vld [vmem:[#allocation2 + $0x158] sm:$0xff]
        %v499 = vld [vmem:[#allocation2 + $0x160] sm:$0xff]
        %v500 = vld [vmem:[#allocation2 + $0x168] sm:$0xff]
        %v501 = vld [vmem:[#allocation2 + $0x170] sm:$0xff]
        %v502 = vld [vmem:[#allocation2 + $0x178] sm:$0xff]
        %v503 = vld [vmem:[#allocation2 + $0x180] sm:$0xff]
        %v504 = vld [vmem:[#allocation2 + $0x188] sm:$0xff]
        %v505 = vld [vmem:[#allocation2 + $0x190] sm:$0xff]
        %v506 = vld [vmem:[#allocation2 + $0x198] sm:$0xff]
        %v507 = vld [vmem:[#allocation2 + $0x1a0] sm:$0xff]
        %v508 = vld [vmem:[#allocation2 + $0x1a8] sm:$0xff]
        %v509 = vld [vmem:[#allocation2 + $0x1b0] sm:$0xff]
        %v510 = vld [vmem:[#allocation2 + $0x1b8] sm:$0xff]
        %v511 = vld [vmem:[#allocation2 + $0x1c0] sm:$0xff]
        %v512 = vld [vmem:[#allocation2 + $0x1c8] sm:$0xff]
        %v513 = vld [vmem:[#allocation2 + $0x1d0] sm:$0xff]
        %v514 = vld [vmem:[#allocation2 + $0x1d8] sm:$0xff]
        %v515 = vld [vmem:[#allocation2 + $0x1e0] sm:$0xff]
        %v516 = vld [vmem:[#allocation2 + $0x1e8] sm:$0xff]
        %v517 = vld [vmem:[#allocation2 + $0x1f0] sm:$0xff]
        %v518 = vld [vmem:[#allocation2 + $0x1f8] sm:$0xff]
        %v519 = vld [vmem:[#allocation2 + $0x200] sm:$0xff]
        %v520 = vld [vmem:[#allocation2 + $0x208] sm:$0xff]
        %v521 = vld [vmem:[#allocation2 + $0x210] sm:$0xff]
        %v522 = vld [vmem:[#allocation2 + $0x218] sm:$0xff]
        %v523 = vld [vmem:[#allocation2 + $0x220] sm:$0xff]
        %v524 = vld [vmem:[#allocation2 + $0x228] sm:$0xff]
        %v525 = vld [vmem:[#allocation2 + $0x230] sm:$0xff]
        %v526 = vld [vmem:[#allocation2 + $0x238] sm:$0xff]
        %v527 = vld [vmem:[#allocation2 + $0x240] sm:$0xff]
        %v528 = vld [vmem:[#allocation2 + $0x248] sm:$0xff]
        %v529 = vld [vmem:[#allocation2 + $0x250] sm:$0xff]
        %v530 = vld [vmem:[#allocation2 + $0x258] sm:$0xff]
        %v531 = vld [vmem:[#allocation2 + $0x260] sm:$0xff]
        %v532 = vld [vmem:[#allocation2 + $0x268] sm:$0xff]
        %v533 = vld [vmem:[#allocation2 + $0x270] sm:$0xff]
        %v534 = vld [vmem:[#allocation2 + $0x278] sm:$0xff]
        %v535 = vld [vmem:[#allocation2 + $0x280] sm:$0xff]
        %v536 = vld [vmem:[#allocation2 + $0x288] sm:$0xff]
        %v537 = vld [vmem:[#allocation2 + $0x290] sm:$0xff]
        %v538 = vld [vmem:[#allocation2 + $0x298] sm:$0xff]
        %v539 = vld [vmem:[#allocation2 + $0x2a0] sm:$0xff]
        %v540 = vld [vmem:[#allocation2 + $0x2a8] sm:$0xff]
        %v541 = vld [vmem:[#allocation2 + $0x2b0] sm:$0xff]
        %v542 = vld [vmem:[#allocation2 + $0x2b8] sm:$0xff]
        %v543 = vld [vmem:[#allocation2 + $0x2c0] sm:$0xff]
        %v544 = vld [vmem:[#allocation2 + $0x2c8] sm:$0xff]
        %v545 = vld [vmem:[#allocation2 + $0x2d0] sm:$0xff]
        %v546 = vld [vmem:[#allocation2 + $0x2d8] sm:$0xff]
        %v547 = vld [vmem:[#allocation2 + $0x2e0] sm:$0xff]
        %v548 = vld [vmem:[#allocation2 + $0x2e8] sm:$0xff]
        %v549 = vld [vmem:[#allocation2 + $0x2f0] sm:$0xff]
        %v550 = vld [vmem:[#allocation2 + $0x2f8] sm:$0xff]
        %v551 = vld [vmem:[#allocation2 + $0x300] sm:$0xff]
        %v552 = vld [vmem:[#allocation2 + $0x308] sm:$0xff]
        %v553 = vld [vmem:[#allocation2 + $0x310] sm:$0xff]
        %v554 = vld [vmem:[#allocation2 + $0x318] sm:$0xff]
        %v555 = vld [vmem:[#allocation2 + $0x320] sm:$0xff]
        %v556 = vld [vmem:[#allocation2 + $0x328] sm:$0xff]
        %v557 = vld [vmem:[#allocation2 + $0x330] sm:$0xff]
        %v558 = vld [vmem:[#allocation2 + $0x338] sm:$0xff]
        %v559 = vld [vmem:[#allocation2 + $0x340] sm:$0xff]
        %v560 = vld [vmem:[#allocation2 + $0x348] sm:$0xff]
        %v561 = vld [vmem:[#allocation2 + $0x350] sm:$0xff]
        %v562 = vld [vmem:[#allocation2 + $0x358] sm:$0xff]
        %v563 = vld [vmem:[#allocation2 + $0x360] sm:$0xff]
        %v564 = vld [vmem:[#allocation2 + $0x368] sm:$0xff]
        %v565 = vld [vmem:[#allocation2 + $0x370] sm:$0xff]
        %v566 = vld [vmem:[#allocation2 + $0x378] sm:$0xff]
        %v567 = vld [vmem:[#allocation2 + $0x380] sm:$0xff]
        %v568 = vld [vmem:[#allocation2 + $0x388] sm:$0xff]
        %v569 = vld [vmem:[#allocation2 + $0x390] sm:$0xff]
        %v570 = vld [vmem:[#allocation2 + $0x398] sm:$0xff]
        %v571 = vld [vmem:[#allocation2 + $0x3a0] sm:$0xff]
        %v572 = vld [vmem:[#allocation2 + $0x3a8] sm:$0xff]
        %v573 = vld [vmem:[#allocation2 + $0x3b0] sm:$0xff]
        %v574 = vld [vmem:[#allocation2 + $0x3b8] sm:$0xff]
        %v575 = vld [vmem:[#allocation2 + $0x3c0] sm:$0xff]
        %v576 = vld [vmem:[#allocation2 + $0x3c8] sm:$0xff]
        %v577 = vld [vmem:[#allocation2 + $0x3d0] sm:$0xff]
        %v578 = vld [vmem:[#allocation2 + $0x3d8] sm:$0xff]
        %v579 = vld [vmem:[#allocation2 + $0x3e0] sm:$0xff]
        %v580 = vld [vmem:[#allocation2 + $0x3e8] sm:$0xff]
        %v581 = vld [vmem:[#allocation2 + $0x3f0] sm:$0xff]
        %v582 = vld [vmem:[#allocation2 + $0x3f8] sm:$0xff]
        %v583 = vld [vmem:[#allocation3] sm:$0xff]
        %v584 = vld [vmem:[#allocation3 + $0x8] sm:$0xff]
        %v585 = vld [vmem:[#allocation3 + $0x10] sm:$0xff]
        %v586 = vld [vmem:[#allocation3 + $0x18] sm:$0xff]
        %v587 = vld [vmem:[#allocation3 + $0x20] sm:$0xff]
        %v588 = vld [vmem:[#allocation3 + $0x28] sm:$0xff]
        %v589 = vld [vmem:[#allocation3 + $0x30] sm:$0xff]
        %v590 = vld [vmem:[#allocation3 + $0x38] sm:$0xff]
        %v591 = vld [vmem:[#allocation3 + $0x40] sm:$0xff]
        %v592 = vld [vmem:[#allocation3 + $0x48] sm:$0xff]
        %v593 = vld [vmem:[#allocation3 + $0x50] sm:$0xff]
        %v594 = vld [vmem:[#allocation3 + $0x58] sm:$0xff]
        %v595 = vld [vmem:[#allocation3 + $0x60] sm:$0xff]
        %v596 = vld [vmem:[#allocation3 + $0x68] sm:$0xff]
        %v597 = vld [vmem:[#allocation3 + $0x70] sm:$0xff]
        %v598 = vld [vmem:[#allocation3 + $0x78] sm:$0xff]
        %v599 = vld [vmem:[#allocation3 + $0x80] sm:$0xff]
        %v600 = vld [vmem:[#allocation3 + $0x88] sm:$0xff]
        %v601 = vld [vmem:[#allocation3 + $0x90] sm:$0xff]
        %v602 = vld [vmem:[#allocation3 + $0x98] sm:$0xff]
        %v603 = vld [vmem:[#allocation3 + $0xa0] sm:$0xff]
        %v604 = vld [vmem:[#allocation3 + $0xa8] sm:$0xff]
        %v605 = vld [vmem:[#allocation3 + $0xb0] sm:$0xff]
        %v606 = vld [vmem:[#allocation3 + $0xb8] sm:$0xff]
        %v607 = vld [vmem:[#allocation3 + $0xc0] sm:$0xff]
        %v608 = vld [vmem:[#allocation3 + $0xc8] sm:$0xff]
        %v609 = vld [vmem:[#allocation3 + $0xd0] sm:$0xff]
        %v610 = vld [vmem:[#allocation3 + $0xd8] sm:$0xff]
        %v611 = vld [vmem:[#allocation3 + $0xe0] sm:$0xff]
        %v612 = vld [vmem:[#allocation3 + $0xe8] sm:$0xff]
        %v613 = vld [vmem:[#allocation3 + $0xf0] sm:$0xff]
        %v614 = vld [vmem:[#allocation3 + $0xf8] sm:$0xff]
        %v615 = vld [vmem:[#allocation3 + $0x100] sm:$0xff]
        %v616 = vld [vmem:[#allocation3 + $0x108] sm:$0xff]
        %v617 = vld [vmem:[#allocation3 + $0x110] sm:$0xff]
        %v618 = vld [vmem:[#allocation3 + $0x118] sm:$0xff]
        %v619 = vld [vmem:[#allocation3 + $0x120] sm:$0xff]
        %v620 = vld [vmem:[#allocation3 + $0x128] sm:$0xff]
        %v621 = vld [vmem:[#allocation3 + $0x130] sm:$0xff]
        %v622 = vld [vmem:[#allocation3 + $0x138] sm:$0xff]
        %v623 = vld [vmem:[#allocation3 + $0x140] sm:$0xff]
        %v624 = vld [vmem:[#allocation3 + $0x148] sm:$0xff]
        %v625 = vld [vmem:[#allocation3 + $0x150] sm:$0xff]
        %v626 = vld [vmem:[#allocation3 + $0x158] sm:$0xff]
        %v627 = vld [vmem:[#allocation3 + $0x160] sm:$0xff]
        %v628 = vld [vmem:[#allocation3 + $0x168] sm:$0xff]
        %v629 = vld [vmem:[#allocation3 + $0x170] sm:$0xff]
        %v630 = vld [vmem:[#allocation3 + $0x178] sm:$0xff]
        %v631 = vld [vmem:[#allocation3 + $0x180] sm:$0xff]
        %v632 = vld [vmem:[#allocation3 + $0x188] sm:$0xff]
        %v633 = vld [vmem:[#allocation3 + $0x190] sm:$0xff]
        %v634 = vld [vmem:[#allocation3 + $0x198] sm:$0xff]
        %v635 = vld [vmem:[#allocation3 + $0x1a0] sm:$0xff]
        %v636 = vld [vmem:[#allocation3 + $0x1a8] sm:$0xff]
        %v637 = vld [vmem:[#allocation3 + $0x1b0] sm:$0xff]
        %v638 = vld [vmem:[#allocation3 + $0x1b8] sm:$0xff]
        %v639 = vld [vmem:[#allocation3 + $0x1c0] sm:$0xff]
        %v640 = vld [vmem:[#allocation3 + $0x1c8] sm:$0xff]
        %v641 = vld [vmem:[#allocation3 + $0x1d0] sm:$0xff]
        %v642 = vld [vmem:[#allocation3 + $0x1d8] sm:$0xff]
        %v643 = vld [vmem:[#allocation3 + $0x1e0] sm:$0xff]
        %v644 = vld [vmem:[#allocation3 + $0x1e8] sm:$0xff]
        %v645 = vld [vmem:[#allocation3 + $0x1f0] sm:$0xff]
        %v646 = vld [vmem:[#allocation3 + $0x1f8] sm:$0xff]
        %v647 = vld [vmem:[#allocation3 + $0x200] sm:$0xff]
        %v648 = vld [vmem:[#allocation3 + $0x208] sm:$0xff]
        %v649 = vld [vmem:[#allocation3 + $0x210] sm:$0xff]
        %v650 = vld [vmem:[#allocation3 + $0x218] sm:$0xff]
        %v651 = vld [vmem:[#allocation3 + $0x220] sm:$0xff]
        %v652 = vld [vmem:[#allocation3 + $0x228] sm:$0xff]
        %v653 = vld [vmem:[#allocation3 + $0x230] sm:$0xff]
        %v654 = vld [vmem:[#allocation3 + $0x238] sm:$0xff]
        %v655 = vld [vmem:[#allocation3 + $0x240] sm:$0xff]
        %v656 = vld [vmem:[#allocation3 + $0x248] sm:$0xff]
        %v657 = vld [vmem:[#allocation3 + $0x250] sm:$0xff]
        %v658 = vld [vmem:[#allocation3 + $0x258] sm:$0xff]
        %v659 = vld [vmem:[#allocation3 + $0x260] sm:$0xff]
        %v660 = vld [vmem:[#allocation3 + $0x268] sm:$0xff]
        %v661 = vld [vmem:[#allocation3 + $0x270] sm:$0xff]
        %v662 = vld [vmem:[#allocation3 + $0x278] sm:$0xff]
        %v663 = vld [vmem:[#allocation3 + $0x280] sm:$0xff]
        %v664 = vld [vmem:[#allocation3 + $0x288] sm:$0xff]
        %v665 = vld [vmem:[#allocation3 + $0x290] sm:$0xff]
        %v666 = vld [vmem:[#allocation3 + $0x298] sm:$0xff]
        %v667 = vld [vmem:[#allocation3 + $0x2a0] sm:$0xff]
        %v668 = vld [vmem:[#allocation3 + $0x2a8] sm:$0xff]
        %v669 = vld [vmem:[#allocation3 + $0x2b0] sm:$0xff]
        %v670 = vld [vmem:[#allocation3 + $0x2b8] sm:$0xff]
        %v671 = vld [vmem:[#allocation3 + $0x2c0] sm:$0xff]
        %v672 = vld [vmem:[#allocation3 + $0x2c8] sm:$0xff]
        %v673 = vld [vmem:[#allocation3 + $0x2d0] sm:$0xff]
        %v674 = vld [vmem:[#allocation3 + $0x2d8] sm:$0xff]
        %v675 = vld [vmem:[#allocation3 + $0x2e0] sm:$0xff]
        %v676 = vld [vmem:[#allocation3 + $0x2e8] sm:$0xff]
        %v677 = vld [vmem:[#allocation3 + $0x2f0] sm:$0xff]
        %v678 = vld [vmem:[#allocation3 + $0x2f8] sm:$0xff]
        %v679 = vld [vmem:[#allocation3 + $0x300] sm:$0xff]
        %v680 = vld [vmem:[#allocation3 + $0x308] sm:$0xff]
        %v681 = vld [vmem:[#allocation3 + $0x310] sm:$0xff]
        %v682 = vld [vmem:[#allocation3 + $0x318] sm:$0xff]
        %v683 = vld [vmem:[#allocation3 + $0x320] sm:$0xff]
        %v684 = vld [vmem:[#allocation3 + $0x328] sm:$0xff]
        %v685 = vld [vmem:[#allocation3 + $0x330] sm:$0xff]
        %v686 = vld [vmem:[#allocation3 + $0x338] sm:$0xff]
        %v687 = vld [vmem:[#allocation3 + $0x340] sm:$0xff]
        %v688 = vld [vmem:[#allocation3 + $0x348] sm:$0xff]
        %v689 = vld [vmem:[#allocation3 + $0x350] sm:$0xff]
        %v690 = vld [vmem:[#allocation3 + $0x358] sm:$0xff]
        %v691 = vld [vmem:[#allocation3 + $0x360] sm:$0xff]
        %v692 = vld [vmem:[#allocation3 + $0x368] sm:$0xff]
        %v693 = vld [vmem:[#allocation3 + $0x370] sm:$0xff]
        %v694 = vld [vmem:[#allocation3 + $0x378] sm:$0xff]
        %v695 = vld [vmem:[#allocation3 + $0x380] sm:$0xff]
        %v696 = vld [vmem:[#allocation3 + $0x388] sm:$0xff]
        %v697 = vld [vmem:[#allocation3 + $0x390] sm:$0xff]
        %v698 = vld [vmem:[#allocation3 + $0x398] sm:$0xff]
        %v699 = vld [vmem:[#allocation3 + $0x3a0] sm:$0xff]
        %v700 = vld [vmem:[#allocation3 + $0x3a8] sm:$0xff]
        %v701 = vld [vmem:[#allocation3 + $0x3b0] sm:$0xff]
        %v702 = vld [vmem:[#allocation3 + $0x3b8] sm:$0xff]
        %v703 = vld [vmem:[#allocation3 + $0x3c0] sm:$0xff]
        %v704 = vld [vmem:[#allocation3 + $0x3c8] sm:$0xff]
        %v705 = vld [vmem:[#allocation3 + $0x3d0] sm:$0xff]
        %v706 = vld [vmem:[#allocation3 + $0x3d8] sm:$0xff]
        %v707 = vld [vmem:[#allocation3 + $0x3e0] sm:$0xff]
        %v708 = vld [vmem:[#allocation3 + $0x3e8] sm:$0xff]
        %v709 = vld [vmem:[#allocation3 + $0x3f0] sm:$0xff]
        %v710 = vld [vmem:[#allocation3 + $0x3f8] sm:$0xff]
        %v711 = vld [vmem:[%s282] sm:$0xff]
        %v712 = vld [vmem:[%s282 + $0x8] sm:$0xff]
        %v713 = vld [vmem:[%s282 + $0x10] sm:$0xff]
        %v714 = vld [vmem:[%s282 + $0x18] sm:$0xff]
        %v715 = vld [vmem:[%s282 + $0x20] sm:$0xff]
        %v716 = vld [vmem:[%s282 + $0x28] sm:$0xff]
        %v717 = vld [vmem:[%s282 + $0x30] sm:$0xff]
        %v718 = vld [vmem:[%s282 + $0x38] sm:$0xff]
        %v719 = vld [vmem:[%s282 + $0x40] sm:$0xff]
        %v720 = vld [vmem:[%s282 + $0x48] sm:$0xff]
        %v721 = vld [vmem:[%s282 + $0x50] sm:$0xff]
        %v722 = vld [vmem:[%s282 + $0x58] sm:$0xff]
        %v723 = vld [vmem:[%s282 + $0x60] sm:$0xff]
        %v724 = vld [vmem:[%s282 + $0x68] sm:$0xff]
        %v725 = vld [vmem:[%s282 + $0x70] sm:$0xff]
        %v726 = vld [vmem:[%s282 + $0x78] sm:$0xff]
        %v727 = vld [vmem:[%s282 + $0x80] sm:$0xff]
        %v728 = vld [vmem:[%s282 + $0x88] sm:$0xff]
        %v729 = vld [vmem:[%s282 + $0x90] sm:$0xff]
        %v730 = vld [vmem:[%s282 + $0x98] sm:$0xff]
        %v731 = vld [vmem:[%s282 + $0xa0] sm:$0xff]
        %v732 = vld [vmem:[%s282 + $0xa8] sm:$0xff]
        %v733 = vld [vmem:[%s282 + $0xb0] sm:$0xff]
        %v734 = vld [vmem:[%s282 + $0xb8] sm:$0xff]
        %v735 = vld [vmem:[%s282 + $0xc0] sm:$0xff]
        %v736 = vld [vmem:[%s282 + $0xc8] sm:$0xff]
        %v737 = vld [vmem:[%s282 + $0xd0] sm:$0xff]
        %v738 = vld [vmem:[%s282 + $0xd8] sm:$0xff]
        %v739 = vld [vmem:[%s282 + $0xe0] sm:$0xff]
        %v740 = vld [vmem:[%s282 + $0xe8] sm:$0xff]
        %v741 = vld [vmem:[%s282 + $0xf0] sm:$0xff]
        %v742 = vld [vmem:[%s282 + $0xf8] sm:$0xff]
        %v743 = vld [vmem:[%s282 + $0x100] sm:$0xff]
        %v744 = vld [vmem:[%s282 + $0x108] sm:$0xff]
        %v745 = vld [vmem:[%s282 + $0x110] sm:$0xff]
        %v746 = vld [vmem:[%s282 + $0x118] sm:$0xff]
        %v747 = vld [vmem:[%s282 + $0x120] sm:$0xff]
        %v748 = vld [vmem:[%s282 + $0x128] sm:$0xff]
        %v749 = vld [vmem:[%s282 + $0x130] sm:$0xff]
        %v750 = vld [vmem:[%s282 + $0x138] sm:$0xff]
        %v751 = vld [vmem:[%s282 + $0x140] sm:$0xff]
        %v752 = vld [vmem:[%s282 + $0x148] sm:$0xff]
        %v753 = vld [vmem:[%s282 + $0x150] sm:$0xff]
        %v754 = vld [vmem:[%s282 + $0x158] sm:$0xff]
        %v755 = vld [vmem:[%s282 + $0x160] sm:$0xff]
        %v756 = vld [vmem:[%s282 + $0x168] sm:$0xff]
        %v757 = vld [vmem:[%s282 + $0x170] sm:$0xff]
        %v758 = vld [vmem:[%s282 + $0x178] sm:$0xff]
        %v759 = vld [vmem:[%s282 + $0x180] sm:$0xff]
        %v760 = vld [vmem:[%s282 + $0x188] sm:$0xff]
        %v761 = vld [vmem:[%s282 + $0x190] sm:$0xff]
        %v762 = vld [vmem:[%s282 + $0x198] sm:$0xff]
        %v763 = vld [vmem:[%s282 + $0x1a0] sm:$0xff]
        %v764 = vld [vmem:[%s282 + $0x1a8] sm:$0xff]
        %v765 = vld [vmem:[%s282 + $0x1b0] sm:$0xff]
        %v766 = vld [vmem:[%s282 + $0x1b8] sm:$0xff]
        %v767 = vld [vmem:[%s282 + $0x1c0] sm:$0xff]
        %v768 = vld [vmem:[%s282 + $0x1c8] sm:$0xff]
        %v769 = vld [vmem:[%s282 + $0x1d0] sm:$0xff]
        %v770 = vld [vmem:[%s282 + $0x1d8] sm:$0xff]
        %v771 = vld [vmem:[%s282 + $0x1e0] sm:$0xff]
        %v772 = vld [vmem:[%s282 + $0x1e8] sm:$0xff]
        %v773 = vld [vmem:[%s282 + $0x1f0] sm:$0xff]
        %v774 = vld [vmem:[%s282 + $0x1f8] sm:$0xff]
        %v903 = vunpack.c.l.b16 %v583
        %v904 = vunpack.c.h.b16 %v583
        %v905 = vunpack.c.l.b16 %v584
        %v906 = vunpack.c.h.b16 %v584
        %v907 = vunpack.c.l.b16 %v585
        %v908 = vunpack.c.h.b16 %v585
        %v909 = vunpack.c.l.b16 %v586
        %v910 = vunpack.c.h.b16 %v586
        %v911 = vunpack.c.l.b16 %v587
        %v912 = vunpack.c.h.b16 %v587
        %v913 = vunpack.c.l.b16 %v588
        %v914 = vunpack.c.h.b16 %v588
        %v915 = vunpack.c.l.b16 %v589
        %v916 = vunpack.c.h.b16 %v589
        %v917 = vunpack.c.l.b16 %v590
        %v918 = vunpack.c.h.b16 %v590
        %v919 = vunpack.c.l.b16 %v591
        %v920 = vunpack.c.h.b16 %v591
        %v921 = vunpack.c.l.b16 %v592
        %v922 = vunpack.c.h.b16 %v592
        %v923 = vunpack.c.l.b16 %v593
        %v924 = vunpack.c.h.b16 %v593
        %v925 = vunpack.c.l.b16 %v594
        %v926 = vunpack.c.h.b16 %v594
        %v927 = vunpack.c.l.b16 %v595
        %v928 = vunpack.c.h.b16 %v595
        %v929 = vunpack.c.l.b16 %v596
        %v930 = vunpack.c.h.b16 %v596
        %v931 = vunpack.c.l.b16 %v597
        %v932 = vunpack.c.h.b16 %v597
        %v933 = vunpack.c.l.b16 %v598
        %v934 = vunpack.c.h.b16 %v598
        %v935 = vunpack.c.l.b16 %v599
        %v936 = vunpack.c.h.b16 %v599
        %v937 = vunpack.c.l.b16 %v600
        %v938 = vunpack.c.h.b16 %v600
        %v939 = vunpack.c.l.b16 %v601
        %v940 = vunpack.c.h.b16 %v601
        %v941 = vunpack.c.l.b16 %v602
        %v942 = vunpack.c.h.b16 %v602
        %v943 = vunpack.c.l.b16 %v603
        %v944 = vunpack.c.h.b16 %v603
        %v945 = vunpack.c.l.b16 %v604
        %v946 = vunpack.c.h.b16 %v604
        %v947 = vunpack.c.l.b16 %v605
        %v948 = vunpack.c.h.b16 %v605
        %v949 = vunpack.c.l.b16 %v606
        %v950 = vunpack.c.h.b16 %v606
        %v951 = vunpack.c.l.b16 %v607
        %v952 = vunpack.c.h.b16 %v607
        %v953 = vunpack.c.l.b16 %v608
        %v954 = vunpack.c.h.b16 %v608
        %v955 = vunpack.c.l.b16 %v609
        %v956 = vunpack.c.h.b16 %v609
        %v957 = vunpack.c.l.b16 %v610
        %v958 = vunpack.c.h.b16 %v610
        %v959 = vunpack.c.l.b16 %v611
        %v960 = vunpack.c.h.b16 %v611
        %v961 = vunpack.c.l.b16 %v612
        %v962 = vunpack.c.h.b16 %v612
        %v963 = vunpack.c.l.b16 %v613
        %v964 = vunpack.c.h.b16 %v613
        %v965 = vunpack.c.l.b16 %v614
        %v966 = vunpack.c.h.b16 %v614
        %v967 = vunpack.c.l.b16 %v615
        %v968 = vunpack.c.h.b16 %v615
        %v969 = vunpack.c.l.b16 %v616
        %v970 = vunpack.c.h.b16 %v616
        %v971 = vunpack.c.l.b16 %v617
        %v972 = vunpack.c.h.b16 %v617
        %v973 = vunpack.c.l.b16 %v618
        %v974 = vunpack.c.h.b16 %v618
        %v975 = vunpack.c.l.b16 %v619
        %v976 = vunpack.c.h.b16 %v619
        %v977 = vunpack.c.l.b16 %v620
        %v978 = vunpack.c.h.b16 %v620
        %v979 = vunpack.c.l.b16 %v621
        %v980 = vunpack.c.h.b16 %v621
        %v981 = vunpack.c.l.b16 %v622
        %v982 = vunpack.c.h.b16 %v622
        %v983 = vunpack.c.l.b16 %v623
        %v984 = vunpack.c.h.b16 %v623
        %v985 = vunpack.c.l.b16 %v624
        %v986 = vunpack.c.h.b16 %v624
        %v987 = vunpack.c.l.b16 %v625
        %v988 = vunpack.c.h.b16 %v625
        %v989 = vunpack.c.l.b16 %v626
        %v990 = vunpack.c.h.b16 %v626
        %v991 = vunpack.c.l.b16 %v627
        %v992 = vunpack.c.h.b16 %v627
        %v993 = vunpack.c.l.b16 %v628
        %v994 = vunpack.c.h.b16 %v628
        %v995 = vunpack.c.l.b16 %v629
        %v996 = vunpack.c.h.b16 %v629
        %v997 = vunpack.c.l.b16 %v630
        %v998 = vunpack.c.h.b16 %v630
        %v999 = vunpack.c.l.b16 %v631
        %v1000 = vunpack.c.h.b16 %v631
        %v1001 = vunpack.c.l.b16 %v632
        %v1002 = vunpack.c.h.b16 %v632
        %v1003 = vunpack.c.l.b16 %v633
        %v1004 = vunpack.c.h.b16 %v633
        %v1005 = vunpack.c.l.b16 %v634
        %v1006 = vunpack.c.h.b16 %v634
        %v1007 = vunpack.c.l.b16 %v635
        %v1008 = vunpack.c.h.b16 %v635
        %v1009 = vunpack.c.l.b16 %v636
        %v1010 = vunpack.c.h.b16 %v636
        %v1011 = vunpack.c.l.b16 %v637
        %v1012 = vunpack.c.h.b16 %v637
        %v1013 = vunpack.c.l.b16 %v638
        %v1014 = vunpack.c.h.b16 %v638
        %v1015 = vunpack.c.l.b16 %v639
        %v1016 = vunpack.c.h.b16 %v639
        %v1017 = vunpack.c.l.b16 %v640
        %v1018 = vunpack.c.h.b16 %v640
        %v1019 = vunpack.c.l.b16 %v641
        %v1020 = vunpack.c.h.b16 %v641
        %v1021 = vunpack.c.l.b16 %v642
        %v1022 = vunpack.c.h.b16 %v642
        %v1023 = vunpack.c.l.b16 %v643
        %v1024 = vunpack.c.h.b16 %v643
        %v1025 = vunpack.c.l.b16 %v644
        %v1026 = vunpack.c.h.b16 %v644
        %v1027 = vunpack.c.l.b16 %v645
        %v1028 = vunpack.c.h.b16 %v645
        %v1029 = vunpack.c.l.b16 %v646
        %v1030 = vunpack.c.h.b16 %v646
        %v1031 = vunpack.c.l.b16 %v647
        %v1032 = vunpack.c.h.b16 %v647
        %v1033 = vunpack.c.l.b16 %v648
        %v1034 = vunpack.c.h.b16 %v648
        %v1035 = vunpack.c.l.b16 %v649
        %v1036 = vunpack.c.h.b16 %v649
        %v1037 = vunpack.c.l.b16 %v650
        %v1038 = vunpack.c.h.b16 %v650
        %v1039 = vunpack.c.l.b16 %v651
        %v1040 = vunpack.c.h.b16 %v651
        %v1041 = vunpack.c.l.b16 %v652
        %v1042 = vunpack.c.h.b16 %v652
        %v1043 = vunpack.c.l.b16 %v653
        %v1044 = vunpack.c.h.b16 %v653
        %v1045 = vunpack.c.l.b16 %v654
        %v1046 = vunpack.c.h.b16 %v654
        %v1047 = vunpack.c.l.b16 %v655
        %v1048 = vunpack.c.h.b16 %v655
        %v1049 = vunpack.c.l.b16 %v656
        %v1050 = vunpack.c.h.b16 %v656
        %v1051 = vunpack.c.l.b16 %v657
        %v1052 = vunpack.c.h.b16 %v657
        %v1053 = vunpack.c.l.b16 %v658
        %v1054 = vunpack.c.h.b16 %v658
        %v1055 = vunpack.c.l.b16 %v659
        %v1056 = vunpack.c.h.b16 %v659
        %v1057 = vunpack.c.l.b16 %v660
        %v1058 = vunpack.c.h.b16 %v660
        %v1059 = vunpack.c.l.b16 %v661
        %v1060 = vunpack.c.h.b16 %v661
        %v1061 = vunpack.c.l.b16 %v662
        %v1062 = vunpack.c.h.b16 %v662
        %v1063 = vunpack.c.l.b16 %v663
        %v1064 = vunpack.c.h.b16 %v663
        %v1065 = vunpack.c.l.b16 %v664
        %v1066 = vunpack.c.h.b16 %v664
        %v1067 = vunpack.c.l.b16 %v665
        %v1068 = vunpack.c.h.b16 %v665
        %v1069 = vunpack.c.l.b16 %v666
        %v1070 = vunpack.c.h.b16 %v666
        %v1071 = vunpack.c.l.b16 %v667
        %v1072 = vunpack.c.h.b16 %v667
        %v1073 = vunpack.c.l.b16 %v668
        %v1074 = vunpack.c.h.b16 %v668
        %v1075 = vunpack.c.l.b16 %v669
        %v1076 = vunpack.c.h.b16 %v669
        %v1077 = vunpack.c.l.b16 %v670
        %v1078 = vunpack.c.h.b16 %v670
        %v1079 = vunpack.c.l.b16 %v671
        %v1080 = vunpack.c.h.b16 %v671
        %v1081 = vunpack.c.l.b16 %v672
        %v1082 = vunpack.c.h.b16 %v672
        %v1083 = vunpack.c.l.b16 %v673
        %v1084 = vunpack.c.h.b16 %v673
        %v1085 = vunpack.c.l.b16 %v674
        %v1086 = vunpack.c.h.b16 %v674
        %v1087 = vunpack.c.l.b16 %v675
        %v1088 = vunpack.c.h.b16 %v675
        %v1089 = vunpack.c.l.b16 %v676
        %v1090 = vunpack.c.h.b16 %v676
        %v1091 = vunpack.c.l.b16 %v677
        %v1092 = vunpack.c.h.b16 %v677
        %v1093 = vunpack.c.l.b16 %v678
        %v1094 = vunpack.c.h.b16 %v678
        %v1095 = vunpack.c.l.b16 %v679
        %v1096 = vunpack.c.h.b16 %v679
        %v1097 = vunpack.c.l.b16 %v680
        %v1098 = vunpack.c.h.b16 %v680
        %v1099 = vunpack.c.l.b16 %v681
        %v1100 = vunpack.c.h.b16 %v681
        %v1101 = vunpack.c.l.b16 %v682
        %v1102 = vunpack.c.h.b16 %v682
        %v1103 = vunpack.c.l.b16 %v683
        %v1104 = vunpack.c.h.b16 %v683
        %v1105 = vunpack.c.l.b16 %v684
        %v1106 = vunpack.c.h.b16 %v684
        %v1107 = vunpack.c.l.b16 %v685
        %v1108 = vunpack.c.h.b16 %v685
        %v1109 = vunpack.c.l.b16 %v686
        %v1110 = vunpack.c.h.b16 %v686
        %v1111 = vunpack.c.l.b16 %v687
        %v1112 = vunpack.c.h.b16 %v687
        %v1113 = vunpack.c.l.b16 %v688
        %v1114 = vunpack.c.h.b16 %v688
        %v1115 = vunpack.c.l.b16 %v689
        %v1116 = vunpack.c.h.b16 %v689
        %v1117 = vunpack.c.l.b16 %v690
        %v1118 = vunpack.c.h.b16 %v690
        %v1119 = vunpack.c.l.b16 %v691
        %v1120 = vunpack.c.h.b16 %v691
        %v1121 = vunpack.c.l.b16 %v692
        %v1122 = vunpack.c.h.b16 %v692
        %v1123 = vunpack.c.l.b16 %v693
        %v1124 = vunpack.c.h.b16 %v693
        %v1125 = vunpack.c.l.b16 %v694
        %v1126 = vunpack.c.h.b16 %v694
        %v1127 = vunpack.c.l.b16 %v695
        %v1128 = vunpack.c.h.b16 %v695
        %v1129 = vunpack.c.l.b16 %v696
        %v1130 = vunpack.c.h.b16 %v696
        %v1131 = vunpack.c.l.b16 %v697
        %v1132 = vunpack.c.h.b16 %v697
        %v1133 = vunpack.c.l.b16 %v698
        %v1134 = vunpack.c.h.b16 %v698
        %v1135 = vunpack.c.l.b16 %v699
        %v1136 = vunpack.c.h.b16 %v699
        %v1137 = vunpack.c.l.b16 %v700
        %v1138 = vunpack.c.h.b16 %v700
        %v1139 = vunpack.c.l.b16 %v701
        %v1140 = vunpack.c.h.b16 %v701
        %v1141 = vunpack.c.l.b16 %v702
        %v1142 = vunpack.c.h.b16 %v702
        %v1143 = vunpack.c.l.b16 %v703
        %v1144 = vunpack.c.h.b16 %v703
        %v1145 = vunpack.c.l.b16 %v704
        %v1146 = vunpack.c.h.b16 %v704
        %v1147 = vunpack.c.l.b16 %v705
        %v1148 = vunpack.c.h.b16 %v705
        %v1149 = vunpack.c.l.b16 %v706
        %v1150 = vunpack.c.h.b16 %v706
        %v1151 = vunpack.c.l.b16 %v707
        %v1152 = vunpack.c.h.b16 %v707
        %v1153 = vunpack.c.l.b16 %v708
        %v1154 = vunpack.c.h.b16 %v708
        %v1155 = vunpack.c.l.b16 %v709
        %v1156 = vunpack.c.h.b16 %v709
        %v1157 = vunpack.c.l.b16 %v710
        %v1158 = vunpack.c.h.b16 %v710
        %v1159 = vpack.c.b16 %v907, %v903
        %v1160 = vpack.c.b16 %v908, %v904
        %v1161 = vpack.c.b16 %v909, %v905
        %v1162 = vpack.c.b16 %v910, %v906
        %v1163 = vpack.c.b16 %v915, %v911
        %v1164 = vpack.c.b16 %v916, %v912
        %v1165 = vpack.c.b16 %v917, %v913
        %v1166 = vpack.c.b16 %v918, %v914
        %v1167 = vpack.c.b16 %v923, %v919
        %v1168 = vpack.c.b16 %v924, %v920
        %v1169 = vpack.c.b16 %v925, %v921
        %v1170 = vpack.c.b16 %v926, %v922
        %v1171 = vpack.c.b16 %v931, %v927
        %v1172 = vpack.c.b16 %v932, %v928
        %v1173 = vpack.c.b16 %v933, %v929
        %v1174 = vpack.c.b16 %v934, %v930
        %v1175 = vpack.c.b16 %v939, %v935
        %v1176 = vpack.c.b16 %v940, %v936
        %v1177 = vpack.c.b16 %v941, %v937
        %v1178 = vpack.c.b16 %v942, %v938
        %v1179 = vpack.c.b16 %v947, %v943
        %v1180 = vpack.c.b16 %v948, %v944
        %v1181 = vpack.c.b16 %v949, %v945
        %v1182 = vpack.c.b16 %v950, %v946
        %v1183 = vpack.c.b16 %v955, %v951
        %v1184 = vpack.c.b16 %v956, %v952
        %v1185 = vpack.c.b16 %v957, %v953
        %v1186 = vpack.c.b16 %v958, %v954
        %v1187 = vpack.c.b16 %v963, %v959
        %v1188 = vpack.c.b16 %v964, %v960
        %v1189 = vpack.c.b16 %v965, %v961
        %v1190 = vpack.c.b16 %v966, %v962
        %v1191 = vpack.c.b16 %v971, %v967
        %v1192 = vpack.c.b16 %v972, %v968
        %v1193 = vpack.c.b16 %v973, %v969
        %v1194 = vpack.c.b16 %v974, %v970
        %v1195 = vpack.c.b16 %v979, %v975
        %v1196 = vpack.c.b16 %v980, %v976
        %v1197 = vpack.c.b16 %v981, %v977
        %v1198 = vpack.c.b16 %v982, %v978
        %v1199 = vpack.c.b16 %v987, %v983
        %v1200 = vpack.c.b16 %v988, %v984
        %v1201 = vpack.c.b16 %v989, %v985
        %v1202 = vpack.c.b16 %v990, %v986
        %v1203 = vpack.c.b16 %v995, %v991
        %v1204 = vpack.c.b16 %v996, %v992
        %v1205 = vpack.c.b16 %v997, %v993
        %v1206 = vpack.c.b16 %v998, %v994
        %v1207 = vpack.c.b16 %v1003, %v999
        %v1208 = vpack.c.b16 %v1004, %v1000
        %v1209 = vpack.c.b16 %v1005, %v1001
        %v1210 = vpack.c.b16 %v1006, %v1002
        %v1211 = vpack.c.b16 %v1011, %v1007
        %v1212 = vpack.c.b16 %v1012, %v1008
        %v1213 = vpack.c.b16 %v1013, %v1009
        %v1214 = vpack.c.b16 %v1014, %v1010
        %v1215 = vpack.c.b16 %v1019, %v1015
        %v1216 = vpack.c.b16 %v1020, %v1016
        %v1217 = vpack.c.b16 %v1021, %v1017
        %v1218 = vpack.c.b16 %v1022, %v1018
        %v1219 = vpack.c.b16 %v1027, %v1023
        %v1220 = vpack.c.b16 %v1028, %v1024
        %v1221 = vpack.c.b16 %v1029, %v1025
        %v1222 = vpack.c.b16 %v1030, %v1026
        %v1223 = vpack.c.b16 %v1035, %v1031
        %v1224 = vpack.c.b16 %v1036, %v1032
        %v1225 = vpack.c.b16 %v1037, %v1033
        %v1226 = vpack.c.b16 %v1038, %v1034
        %v1227 = vpack.c.b16 %v1043, %v1039
        %v1228 = vpack.c.b16 %v1044, %v1040
        %v1229 = vpack.c.b16 %v1045, %v1041
        %v1230 = vpack.c.b16 %v1046, %v1042
        %v1231 = vpack.c.b16 %v1051, %v1047
        %v1232 = vpack.c.b16 %v1052, %v1048
        %v1233 = vpack.c.b16 %v1053, %v1049
        %v1234 = vpack.c.b16 %v1054, %v1050
        %v1235 = vpack.c.b16 %v1059, %v1055
        %v1236 = vpack.c.b16 %v1060, %v1056
        %v1237 = vpack.c.b16 %v1061, %v1057
        %v1238 = vpack.c.b16 %v1062, %v1058
        %v1239 = vpack.c.b16 %v1067, %v1063
        %v1240 = vpack.c.b16 %v1068, %v1064
        %v1241 = vpack.c.b16 %v1069, %v1065
        %v1242 = vpack.c.b16 %v1070, %v1066
        %v1243 = vpack.c.b16 %v1075, %v1071
        %v1244 = vpack.c.b16 %v1076, %v1072
        %v1245 = vpack.c.b16 %v1077, %v1073
        %v1246 = vpack.c.b16 %v1078, %v1074
        %v1247 = vpack.c.b16 %v1083, %v1079
        %v1248 = vpack.c.b16 %v1084, %v1080
        %v1249 = vpack.c.b16 %v1085, %v1081
        %v1250 = vpack.c.b16 %v1086, %v1082
        %v1251 = vpack.c.b16 %v1091, %v1087
        %v1252 = vpack.c.b16 %v1092, %v1088
        %v1253 = vpack.c.b16 %v1093, %v1089
        %v1254 = vpack.c.b16 %v1094, %v1090
        %v1255 = vpack.c.b16 %v1099, %v1095
        %v1256 = vpack.c.b16 %v1100, %v1096
        %v1257 = vpack.c.b16 %v1101, %v1097
        %v1258 = vpack.c.b16 %v1102, %v1098
        %v1259 = vpack.c.b16 %v1107, %v1103
        %v1260 = vpack.c.b16 %v1108, %v1104
        %v1261 = vpack.c.b16 %v1109, %v1105
        %v1262 = vpack.c.b16 %v1110, %v1106
        %v1263 = vpack.c.b16 %v1115, %v1111
        %v1264 = vpack.c.b16 %v1116, %v1112
        %v1265 = vpack.c.b16 %v1117, %v1113
        %v1266 = vpack.c.b16 %v1118, %v1114
        %v1267 = vpack.c.b16 %v1123, %v1119
        %v1268 = vpack.c.b16 %v1124, %v1120
        %v1269 = vpack.c.b16 %v1125, %v1121
        %v1270 = vpack.c.b16 %v1126, %v1122
        %v1271 = vpack.c.b16 %v1131, %v1127
        %v1272 = vpack.c.b16 %v1132, %v1128
        %v1273 = vpack.c.b16 %v1133, %v1129
        %v1274 = vpack.c.b16 %v1134, %v1130
        %v1275 = vpack.c.b16 %v1139, %v1135
        %v1276 = vpack.c.b16 %v1140, %v1136
        %v1277 = vpack.c.b16 %v1141, %v1137
        %v1278 = vpack.c.b16 %v1142, %v1138
        %v1279 = vpack.c.b16 %v1147, %v1143
        %v1280 = vpack.c.b16 %v1148, %v1144
        %v1281 = vpack.c.b16 %v1149, %v1145
        %v1282 = vpack.c.b16 %v1150, %v1146
        %v1283 = vpack.c.b16 %v1155, %v1151
        %v1284 = vpack.c.b16 %v1156, %v1152
        %v1285 = vpack.c.b16 %v1157, %v1153
        %v1286 = vpack.c.b16 %v1158, %v1154
        %v1479 = vunpack.c.l.b16 %v711
        %v1480 = vunpack.c.h.b16 %v711
        %v1481 = vunpack.c.l.b16 %v712
        %v1482 = vunpack.c.h.b16 %v712
        %v1483 = vunpack.c.l.b16 %v713
        %v1484 = vunpack.c.h.b16 %v713
        %v1485 = vunpack.c.l.b16 %v714
        %v1486 = vunpack.c.h.b16 %v714
        %v1487 = vunpack.c.l.b16 %v715
        %v1488 = vunpack.c.h.b16 %v715
        %v1489 = vunpack.c.l.b16 %v716
        %v1490 = vunpack.c.h.b16 %v716
        %v1491 = vunpack.c.l.b16 %v717
        %v1492 = vunpack.c.h.b16 %v717
        %v1493 = vunpack.c.l.b16 %v718
        %v1494 = vunpack.c.h.b16 %v718
        %v1495 = vunpack.c.l.b16 %v719
        %v1496 = vunpack.c.h.b16 %v719
        %v1497 = vunpack.c.l.b16 %v720
        %v1498 = vunpack.c.h.b16 %v720
        %v1499 = vunpack.c.l.b16 %v721
        %v1500 = vunpack.c.h.b16 %v721
        %v1501 = vunpack.c.l.b16 %v722
        %v1502 = vunpack.c.h.b16 %v722
        %v1503 = vunpack.c.l.b16 %v723
        %v1504 = vunpack.c.h.b16 %v723
        %v1505 = vunpack.c.l.b16 %v724
        %v1506 = vunpack.c.h.b16 %v724
        %v1507 = vunpack.c.l.b16 %v725
        %v1508 = vunpack.c.h.b16 %v725
        %v1509 = vunpack.c.l.b16 %v726
        %v1510 = vunpack.c.h.b16 %v726
        %v1511 = vunpack.c.l.b16 %v727
        %v1512 = vunpack.c.h.b16 %v727
        %v1513 = vunpack.c.l.b16 %v728
        %v1514 = vunpack.c.h.b16 %v728
        %v1515 = vunpack.c.l.b16 %v729
        %v1516 = vunpack.c.h.b16 %v729
        %v1517 = vunpack.c.l.b16 %v730
        %v1518 = vunpack.c.h.b16 %v730
        %v1519 = vunpack.c.l.b16 %v731
        %v1520 = vunpack.c.h.b16 %v731
        %v1521 = vunpack.c.l.b16 %v732
        %v1522 = vunpack.c.h.b16 %v732
        %v1523 = vunpack.c.l.b16 %v733
        %v1524 = vunpack.c.h.b16 %v733
        %v1525 = vunpack.c.l.b16 %v734
        %v1526 = vunpack.c.h.b16 %v734
        %v1527 = vunpack.c.l.b16 %v735
        %v1528 = vunpack.c.h.b16 %v735
        %v1529 = vunpack.c.l.b16 %v736
        %v1530 = vunpack.c.h.b16 %v736
        %v1531 = vunpack.c.l.b16 %v737
        %v1532 = vunpack.c.h.b16 %v737
        %v1533 = vunpack.c.l.b16 %v738
        %v1534 = vunpack.c.h.b16 %v738
        %v1535 = vunpack.c.l.b16 %v739
        %v1536 = vunpack.c.h.b16 %v739
        %v1537 = vunpack.c.l.b16 %v740
        %v1538 = vunpack.c.h.b16 %v740
        %v1539 = vunpack.c.l.b16 %v741
        %v1540 = vunpack.c.h.b16 %v741
        %v1541 = vunpack.c.l.b16 %v742
        %v1542 = vunpack.c.h.b16 %v742
        %v1543 = vunpack.c.l.b16 %v743
        %v1544 = vunpack.c.h.b16 %v743
        %v1545 = vunpack.c.l.b16 %v744
        %v1546 = vunpack.c.h.b16 %v744
        %v1547 = vunpack.c.l.b16 %v745
        %v1548 = vunpack.c.h.b16 %v745
        %v1549 = vunpack.c.l.b16 %v746
        %v1550 = vunpack.c.h.b16 %v746
        %v1551 = vunpack.c.l.b16 %v747
        %v1552 = vunpack.c.h.b16 %v747
        %v1553 = vunpack.c.l.b16 %v748
        %v1554 = vunpack.c.h.b16 %v748
        %v1555 = vunpack.c.l.b16 %v749
        %v1556 = vunpack.c.h.b16 %v749
        %v1557 = vunpack.c.l.b16 %v750
        %v1558 = vunpack.c.h.b16 %v750
        %v1559 = vunpack.c.l.b16 %v751
        %v1560 = vunpack.c.h.b16 %v751
        %v1561 = vunpack.c.l.b16 %v752
        %v1562 = vunpack.c.h.b16 %v752
        %v1563 = vunpack.c.l.b16 %v753
        %v1564 = vunpack.c.h.b16 %v753
        %v1565 = vunpack.c.l.b16 %v754
        %v1566 = vunpack.c.h.b16 %v754
        %v1567 = vunpack.c.l.b16 %v755
        %v1568 = vunpack.c.h.b16 %v755
        %v1569 = vunpack.c.l.b16 %v756
        %v1570 = vunpack.c.h.b16 %v756
        %v1571 = vunpack.c.l.b16 %v757
        %v1572 = vunpack.c.h.b16 %v757
        %v1573 = vunpack.c.l.b16 %v758
        %v1574 = vunpack.c.h.b16 %v758
        %v1575 = vunpack.c.l.b16 %v759
        %v1576 = vunpack.c.h.b16 %v759
        %v1577 = vunpack.c.l.b16 %v760
        %v1578 = vunpack.c.h.b16 %v760
        %v1579 = vunpack.c.l.b16 %v761
        %v1580 = vunpack.c.h.b16 %v761
        %v1581 = vunpack.c.l.b16 %v762
        %v1582 = vunpack.c.h.b16 %v762
        %v1583 = vunpack.c.l.b16 %v763
        %v1584 = vunpack.c.h.b16 %v763
        %v1585 = vunpack.c.l.b16 %v764
        %v1586 = vunpack.c.h.b16 %v764
        %v1587 = vunpack.c.l.b16 %v765
        %v1588 = vunpack.c.h.b16 %v765
        %v1589 = vunpack.c.l.b16 %v766
        %v1590 = vunpack.c.h.b16 %v766
        %v1591 = vunpack.c.l.b16 %v767
        %v1592 = vunpack.c.h.b16 %v767
        %v1593 = vunpack.c.l.b16 %v768
        %v1594 = vunpack.c.h.b16 %v768
        %v1595 = vunpack.c.l.b16 %v769
        %v1596 = vunpack.c.h.b16 %v769
        %v1597 = vunpack.c.l.b16 %v770
        %v1598 = vunpack.c.h.b16 %v770
        %v1599 = vunpack.c.l.b16 %v771
        %v1600 = vunpack.c.h.b16 %v771
        %v1601 = vunpack.c.l.b16 %v772
        %v1602 = vunpack.c.h.b16 %v772
        %v1603 = vunpack.c.l.b16 %v773
        %v1604 = vunpack.c.h.b16 %v773
        %v1605 = vunpack.c.l.b16 %v774
        %v1606 = vunpack.c.h.b16 %v774
        %v1607 = vpack.c.b16 %v1483, %v1479
        %v1608 = vpack.c.b16 %v1484, %v1480
        %v1609 = vpack.c.b16 %v1485, %v1481
        %v1610 = vpack.c.b16 %v1486, %v1482
        %v1611 = vpack.c.b16 %v1491, %v1487
        %v1612 = vpack.c.b16 %v1492, %v1488
        %v1613 = vpack.c.b16 %v1493, %v1489
        %v1614 = vpack.c.b16 %v1494, %v1490
        %v1615 = vpack.c.b16 %v1499, %v1495
        %v1616 = vpack.c.b16 %v1500, %v1496
        %v1617 = vpack.c.b16 %v1501, %v1497
        %v1618 = vpack.c.b16 %v1502, %v1498
        %v1619 = vpack.c.b16 %v1507, %v1503
        %v1620 = vpack.c.b16 %v1508, %v1504
        %v1621 = vpack.c.b16 %v1509, %v1505
        %v1622 = vpack.c.b16 %v1510, %v1506
        %v1623 = vpack.c.b16 %v1515, %v1511
        %v1624 = vpack.c.b16 %v1516, %v1512
        %v1625 = vpack.c.b16 %v1517, %v1513
        %v1626 = vpack.c.b16 %v1518, %v1514
        %v1627 = vpack.c.b16 %v1523, %v1519
        %v1628 = vpack.c.b16 %v1524, %v1520
        %v1629 = vpack.c.b16 %v1525, %v1521
        %v1630 = vpack.c.b16 %v1526, %v1522
        %v1631 = vpack.c.b16 %v1531, %v1527
        %v1632 = vpack.c.b16 %v1532, %v1528
        %v1633 = vpack.c.b16 %v1533, %v1529
        %v1634 = vpack.c.b16 %v1534, %v1530
        %v1635 = vpack.c.b16 %v1539, %v1535
        %v1636 = vpack.c.b16 %v1540, %v1536
        %v1637 = vpack.c.b16 %v1541, %v1537
        %v1638 = vpack.c.b16 %v1542, %v1538
        %v1639 = vpack.c.b16 %v1547, %v1543
        %v1640 = vpack.c.b16 %v1548, %v1544
        %v1641 = vpack.c.b16 %v1549, %v1545
        %v1642 = vpack.c.b16 %v1550, %v1546
        %v1643 = vpack.c.b16 %v1555, %v1551
        %v1644 = vpack.c.b16 %v1556, %v1552
        %v1645 = vpack.c.b16 %v1557, %v1553
        %v1646 = vpack.c.b16 %v1558, %v1554
        %v1647 = vpack.c.b16 %v1563, %v1559
        %v1648 = vpack.c.b16 %v1564, %v1560
        %v1649 = vpack.c.b16 %v1565, %v1561
        %v1650 = vpack.c.b16 %v1566, %v1562
        %v1651 = vpack.c.b16 %v1571, %v1567
        %v1652 = vpack.c.b16 %v1572, %v1568
        %v1653 = vpack.c.b16 %v1573, %v1569
        %v1654 = vpack.c.b16 %v1574, %v1570
        %v1655 = vpack.c.b16 %v1579, %v1575
        %v1656 = vpack.c.b16 %v1580, %v1576
        %v1657 = vpack.c.b16 %v1581, %v1577
        %v1658 = vpack.c.b16 %v1582, %v1578
        %v1659 = vpack.c.b16 %v1587, %v1583
        %v1660 = vpack.c.b16 %v1588, %v1584
        %v1661 = vpack.c.b16 %v1589, %v1585
        %v1662 = vpack.c.b16 %v1590, %v1586
        %v1663 = vpack.c.b16 %v1595, %v1591
        %v1664 = vpack.c.b16 %v1596, %v1592
        %v1665 = vpack.c.b16 %v1597, %v1593
        %v1666 = vpack.c.b16 %v1598, %v1594
        %v1667 = vpack.c.b16 %v1603, %v1599
        %v1668 = vpack.c.b16 %v1604, %v1600
        %v1669 = vpack.c.b16 %v1605, %v1601
        %v1670 = vpack.c.b16 %v1606, %v1602
        %1735 = vmatprep.subr.bf16.mxu0 %v1608
        %1736 = vmatpush1.bf16.xpose.msra.mxu0 %v1607
        %1737 = vmatprep.subr.bf16.mxu0 %v1612
        %1738 = vmatpush1.bf16.xpose.msra.mxu0 %v1611
        %1739 = vmatprep.subr.bf16.mxu0 %v1616
        %1740 = vmatpush1.bf16.xpose.msra.mxu0 %v1615
        %1741 = vmatprep.subr.bf16.mxu0 %v1620
        %1742 = vmatpush1.bf16.xpose.msra.mxu0 %v1619
        %1743 = vmatprep.subr.bf16.mxu0 %v1624
        %1744 = vmatpush1.bf16.xpose.msra.mxu0 %v1623
        %1745 = vmatprep.subr.bf16.mxu0 %v1628
        %1746 = vmatpush1.bf16.xpose.msra.mxu0 %v1627
        %1747 = vmatprep.subr.bf16.mxu0 %v1632
        %1748 = vmatpush1.bf16.xpose.msra.mxu0 %v1631
        %1749 = vmatprep.subr.bf16.mxu0 %v1636
        %1750 = vmatpush1.bf16.xpose.msra.mxu0 %v1635
        %1751 = vmatprep.subr.bf16.mxu0 %v1640
        %1752 = vmatpush1.bf16.xpose.msra.mxu0 %v1639
        %1753 = vmatprep.subr.bf16.mxu0 %v1644
        %1754 = vmatpush1.bf16.xpose.msra.mxu0 %v1643
        %1755 = vmatprep.subr.bf16.mxu0 %v1648
        %1756 = vmatpush1.bf16.xpose.msra.mxu0 %v1647
        %1757 = vmatprep.subr.bf16.mxu0 %v1652
        %1758 = vmatpush1.bf16.xpose.msra.mxu0 %v1651
        %1759 = vmatprep.subr.bf16.mxu0 %v1656
        %1760 = vmatpush1.bf16.xpose.msra.mxu0 %v1655
        %1761 = vmatprep.subr.bf16.mxu0 %v1660
        %1762 = vmatpush1.bf16.xpose.msra.mxu0 %v1659
        %1763 = vmatprep.subr.bf16.mxu0 %v1664
        %1764 = vmatpush1.bf16.xpose.msra.mxu0 %v1663
        %1765 = vmatprep.subr.bf16.mxu0 %v1668
        %1766 = vmatpush1.bf16.xpose.msra.mxu0 %v1667
        %1767 = vmatprep.mubr.bf16.mxu0 %v1160
        %1768 = vmatmul.mubr.bf16.gmra.mrb[0].mxu0 %v1159
        %v1769 = vpop.f32.mrb[0].mxu0
        %v1770 = vadd.f32 0.0, %v1769
        %v1771 = vpop.f32.mrb[0].mxu0
        %v1772 = vadd.f32 0.0, %v1771
        %v1773 = vpop.f32.mrb[0].mxu0
        %v1774 = vadd.f32 0.0, %v1773
        %v1775 = vpop.f32.mrb[0].mxu0
        %v1776 = vadd.f32 0.0, %v1775
        %1777 = vmatprep.mubr.bf16.mxu0 %v1164
        %1778 = vmatmul.mubr.bf16.gmra.mrb[0].mxu0 %v1163
        %v1779 = vpop.f32.mrb[0].mxu0
        %v1780 = vadd.f32 0.0, %v1779
        %v1781 = vpop.f32.mrb[0].mxu0
        %v1782 = vadd.f32 0.0, %v1781
        %v1783 = vpop.f32.mrb[0].mxu0
        %v1784 = vadd.f32 0.0, %v1783
        %v1785 = vpop.f32.mrb[0].mxu0
        %v1786 = vadd.f32 0.0, %v1785
        %1787 = vmatprep.mubr.bf16.mxu0 %v1168
        %1788 = vmatmul.mubr.bf16.gmra.mrb[0].mxu0 %v1167
        %v1789 = vpop.f32.mrb[0].mxu0
        %v1790 = vadd.f32 0.0, %v1789
        %v1791 = vpop.f32.mrb[0].mxu0
        %v1792 = vadd.f32 0.0, %v1791
        %v1793 = vpop.f32.mrb[0].mxu0
        %v1794 = vadd.f32 0.0, %v1793
        %v1795 = vpop.f32.mrb[0].mxu0
        %v1796 = vadd.f32 0.0, %v1795
        %1797 = vmatprep.mubr.bf16.mxu0 %v1172
        %1798 = vmatmul.mubr.bf16.gmra.mrb[0].mxu0 %v1171
        %v1799 = vpop.f32.mrb[0].mxu0
        %v1800 = vadd.f32 0.0, %v1799
        %v1801 = vpop.f32.mrb[0].mxu0
        %v1802 = vadd.f32 0.0, %v1801
        %v1803 = vpop.f32.mrb[0].mxu0
        %v1804 = vadd.f32 0.0, %v1803
        %v1805 = vpop.f32.mrb[0].mxu0
        %v1806 = vadd.f32 0.0, %v1805
        %1807 = vmatprep.mubr.bf16.mxu0 %v1176
        %1808 = vmatmul.mubr.bf16.gmra.mrb[0].mxu0 %v1175
        %v1809 = vpop.f32.mrb[0].mxu0
        %v1810 = vadd.f32 0.0, %v1809
        %v1811 = vpop.f32.mrb[0].mxu0
        %v1812 = vadd.f32 0.0, %v1811
        %v1813 = vpop.f32.mrb[0].mxu0
        %v1814 = vadd.f32 0.0, %v1813
        %v1815 = vpop.f32.mrb[0].mxu0
        %v1816 = vadd.f32 0.0, %v1815
        %1817 = vmatprep.mubr.bf16.mxu0 %v1180
        %1818 = vmatmul.mubr.bf16.gmra.mrb[0].mxu0 %v1179
        %v1819 = vpop.f32.mrb[0].mxu0
        %v1820 = vadd.f32 0.0, %v1819
        %v1821 = vpop.f32.mrb[0].mxu0
        %v1822 = vadd.f32 0.0, %v1821
        %v1823 = vpop.f32.mrb[0].mxu0
        %v1824 = vadd.f32 0.0, %v1823
        %v1825 = vpop.f32.mrb[0].mxu0
        %v1826 = vadd.f32 0.0, %v1825
        %1827 = vmatprep.mubr.bf16.mxu0 %v1184
        %1828 = vmatmul.mubr.bf16.gmra.mrb[0].mxu0 %v1183
        %v1829 = vpop.f32.mrb[0].mxu0
        %v1830 = vadd.f32 0.0, %v1829
        %v1831 = vpop.f32.mrb[0].mxu0
        %v1832 = vadd.f32 0.0, %v1831
        %v1833 = vpop.f32.mrb[0].mxu0
        %v1834 = vadd.f32 0.0, %v1833
        %v1835 = vpop.f32.mrb[0].mxu0
        %v1836 = vadd.f32 0.0, %v1835
        %1837 = vmatprep.mubr.bf16.mxu0 %v1188
        %1838 = vmatmul.mubr.bf16.gmra.mrb[0].mxu0 %v1187
        %v1839 = vpop.f32.mrb[0].mxu0
        %v1840 = vadd.f32 0.0, %v1839
        %v1841 = vpop.f32.mrb[0].mxu0
        %v1842 = vadd.f32 0.0, %v1841
        %v1843 = vpop.f32.mrb[0].mxu0
        %v1844 = vadd.f32 0.0, %v1843
        %v1845 = vpop.f32.mrb[0].mxu0
        %v1846 = vadd.f32 0.0, %v1845
        %1847 = vmatprep.mubr.bf16.mxu0 %v1192
        %1848 = vmatmul.mubr.bf16.gmra.mrb[0].mxu0 %v1191
        %v1849 = vpop.f32.mrb[0].mxu0
        %v1850 = vadd.f32 0.0, %v1849
        %v1851 = vpop.f32.mrb[0].mxu0
        %v1852 = vadd.f32 0.0, %v1851
        %v1853 = vpop.f32.mrb[0].mxu0
        %v1854 = vadd.f32 0.0, %v1853
        %v1855 = vpop.f32.mrb[0].mxu0
        %v1856 = vadd.f32 0.0, %v1855
        %1857 = vmatprep.mubr.bf16.mxu0 %v1196
        %1858 = vmatmul.mubr.bf16.gmra.mrb[0].mxu0 %v1195
        %v1859 = vpop.f32.mrb[0].mxu0
        %v1860 = vadd.f32 0.0, %v1859
        %v1861 = vpop.f32.mrb[0].mxu0
        %v1862 = vadd.f32 0.0, %v1861
        %v1863 = vpop.f32.mrb[0].mxu0
        %v1864 = vadd.f32 0.0, %v1863
        %v1865 = vpop.f32.mrb[0].mxu0
        %v1866 = vadd.f32 0.0, %v1865
        %1867 = vmatprep.mubr.bf16.mxu0 %v1200
        %1868 = vmatmul.mubr.bf16.gmra.mrb[0].mxu0 %v1199
        %v1869 = vpop.f32.mrb[0].mxu0
        %v1870 = vadd.f32 0.0, %v1869
        %v1871 = vpop.f32.mrb[0].mxu0
        %v1872 = vadd.f32 0.0, %v1871
        %v1873 = vpop.f32.mrb[0].mxu0
        %v1874 = vadd.f32 0.0, %v1873
        %v1875 = vpop.f32.mrb[0].mxu0
        %v1876 = vadd.f32 0.0, %v1875
        %1877 = vmatprep.mubr.bf16.mxu0 %v1204
        %1878 = vmatmul.mubr.bf16.gmra.mrb[0].mxu0 %v1203
        %v1879 = vpop.f32.mrb[0].mxu0
        %v1880 = vadd.f32 0.0, %v1879
        %v1881 = vpop.f32.mrb[0].mxu0
        %v1882 = vadd.f32 0.0, %v1881
        %v1883 = vpop.f32.mrb[0].mxu0
        %v1884 = vadd.f32 0.0, %v1883
        %v1885 = vpop.f32.mrb[0].mxu0
        %v1886 = vadd.f32 0.0, %v1885
        %1887 = vmatprep.mubr.bf16.mxu0 %v1208
        %1888 = vmatmul.mubr.bf16.gmra.mrb[0].mxu0 %v1207
        %v1889 = vpop.f32.mrb[0].mxu0
        %v1890 = vadd.f32 0.0, %v1889
        %v1891 = vpop.f32.mrb[0].mxu0
        %v1892 = vadd.f32 0.0, %v1891
        %v1893 = vpop.f32.mrb[0].mxu0
        %v1894 = vadd.f32 0.0, %v1893
        %v1895 = vpop.f32.mrb[0].mxu0
        %v1896 = vadd.f32 0.0, %v1895
        %1897 = vmatprep.mubr.bf16.mxu0 %v1212
        %1898 = vmatmul.mubr.bf16.gmra.mrb[0].mxu0 %v1211
        %v1899 = vpop.f32.mrb[0].mxu0
        %v1900 = vadd.f32 0.0, %v1899
        %v1901 = vpop.f32.mrb[0].mxu0
        %v1902 = vadd.f32 0.0, %v1901
        %v1903 = vpop.f32.mrb[0].mxu0
        %v1904 = vadd.f32 0.0, %v1903
        %v1905 = vpop.f32.mrb[0].mxu0
        %v1906 = vadd.f32 0.0, %v1905
        %1907 = vmatprep.mubr.bf16.mxu0 %v1216
        %1908 = vmatmul.mubr.bf16.gmra.mrb[0].mxu0 %v1215
        %v1909 = vpop.f32.mrb[0].mxu0
        %v1910 = vadd.f32 0.0, %v1909
        %v1911 = vpop.f32.mrb[0].mxu0
        %v1912 = vadd.f32 0.0, %v1911
        %v1913 = vpop.f32.mrb[0].mxu0
        %v1914 = vadd.f32 0.0, %v1913
        %v1915 = vpop.f32.mrb[0].mxu0
        %v1916 = vadd.f32 0.0, %v1915
        %1917 = vmatprep.mubr.bf16.mxu0 %v1220
        %1918 = vmatmul.mubr.bf16.gmra.mrb[0].mxu0 %v1219
        %v1919 = vpop.f32.mrb[0].mxu0
        %v1920 = vadd.f32 0.0, %v1919
        %v1921 = vpop.f32.mrb[0].mxu0
        %v1922 = vadd.f32 0.0, %v1921
        %v1923 = vpop.f32.mrb[0].mxu0
        %v1924 = vadd.f32 0.0, %v1923
        %v1925 = vpop.f32.mrb[0].mxu0
        %v1926 = vadd.f32 0.0, %v1925
        %1927 = vmatprep.mubr.bf16.mxu0 %v1224
        %1928 = vmatmul.mubr.bf16.gmra.mrb[0].mxu0 %v1223
        %v1929 = vpop.f32.mrb[0].mxu0
        %v1930 = vadd.f32 0.0, %v1929
        %v1931 = vpop.f32.mrb[0].mxu0
        %v1932 = vadd.f32 0.0, %v1931
        %v1933 = vpop.f32.mrb[0].mxu0
        %v1934 = vadd.f32 0.0, %v1933
        %v1935 = vpop.f32.mrb[0].mxu0
        %v1936 = vadd.f32 0.0, %v1935
        %1937 = vmatprep.mubr.bf16.mxu0 %v1228
        %1938 = vmatmul.mubr.bf16.gmra.mrb[0].mxu0 %v1227
        %v1939 = vpop.f32.mrb[0].mxu0
        %v1940 = vadd.f32 0.0, %v1939
        %v1941 = vpop.f32.mrb[0].mxu0
        %v1942 = vadd.f32 0.0, %v1941
        %v1943 = vpop.f32.mrb[0].mxu0
        %v1944 = vadd.f32 0.0, %v1943
        %v1945 = vpop.f32.mrb[0].mxu0
        %v1946 = vadd.f32 0.0, %v1945
        %1947 = vmatprep.mubr.bf16.mxu0 %v1232
        %1948 = vmatmul.mubr.bf16.gmra.mrb[0].mxu0 %v1231
        %v1949 = vpop.f32.mrb[0].mxu0
        %v1950 = vadd.f32 0.0, %v1949
        %v1951 = vpop.f32.mrb[0].mxu0
        %v1952 = vadd.f32 0.0, %v1951
        %v1953 = vpop.f32.mrb[0].mxu0
        %v1954 = vadd.f32 0.0, %v1953
        %v1955 = vpop.f32.mrb[0].mxu0
        %v1956 = vadd.f32 0.0, %v1955
        %1957 = vmatprep.mubr.bf16.mxu0 %v1236
        %1958 = vmatmul.mubr.bf16.gmra.mrb[0].mxu0 %v1235
        %v1959 = vpop.f32.mrb[0].mxu0
        %v1960 = vadd.f32 0.0, %v1959
        %v1961 = vpop.f32.mrb[0].mxu0
        %v1962 = vadd.f32 0.0, %v1961
        %v1963 = vpop.f32.mrb[0].mxu0
        %v1964 = vadd.f32 0.0, %v1963
        %v1965 = vpop.f32.mrb[0].mxu0
        %v1966 = vadd.f32 0.0, %v1965
        %1967 = vmatprep.mubr.bf16.mxu0 %v1240
        %1968 = vmatmul.mubr.bf16.gmra.mrb[0].mxu0 %v1239
        %v1969 = vpop.f32.mrb[0].mxu0
        %v1970 = vadd.f32 0.0, %v1969
        %v1971 = vpop.f32.mrb[0].mxu0
        %v1972 = vadd.f32 0.0, %v1971
        %v1973 = vpop.f32.mrb[0].mxu0
        %v1974 = vadd.f32 0.0, %v1973
        %v1975 = vpop.f32.mrb[0].mxu0
        %v1976 = vadd.f32 0.0, %v1975
        %1977 = vmatprep.mubr.bf16.mxu0 %v1244
        %1978 = vmatmul.mubr.bf16.gmra.mrb[0].mxu0 %v1243
        %v1979 = vpop.f32.mrb[0].mxu0
        %v1980 = vadd.f32 0.0, %v1979
        %v1981 = vpop.f32.mrb[0].mxu0
        %v1982 = vadd.f32 0.0, %v1981
        %v1983 = vpop.f32.mrb[0].mxu0
        %v1984 = vadd.f32 0.0, %v1983
        %v1985 = vpop.f32.mrb[0].mxu0
        %v1986 = vadd.f32 0.0, %v1985
        %1987 = vmatprep.mubr.bf16.mxu0 %v1248
        %1988 = vmatmul.mubr.bf16.gmra.mrb[0].mxu0 %v1247
        %v1989 = vpop.f32.mrb[0].mxu0
        %v1990 = vadd.f32 0.0, %v1989
        %v1991 = vpop.f32.mrb[0].mxu0
        %v1992 = vadd.f32 0.0, %v1991
        %v1993 = vpop.f32.mrb[0].mxu0
        %v1994 = vadd.f32 0.0, %v1993
        %v1995 = vpop.f32.mrb[0].mxu0
        %v1996 = vadd.f32 0.0, %v1995
        %1997 = vmatprep.mubr.bf16.mxu0 %v1252
        %1998 = vmatmul.mubr.bf16.gmra.mrb[0].mxu0 %v1251
        %v1999 = vpop.f32.mrb[0].mxu0
        %v2000 = vadd.f32 0.0, %v1999
        %v2001 = vpop.f32.mrb[0].mxu0
        %v2002 = vadd.f32 0.0, %v2001
        %v2003 = vpop.f32.mrb[0].mxu0
        %v2004 = vadd.f32 0.0, %v2003
        %v2005 = vpop.f32.mrb[0].mxu0
        %v2006 = vadd.f32 0.0, %v2005
        %2007 = vmatprep.mubr.bf16.mxu0 %v1256
        %2008 = vmatmul.mubr.bf16.gmra.mrb[0].mxu0 %v1255
        %v2009 = vpop.f32.mrb[0].mxu0
        %v2010 = vadd.f32 0.0, %v2009
        %v2011 = vpop.f32.mrb[0].mxu0
        %v2012 = vadd.f32 0.0, %v2011
        %v2013 = vpop.f32.mrb[0].mxu0
        %v2014 = vadd.f32 0.0, %v2013
        %v2015 = vpop.f32.mrb[0].mxu0
        %v2016 = vadd.f32 0.0, %v2015
        %2017 = vmatprep.mubr.bf16.mxu0 %v1260
        %2018 = vmatmul.mubr.bf16.gmra.mrb[0].mxu0 %v1259
        %v2019 = vpop.f32.mrb[0].mxu0
        %v2020 = vadd.f32 0.0, %v2019
        %v2021 = vpop.f32.mrb[0].mxu0
        %v2022 = vadd.f32 0.0, %v2021
        %v2023 = vpop.f32.mrb[0].mxu0
        %v2024 = vadd.f32 0.0, %v2023
        %v2025 = vpop.f32.mrb[0].mxu0
        %v2026 = vadd.f32 0.0, %v2025
        %2027 = vmatprep.mubr.bf16.mxu0 %v1264
        %2028 = vmatmul.mubr.bf16.gmra.mrb[0].mxu0 %v1263
        %v2029 = vpop.f32.mrb[0].mxu0
        %v2030 = vadd.f32 0.0, %v2029
        %v2031 = vpop.f32.mrb[0].mxu0
        %v2032 = vadd.f32 0.0, %v2031
        %v2033 = vpop.f32.mrb[0].mxu0
        %v2034 = vadd.f32 0.0, %v2033
        %v2035 = vpop.f32.mrb[0].mxu0
        %v2036 = vadd.f32 0.0, %v2035
        %2037 = vmatprep.mubr.bf16.mxu0 %v1268
        %2038 = vmatmul.mubr.bf16.gmra.mrb[0].mxu0 %v1267
        %v2039 = vpop.f32.mrb[0].mxu0
        %v2040 = vadd.f32 0.0, %v2039
        %v2041 = vpop.f32.mrb[0].mxu0
        %v2042 = vadd.f32 0.0, %v2041
        %v2043 = vpop.f32.mrb[0].mxu0
        %v2044 = vadd.f32 0.0, %v2043
        %v2045 = vpop.f32.mrb[0].mxu0
        %v2046 = vadd.f32 0.0, %v2045
        %2047 = vmatprep.mubr.bf16.mxu0 %v1272
        %2048 = vmatmul.mubr.bf16.gmra.mrb[0].mxu0 %v1271
        %v2049 = vpop.f32.mrb[0].mxu0
        %v2050 = vadd.f32 0.0, %v2049
        %v2051 = vpop.f32.mrb[0].mxu0
        %v2052 = vadd.f32 0.0, %v2051
        %v2053 = vpop.f32.mrb[0].mxu0
        %v2054 = vadd.f32 0.0, %v2053
        %v2055 = vpop.f32.mrb[0].mxu0
        %v2056 = vadd.f32 0.0, %v2055
        %2057 = vmatprep.mubr.bf16.mxu0 %v1276
        %2058 = vmatmul.mubr.bf16.gmra.mrb[0].mxu0 %v1275
        %v2059 = vpop.f32.mrb[0].mxu0
        %v2060 = vadd.f32 0.0, %v2059
        %v2061 = vpop.f32.mrb[0].mxu0
        %v2062 = vadd.f32 0.0, %v2061
        %v2063 = vpop.f32.mrb[0].mxu0
        %v2064 = vadd.f32 0.0, %v2063
        %v2065 = vpop.f32.mrb[0].mxu0
        %v2066 = vadd.f32 0.0, %v2065
        %2067 = vmatprep.mubr.bf16.mxu0 %v1280
        %2068 = vmatmul.mubr.bf16.gmra.mrb[0].mxu0 %v1279
        %v2069 = vpop.f32.mrb[0].mxu0
        %v2070 = vadd.f32 0.0, %v2069
        %v2071 = vpop.f32.mrb[0].mxu0
        %v2072 = vadd.f32 0.0, %v2071
        %v2073 = vpop.f32.mrb[0].mxu0
        %v2074 = vadd.f32 0.0, %v2073
        %v2075 = vpop.f32.mrb[0].mxu0
        %v2076 = vadd.f32 0.0, %v2075
        %2077 = vmatprep.mubr.bf16.mxu0 %v1284
        %2078 = vmatmul.mubr.bf16.gmra.mrb[0].mxu0 %v1283
        %v2079 = vpop.f32.mrb[0].mxu0
        %v2080 = vadd.f32 0.0, %v2079
        %v2081 = vpop.f32.mrb[0].mxu0
        %v2082 = vadd.f32 0.0, %v2081
        %v2083 = vpop.f32.mrb[0].mxu0
        %v2084 = vadd.f32 0.0, %v2083
        %v2085 = vpop.f32.mrb[0].mxu0
        %v2086 = vadd.f32 0.0, %v2085
        %2087 = vdwg.mxu0
        %2088 = vmatprep.subr.bf16.mxu0 %v1610
        %2089 = vmatpush1.bf16.xpose.msra.mxu0 %v1609
        %2090 = vmatprep.subr.bf16.mxu0 %v1614
        %2091 = vmatpush1.bf16.xpose.msra.mxu0 %v1613
        %2092 = vmatprep.subr.bf16.mxu0 %v1618
        %2093 = vmatpush1.bf16.xpose.msra.mxu0 %v1617
        %2094 = vmatprep.subr.bf16.mxu0 %v1622
        %2095 = vmatpush1.bf16.xpose.msra.mxu0 %v1621
        %2096 = vmatprep.subr.bf16.mxu0 %v1626
        %2097 = vmatpush1.bf16.xpose.msra.mxu0 %v1625
        %2098 = vmatprep.subr.bf16.mxu0 %v1630
        %2099 = vmatpush1.bf16.xpose.msra.mxu0 %v1629
        %2100 = vmatprep.subr.bf16.mxu0 %v1634
        %2101 = vmatpush1.bf16.xpose.msra.mxu0 %v1633
        %2102 = vmatprep.subr.bf16.mxu0 %v1638
        %2103 = vmatpush1.bf16.xpose.msra.mxu0 %v1637
        %2104 = vmatprep.subr.bf16.mxu0 %v1642
        %2105 = vmatpush1.bf16.xpose.msra.mxu0 %v1641
        %2106 = vmatprep.subr.bf16.mxu0 %v1646
        %2107 = vmatpush1.bf16.xpose.msra.mxu0 %v1645
        %2108 = vmatprep.subr.bf16.mxu0 %v1650
        %2109 = vmatpush1.bf16.xpose.msra.mxu0 %v1649
        %2110 = vmatprep.subr.bf16.mxu0 %v1654
        %2111 = vmatpush1.bf16.xpose.msra.mxu0 %v1653
        %2112 = vmatprep.subr.bf16.mxu0 %v1658
        %2113 = vmatpush1.bf16.xpose.msra.mxu0 %v1657
        %2114 = vmatprep.subr.bf16.mxu0 %v1662
        %2115 = vmatpush1.bf16.xpose.msra.mxu0 %v1661
        %2116 = vmatprep.subr.bf16.mxu0 %v1666
        %2117 = vmatpush1.bf16.xpose.msra.mxu0 %v1665
        %2118 = vmatprep.subr.bf16.mxu0 %v1670
        %2119 = vmatpush1.bf16.xpose.msra.mxu0 %v1669
        %2120 = vmatprep.mubr.bf16.mxu0 %v1162
        %2121 = vmatmul.mubr.bf16.gmra.mrb[0].mxu0 %v1161
        %v2122 = vpop.f32.mrb[0].mxu0
        %v2123 = vadd.f32 %v1770, %v2122
        %v2124 = vpop.f32.mrb[0].mxu0
        %v2125 = vadd.f32 %v1772, %v2124
        %v2126 = vpop.f32.mrb[0].mxu0
        %v2127 = vadd.f32 %v1774, %v2126
        %v2128 = vpop.f32.mrb[0].mxu0
        %v2129 = vadd.f32 %v1776, %v2128
        %2130 = vmatprep.mubr.bf16.mxu0 %v1166
        %2131 = vmatmul.mubr.bf16.gmra.mrb[0].mxu0 %v1165
        %v2132 = vpop.f32.mrb[0].mxu0
        %v2133 = vadd.f32 %v1780, %v2132
        %v2134 = vpop.f32.mrb[0].mxu0
        %v2135 = vadd.f32 %v1782, %v2134
        %v2136 = vpop.f32.mrb[0].mxu0
        %v2137 = vadd.f32 %v1784, %v2136
        %v2138 = vpop.f32.mrb[0].mxu0
        %v2139 = vadd.f32 %v1786, %v2138
        %2140 = vmatprep.mubr.bf16.mxu0 %v1170
        %2141 = vmatmul.mubr.bf16.gmra.mrb[0].mxu0 %v1169
        %v2142 = vpop.f32.mrb[0].mxu0
        %v2143 = vadd.f32 %v1790, %v2142
        %v2144 = vpop.f32.mrb[0].mxu0
        %v2145 = vadd.f32 %v1792, %v2144
        %v2146 = vpop.f32.mrb[0].mxu0
        %v2147 = vadd.f32 %v1794, %v2146
        %v2148 = vpop.f32.mrb[0].mxu0
        %v2149 = vadd.f32 %v1796, %v2148
        %2150 = vmatprep.mubr.bf16.mxu0 %v1174
        %2151 = vmatmul.mubr.bf16.gmra.mrb[0].mxu0 %v1173
        %v2152 = vpop.f32.mrb[0].mxu0
        %v2153 = vadd.f32 %v1800, %v2152
        %v2154 = vpop.f32.mrb[0].mxu0
        %v2155 = vadd.f32 %v1802, %v2154
        %v2156 = vpop.f32.mrb[0].mxu0
        %v2157 = vadd.f32 %v1804, %v2156
        %v2158 = vpop.f32.mrb[0].mxu0
        %v2159 = vadd.f32 %v1806, %v2158
        %2160 = vmatprep.mubr.bf16.mxu0 %v1178
        %2161 = vmatmul.mubr.bf16.gmra.mrb[0].mxu0 %v1177
        %v2162 = vpop.f32.mrb[0].mxu0
        %v2163 = vadd.f32 %v1810, %v2162
        %v2164 = vpop.f32.mrb[0].mxu0
        %v2165 = vadd.f32 %v1812, %v2164
        %v2166 = vpop.f32.mrb[0].mxu0
        %v2167 = vadd.f32 %v1814, %v2166
        %v2168 = vpop.f32.mrb[0].mxu0
        %v2169 = vadd.f32 %v1816, %v2168
        %2170 = vmatprep.mubr.bf16.mxu0 %v1182
        %2171 = vmatmul.mubr.bf16.gmra.mrb[0].mxu0 %v1181
        %v2172 = vpop.f32.mrb[0].mxu0
        %v2173 = vadd.f32 %v1820, %v2172
        %v2174 = vpop.f32.mrb[0].mxu0
        %v2175 = vadd.f32 %v1822, %v2174
        %v2176 = vpop.f32.mrb[0].mxu0
        %v2177 = vadd.f32 %v1824, %v2176
        %v2178 = vpop.f32.mrb[0].mxu0
        %v2179 = vadd.f32 %v1826, %v2178
        %2180 = vmatprep.mubr.bf16.mxu0 %v1186
        %2181 = vmatmul.mubr.bf16.gmra.mrb[0].mxu0 %v1185
        %v2182 = vpop.f32.mrb[0].mxu0
        %v2183 = vadd.f32 %v1830, %v2182
        %v2184 = vpop.f32.mrb[0].mxu0
        %v2185 = vadd.f32 %v1832, %v2184
        %v2186 = vpop.f32.mrb[0].mxu0
        %v2187 = vadd.f32 %v1834, %v2186
        %v2188 = vpop.f32.mrb[0].mxu0
        %v2189 = vadd.f32 %v1836, %v2188
        %2190 = vmatprep.mubr.bf16.mxu0 %v1190
        %2191 = vmatmul.mubr.bf16.gmra.mrb[0].mxu0 %v1189
        %v2192 = vpop.f32.mrb[0].mxu0
        %v2193 = vadd.f32 %v1840, %v2192
        %v2194 = vpop.f32.mrb[0].mxu0
        %v2195 = vadd.f32 %v1842, %v2194
        %v2196 = vpop.f32.mrb[0].mxu0
        %v2197 = vadd.f32 %v1844, %v2196
        %v2198 = vpop.f32.mrb[0].mxu0
        %v2199 = vadd.f32 %v1846, %v2198
        %2200 = vmatprep.mubr.bf16.mxu0 %v1194
        %2201 = vmatmul.mubr.bf16.gmra.mrb[0].mxu0 %v1193
        %v2202 = vpop.f32.mrb[0].mxu0
        %v2203 = vadd.f32 %v1850, %v2202
        %v2204 = vpop.f32.mrb[0].mxu0
        %v2205 = vadd.f32 %v1852, %v2204
        %v2206 = vpop.f32.mrb[0].mxu0
        %v2207 = vadd.f32 %v1854, %v2206
        %v2208 = vpop.f32.mrb[0].mxu0
        %v2209 = vadd.f32 %v1856, %v2208
        %2210 = vmatprep.mubr.bf16.mxu0 %v1198
        %2211 = vmatmul.mubr.bf16.gmra.mrb[0].mxu0 %v1197
        %v2212 = vpop.f32.mrb[0].mxu0
        %v2213 = vadd.f32 %v1860, %v2212
        %v2214 = vpop.f32.mrb[0].mxu0
        %v2215 = vadd.f32 %v1862, %v2214
        %v2216 = vpop.f32.mrb[0].mxu0
        %v2217 = vadd.f32 %v1864, %v2216
        %v2218 = vpop.f32.mrb[0].mxu0
        %v2219 = vadd.f32 %v1866, %v2218
        %2220 = vmatprep.mubr.bf16.mxu0 %v1202
        %2221 = vmatmul.mubr.bf16.gmra.mrb[0].mxu0 %v1201
        %v2222 = vpop.f32.mrb[0].mxu0
        %v2223 = vadd.f32 %v1870, %v2222
        %v2224 = vpop.f32.mrb[0].mxu0
        %v2225 = vadd.f32 %v1872, %v2224
        %v2226 = vpop.f32.mrb[0].mxu0
        %v2227 = vadd.f32 %v1874, %v2226
        %v2228 = vpop.f32.mrb[0].mxu0
        %v2229 = vadd.f32 %v1876, %v2228
        %2230 = vmatprep.mubr.bf16.mxu0 %v1206
        %2231 = vmatmul.mubr.bf16.gmra.mrb[0].mxu0 %v1205
        %v2232 = vpop.f32.mrb[0].mxu0
        %v2233 = vadd.f32 %v1880, %v2232
        %v2234 = vpop.f32.mrb[0].mxu0
        %v2235 = vadd.f32 %v1882, %v2234
        %v2236 = vpop.f32.mrb[0].mxu0
        %v2237 = vadd.f32 %v1884, %v2236
        %v2238 = vpop.f32.mrb[0].mxu0
        %v2239 = vadd.f32 %v1886, %v2238
        %2240 = vmatprep.mubr.bf16.mxu0 %v1210
        %2241 = vmatmul.mubr.bf16.gmra.mrb[0].mxu0 %v1209
        %v2242 = vpop.f32.mrb[0].mxu0
        %v2243 = vadd.f32 %v1890, %v2242
        %v2244 = vpop.f32.mrb[0].mxu0
        %v2245 = vadd.f32 %v1892, %v2244
        %v2246 = vpop.f32.mrb[0].mxu0
        %v2247 = vadd.f32 %v1894, %v2246
        %v2248 = vpop.f32.mrb[0].mxu0
        %v2249 = vadd.f32 %v1896, %v2248
        %2250 = vmatprep.mubr.bf16.mxu0 %v1214
        %2251 = vmatmul.mubr.bf16.gmra.mrb[0].mxu0 %v1213
        %v2252 = vpop.f32.mrb[0].mxu0
        %v2253 = vadd.f32 %v1900, %v2252
        %v2254 = vpop.f32.mrb[0].mxu0
        %v2255 = vadd.f32 %v1902, %v2254
        %v2256 = vpop.f32.mrb[0].mxu0
        %v2257 = vadd.f32 %v1904, %v2256
        %v2258 = vpop.f32.mrb[0].mxu0
        %v2259 = vadd.f32 %v1906, %v2258
        %2260 = vmatprep.mubr.bf16.mxu0 %v1218
        %2261 = vmatmul.mubr.bf16.gmra.mrb[0].mxu0 %v1217
        %v2262 = vpop.f32.mrb[0].mxu0
        %v2263 = vadd.f32 %v1910, %v2262
        %v2264 = vpop.f32.mrb[0].mxu0
        %v2265 = vadd.f32 %v1912, %v2264
        %v2266 = vpop.f32.mrb[0].mxu0
        %v2267 = vadd.f32 %v1914, %v2266
        %v2268 = vpop.f32.mrb[0].mxu0
        %v2269 = vadd.f32 %v1916, %v2268
        %2270 = vmatprep.mubr.bf16.mxu0 %v1222
        %2271 = vmatmul.mubr.bf16.gmra.mrb[0].mxu0 %v1221
        %v2272 = vpop.f32.mrb[0].mxu0
        %v2273 = vadd.f32 %v1920, %v2272
        %v2274 = vpop.f32.mrb[0].mxu0
        %v2275 = vadd.f32 %v1922, %v2274
        %v2276 = vpop.f32.mrb[0].mxu0
        %v2277 = vadd.f32 %v1924, %v2276
        %v2278 = vpop.f32.mrb[0].mxu0
        %v2279 = vadd.f32 %v1926, %v2278
        %2280 = vmatprep.mubr.bf16.mxu0 %v1226
        %2281 = vmatmul.mubr.bf16.gmra.mrb[0].mxu0 %v1225
        %v2282 = vpop.f32.mrb[0].mxu0
        %v2283 = vadd.f32 %v1930, %v2282
        %v2284 = vpop.f32.mrb[0].mxu0
        %v2285 = vadd.f32 %v1932, %v2284
        %v2286 = vpop.f32.mrb[0].mxu0
        %v2287 = vadd.f32 %v1934, %v2286
        %v2288 = vpop.f32.mrb[0].mxu0
        %v2289 = vadd.f32 %v1936, %v2288
        %2290 = vmatprep.mubr.bf16.mxu0 %v1230
        %2291 = vmatmul.mubr.bf16.gmra.mrb[0].mxu0 %v1229
        %v2292 = vpop.f32.mrb[0].mxu0
        %v2293 = vadd.f32 %v1940, %v2292
        %v2294 = vpop.f32.mrb[0].mxu0
        %v2295 = vadd.f32 %v1942, %v2294
        %v2296 = vpop.f32.mrb[0].mxu0
        %v2297 = vadd.f32 %v1944, %v2296
        %v2298 = vpop.f32.mrb[0].mxu0
        %v2299 = vadd.f32 %v1946, %v2298
        %2300 = vmatprep.mubr.bf16.mxu0 %v1234
        %2301 = vmatmul.mubr.bf16.gmra.mrb[0].mxu0 %v1233
        %v2302 = vpop.f32.mrb[0].mxu0
        %v2303 = vadd.f32 %v1950, %v2302
        %v2304 = vpop.f32.mrb[0].mxu0
        %v2305 = vadd.f32 %v1952, %v2304
        %v2306 = vpop.f32.mrb[0].mxu0
        %v2307 = vadd.f32 %v1954, %v2306
        %v2308 = vpop.f32.mrb[0].mxu0
        %v2309 = vadd.f32 %v1956, %v2308
        %2310 = vmatprep.mubr.bf16.mxu0 %v1238
        %2311 = vmatmul.mubr.bf16.gmra.mrb[0].mxu0 %v1237
        %v2312 = vpop.f32.mrb[0].mxu0
        %v2313 = vadd.f32 %v1960, %v2312
        %v2314 = vpop.f32.mrb[0].mxu0
        %v2315 = vadd.f32 %v1962, %v2314
        %v2316 = vpop.f32.mrb[0].mxu0
        %v2317 = vadd.f32 %v1964, %v2316
        %v2318 = vpop.f32.mrb[0].mxu0
        %v2319 = vadd.f32 %v1966, %v2318
        %2320 = vmatprep.mubr.bf16.mxu0 %v1242
        %2321 = vmatmul.mubr.bf16.gmra.mrb[0].mxu0 %v1241
        %v2322 = vpop.f32.mrb[0].mxu0
        %v2323 = vadd.f32 %v1970, %v2322
        %v2324 = vpop.f32.mrb[0].mxu0
        %v2325 = vadd.f32 %v1972, %v2324
        %v2326 = vpop.f32.mrb[0].mxu0
        %v2327 = vadd.f32 %v1974, %v2326
        %v2328 = vpop.f32.mrb[0].mxu0
        %v2329 = vadd.f32 %v1976, %v2328
        %2330 = vmatprep.mubr.bf16.mxu0 %v1246
        %2331 = vmatmul.mubr.bf16.gmra.mrb[0].mxu0 %v1245
        %v2332 = vpop.f32.mrb[0].mxu0
        %v2333 = vadd.f32 %v1980, %v2332
        %v2334 = vpop.f32.mrb[0].mxu0
        %v2335 = vadd.f32 %v1982, %v2334
        %v2336 = vpop.f32.mrb[0].mxu0
        %v2337 = vadd.f32 %v1984, %v2336
        %v2338 = vpop.f32.mrb[0].mxu0
        %v2339 = vadd.f32 %v1986, %v2338
        %2340 = vmatprep.mubr.bf16.mxu0 %v1250
        %2341 = vmatmul.mubr.bf16.gmra.mrb[0].mxu0 %v1249
        %v2342 = vpop.f32.mrb[0].mxu0
        %v2343 = vadd.f32 %v1990, %v2342
        %v2344 = vpop.f32.mrb[0].mxu0
        %v2345 = vadd.f32 %v1992, %v2344
        %v2346 = vpop.f32.mrb[0].mxu0
        %v2347 = vadd.f32 %v1994, %v2346
        %v2348 = vpop.f32.mrb[0].mxu0
        %v2349 = vadd.f32 %v1996, %v2348
        %2350 = vmatprep.mubr.bf16.mxu0 %v1254
        %2351 = vmatmul.mubr.bf16.gmra.mrb[0].mxu0 %v1253
        %v2352 = vpop.f32.mrb[0].mxu0
        %v2353 = vadd.f32 %v2000, %v2352
        %v2354 = vpop.f32.mrb[0].mxu0
        %v2355 = vadd.f32 %v2002, %v2354
        %v2356 = vpop.f32.mrb[0].mxu0
        %v2357 = vadd.f32 %v2004, %v2356
        %v2358 = vpop.f32.mrb[0].mxu0
        %v2359 = vadd.f32 %v2006, %v2358
        %2360 = vmatprep.mubr.bf16.mxu0 %v1258
        %2361 = vmatmul.mubr.bf16.gmra.mrb[0].mxu0 %v1257
        %v2362 = vpop.f32.mrb[0].mxu0
        %v2363 = vadd.f32 %v2010, %v2362
        %v2364 = vpop.f32.mrb[0].mxu0
        %v2365 = vadd.f32 %v2012, %v2364
        %v2366 = vpop.f32.mrb[0].mxu0
        %v2367 = vadd.f32 %v2014, %v2366
        %v2368 = vpop.f32.mrb[0].mxu0
        %v2369 = vadd.f32 %v2016, %v2368
        %2370 = vmatprep.mubr.bf16.mxu0 %v1262
        %2371 = vmatmul.mubr.bf16.gmra.mrb[0].mxu0 %v1261
        %v2372 = vpop.f32.mrb[0].mxu0
        %v2373 = vadd.f32 %v2020, %v2372
        %v2374 = vpop.f32.mrb[0].mxu0
        %v2375 = vadd.f32 %v2022, %v2374
        %v2376 = vpop.f32.mrb[0].mxu0
        %v2377 = vadd.f32 %v2024, %v2376
        %v2378 = vpop.f32.mrb[0].mxu0
        %v2379 = vadd.f32 %v2026, %v2378
        %2380 = vmatprep.mubr.bf16.mxu0 %v1266
        %2381 = vmatmul.mubr.bf16.gmra.mrb[0].mxu0 %v1265
        %v2382 = vpop.f32.mrb[0].mxu0
        %v2383 = vadd.f32 %v2030, %v2382
        %v2384 = vpop.f32.mrb[0].mxu0
        %v2385 = vadd.f32 %v2032, %v2384
        %v2386 = vpop.f32.mrb[0].mxu0
        %v2387 = vadd.f32 %v2034, %v2386
        %v2388 = vpop.f32.mrb[0].mxu0
        %v2389 = vadd.f32 %v2036, %v2388
        %2390 = vmatprep.mubr.bf16.mxu0 %v1270
        %2391 = vmatmul.mubr.bf16.gmra.mrb[0].mxu0 %v1269
        %v2392 = vpop.f32.mrb[0].mxu0
        %v2393 = vadd.f32 %v2040, %v2392
        %v2394 = vpop.f32.mrb[0].mxu0
        %v2395 = vadd.f32 %v2042, %v2394
        %v2396 = vpop.f32.mrb[0].mxu0
        %v2397 = vadd.f32 %v2044, %v2396
        %v2398 = vpop.f32.mrb[0].mxu0
        %v2399 = vadd.f32 %v2046, %v2398
        %2400 = vmatprep.mubr.bf16.mxu0 %v1274
        %2401 = vmatmul.mubr.bf16.gmra.mrb[0].mxu0 %v1273
        %v2402 = vpop.f32.mrb[0].mxu0
        %v2403 = vadd.f32 %v2050, %v2402
        %v2404 = vpop.f32.mrb[0].mxu0
        %v2405 = vadd.f32 %v2052, %v2404
        %v2406 = vpop.f32.mrb[0].mxu0
        %v2407 = vadd.f32 %v2054, %v2406
        %v2408 = vpop.f32.mrb[0].mxu0
        %v2409 = vadd.f32 %v2056, %v2408
        %2410 = vmatprep.mubr.bf16.mxu0 %v1278
        %2411 = vmatmul.mubr.bf16.gmra.mrb[0].mxu0 %v1277
        %v2412 = vpop.f32.mrb[0].mxu0
        %v2413 = vadd.f32 %v2060, %v2412
        %v2414 = vpop.f32.mrb[0].mxu0
        %v2415 = vadd.f32 %v2062, %v2414
        %v2416 = vpop.f32.mrb[0].mxu0
        %v2417 = vadd.f32 %v2064, %v2416
        %v2418 = vpop.f32.mrb[0].mxu0
        %v2419 = vadd.f32 %v2066, %v2418
        %2420 = vmatprep.mubr.bf16.mxu0 %v1282
        %2421 = vmatmul.mubr.bf16.gmra.mrb[0].mxu0 %v1281
        %v2422 = vpop.f32.mrb[0].mxu0
        %v2423 = vadd.f32 %v2070, %v2422
        %v2424 = vpop.f32.mrb[0].mxu0
        %v2425 = vadd.f32 %v2072, %v2424
        %v2426 = vpop.f32.mrb[0].mxu0
        %v2427 = vadd.f32 %v2074, %v2426
        %v2428 = vpop.f32.mrb[0].mxu0
        %v2429 = vadd.f32 %v2076, %v2428
        %2430 = vmatprep.mubr.bf16.mxu0 %v1286
        %2431 = vmatmul.mubr.bf16.gmra.mrb[0].mxu0 %v1285
        %v2432 = vpop.f32.mrb[0].mxu0
        %v2433 = vadd.f32 %v2080, %v2432
        %v2434 = vpop.f32.mrb[0].mxu0
        %v2435 = vadd.f32 %v2082, %v2434
        %v2436 = vpop.f32.mrb[0].mxu0
        %v2437 = vadd.f32 %v2084, %v2436
        %v2438 = vpop.f32.mrb[0].mxu0
        %v2439 = vadd.f32 %v2086, %v2438
        %2440 = vdwg.mxu0
        %v2441 = vadd.f32 %v455, %v2123
        %v2442 = vadd.f32 %v456, %v2125
        %v2443 = vadd.f32 %v457, %v2127
        %v2444 = vadd.f32 %v458, %v2129
        %v2445 = vadd.f32 %v459, %v2133
        %v2446 = vadd.f32 %v460, %v2135
        %v2447 = vadd.f32 %v461, %v2137
        %v2448 = vadd.f32 %v462, %v2139
        %v2449 = vadd.f32 %v463, %v2143
        %v2450 = vadd.f32 %v464, %v2145
        %v2451 = vadd.f32 %v465, %v2147
        %v2452 = vadd.f32 %v466, %v2149
        %v2453 = vadd.f32 %v467, %v2153
        %v2454 = vadd.f32 %v468, %v2155
        %v2455 = vadd.f32 %v469, %v2157
        %v2456 = vadd.f32 %v470, %v2159
        %v2457 = vadd.f32 %v471, %v2163
        %v2458 = vadd.f32 %v472, %v2165
        %v2459 = vadd.f32 %v473, %v2167
        %v2460 = vadd.f32 %v474, %v2169
        %v2461 = vadd.f32 %v475, %v2173
        %v2462 = vadd.f32 %v476, %v2175
        %v2463 = vadd.f32 %v477, %v2177
        %v2464 = vadd.f32 %v478, %v2179
        %v2465 = vadd.f32 %v479, %v2183
        %v2466 = vadd.f32 %v480, %v2185
        %v2467 = vadd.f32 %v481, %v2187
        %v2468 = vadd.f32 %v482, %v2189
        %v2469 = vadd.f32 %v483, %v2193
        %v2470 = vadd.f32 %v484, %v2195
        %v2471 = vadd.f32 %v485, %v2197
        %v2472 = vadd.f32 %v486, %v2199
        %v2473 = vadd.f32 %v487, %v2203
        %v2474 = vadd.f32 %v488, %v2205
        %v2475 = vadd.f32 %v489, %v2207
        %v2476 = vadd.f32 %v490, %v2209
        %v2477 = vadd.f32 %v491, %v2213
        %v2478 = vadd.f32 %v492, %v2215
        %v2479 = vadd.f32 %v493, %v2217
        %v2480 = vadd.f32 %v494, %v2219
        %v2481 = vadd.f32 %v495, %v2223
        %v2482 = vadd.f32 %v496, %v2225
        %v2483 = vadd.f32 %v497, %v2227
        %v2484 = vadd.f32 %v498, %v2229
        %v2485 = vadd.f32 %v499, %v2233
        %v2486 = vadd.f32 %v500, %v2235
        %v2487 = vadd.f32 %v501, %v2237
        %v2488 = vadd.f32 %v502, %v2239
        %v2489 = vadd.f32 %v503, %v2243
        %v2490 = vadd.f32 %v504, %v2245
        %v2491 = vadd.f32 %v505, %v2247
        %v2492 = vadd.f32 %v506, %v2249
        %v2493 = vadd.f32 %v507, %v2253
        %v2494 = vadd.f32 %v508, %v2255
        %v2495 = vadd.f32 %v509, %v2257
        %v2496 = vadd.f32 %v510, %v2259
        %v2497 = vadd.f32 %v511, %v2263
        %v2498 = vadd.f32 %v512, %v2265
        %v2499 = vadd.f32 %v513, %v2267
        %v2500 = vadd.f32 %v514, %v2269
        %v2501 = vadd.f32 %v515, %v2273
        %v2502 = vadd.f32 %v516, %v2275
        %v2503 = vadd.f32 %v517, %v2277
        %v2504 = vadd.f32 %v518, %v2279
        %v2505 = vadd.f32 %v519, %v2283
        %v2506 = vadd.f32 %v520, %v2285
        %v2507 = vadd.f32 %v521, %v2287
        %v2508 = vadd.f32 %v522, %v2289
        %v2509 = vadd.f32 %v523, %v2293
        %v2510 = vadd.f32 %v524, %v2295
        %v2511 = vadd.f32 %v525, %v2297
        %v2512 = vadd.f32 %v526, %v2299
        %v2513 = vadd.f32 %v527, %v2303
        %v2514 = vadd.f32 %v528, %v2305
        %v2515 = vadd.f32 %v529, %v2307
        %v2516 = vadd.f32 %v530, %v2309
        %v2517 = vadd.f32 %v531, %v2313
        %v2518 = vadd.f32 %v532, %v2315
        %v2519 = vadd.f32 %v533, %v2317
        %v2520 = vadd.f32 %v534, %v2319
        %v2521 = vadd.f32 %v535, %v2323
        %v2522 = vadd.f32 %v536, %v2325
        %v2523 = vadd.f32 %v537, %v2327
        %v2524 = vadd.f32 %v538, %v2329
        %v2525 = vadd.f32 %v539, %v2333
        %v2526 = vadd.f32 %v540, %v2335
        %v2527 = vadd.f32 %v541, %v2337
        %v2528 = vadd.f32 %v542, %v2339
        %v2529 = vadd.f32 %v543, %v2343
        %v2530 = vadd.f32 %v544, %v2345
        %v2531 = vadd.f32 %v545, %v2347
        %v2532 = vadd.f32 %v546, %v2349
        %v2533 = vadd.f32 %v547, %v2353
        %v2534 = vadd.f32 %v548, %v2355
        %v2535 = vadd.f32 %v549, %v2357
        %v2536 = vadd.f32 %v550, %v2359
        %v2537 = vadd.f32 %v551, %v2363
        %v2538 = vadd.f32 %v552, %v2365
        %v2539 = vadd.f32 %v553, %v2367
        %v2540 = vadd.f32 %v554, %v2369
        %v2541 = vadd.f32 %v555, %v2373
        %v2542 = vadd.f32 %v556, %v2375
        %v2543 = vadd.f32 %v557, %v2377
        %v2544 = vadd.f32 %v558, %v2379
        %v2545 = vadd.f32 %v559, %v2383
        %v2546 = vadd.f32 %v560, %v2385
        %v2547 = vadd.f32 %v561, %v2387
        %v2548 = vadd.f32 %v562, %v2389
        %v2549 = vadd.f32 %v563, %v2393
        %v2550 = vadd.f32 %v564, %v2395
        %v2551 = vadd.f32 %v565, %v2397
        %v2552 = vadd.f32 %v566, %v2399
        %v2553 = vadd.f32 %v567, %v2403
        %v2554 = vadd.f32 %v568, %v2405
        %v2555 = vadd.f32 %v569, %v2407
        %v2556 = vadd.f32 %v570, %v2409
        %v2557 = vadd.f32 %v571, %v2413
        %v2558 = vadd.f32 %v572, %v2415
        %v2559 = vadd.f32 %v573, %v2417
        %v2560 = vadd.f32 %v574, %v2419
        %v2561 = vadd.f32 %v575, %v2423
        %v2562 = vadd.f32 %v576, %v2425
        %v2563 = vadd.f32 %v577, %v2427
        %v2564 = vadd.f32 %v578, %v2429
        %v2565 = vadd.f32 %v579, %v2433
        %v2566 = vadd.f32 %v580, %v2435
        %v2567 = vadd.f32 %v581, %v2437
        %v2568 = vadd.f32 %v582, %v2439
        %2569 = vst [vmem:[#allocation2] sm:$0xff] %v2441
        %2570 = vst [vmem:[#allocation2 + $0x8] sm:$0xff] %v2442
        %2571 = vst [vmem:[#allocation2 + $0x10] sm:$0xff] %v2443
        %2572 = vst [vmem:[#allocation2 + $0x18] sm:$0xff] %v2444
        %2573 = vst [vmem:[#allocation2 + $0x20] sm:$0xff] %v2445
        %2574 = vst [vmem:[#allocation2 + $0x28] sm:$0xff] %v2446
        %2575 = vst [vmem:[#allocation2 + $0x30] sm:$0xff] %v2447
        %2576 = vst [vmem:[#allocation2 + $0x38] sm:$0xff] %v2448
        %2577 = vst [vmem:[#allocation2 + $0x40] sm:$0xff] %v2449
        %2578 = vst [vmem:[#allocation2 + $0x48] sm:$0xff] %v2450
        %2579 = vst [vmem:[#allocation2 + $0x50] sm:$0xff] %v2451
        %2580 = vst [vmem:[#allocation2 + $0x58] sm:$0xff] %v2452
        %2581 = vst [vmem:[#allocation2 + $0x60] sm:$0xff] %v2453
        %2582 = vst [vmem:[#allocation2 + $0x68] sm:$0xff] %v2454
        %2583 = vst [vmem:[#allocation2 + $0x70] sm:$0xff] %v2455
        %2584 = vst [vmem:[#allocation2 + $0x78] sm:$0xff] %v2456
        %2585 = vst [vmem:[#allocation2 + $0x80] sm:$0xff] %v2457
        %2586 = vst [vmem:[#allocation2 + $0x88] sm:$0xff] %v2458
        %2587 = vst [vmem:[#allocation2 + $0x90] sm:$0xff] %v2459
        %2588 = vst [vmem:[#allocation2 + $0x98] sm:$0xff] %v2460
        %2589 = vst [vmem:[#allocation2 + $0xa0] sm:$0xff] %v2461
        %2590 = vst [vmem:[#allocation2 + $0xa8] sm:$0xff] %v2462
        %2591 = vst [vmem:[#allocation2 + $0xb0] sm:$0xff] %v2463
        %2592 = vst [vmem:[#allocation2 + $0xb8] sm:$0xff] %v2464
        %2593 = vst [vmem:[#allocation2 + $0xc0] sm:$0xff] %v2465
        %2594 = vst [vmem:[#allocation2 + $0xc8] sm:$0xff] %v2466
        %2595 = vst [vmem:[#allocation2 + $0xd0] sm:$0xff] %v2467
        %2596 = vst [vmem:[#allocation2 + $0xd8] sm:$0xff] %v2468
        %2597 = vst [vmem:[#allocation2 + $0xe0] sm:$0xff] %v2469
        %2598 = vst [vmem:[#allocation2 + $0xe8] sm:$0xff] %v2470
        %2599 = vst [vmem:[#allocation2 + $0xf0] sm:$0xff] %v2471
        %2600 = vst [vmem:[#allocation2 + $0xf8] sm:$0xff] %v2472
        %2601 = vst [vmem:[#allocation2 + $0x100] sm:$0xff] %v2473
        %2602 = vst [vmem:[#allocation2 + $0x108] sm:$0xff] %v2474
        %2603 = vst [vmem:[#allocation2 + $0x110] sm:$0xff] %v2475
        %2604 = vst [vmem:[#allocation2 + $0x118] sm:$0xff] %v2476
        %2605 = vst [vmem:[#allocation2 + $0x120] sm:$0xff] %v2477
        %2606 = vst [vmem:[#allocation2 + $0x128] sm:$0xff] %v2478
        %2607 = vst [vmem:[#allocation2 + $0x130] sm:$0xff] %v2479
        %2608 = vst [vmem:[#allocation2 + $0x138] sm:$0xff] %v2480
        %2609 = vst [vmem:[#allocation2 + $0x140] sm:$0xff] %v2481
        %2610 = vst [vmem:[#allocation2 + $0x148] sm:$0xff] %v2482
        %2611 = vst [vmem:[#allocation2 + $0x150] sm:$0xff] %v2483
        %2612 = vst [vmem:[#allocation2 + $0x158] sm:$0xff] %v2484
        %2613 = vst [vmem:[#allocation2 + $0x160] sm:$0xff] %v2485
        %2614 = vst [vmem:[#allocation2 + $0x168] sm:$0xff] %v2486
        %2615 = vst [vmem:[#allocation2 + $0x170] sm:$0xff] %v2487
        %2616 = vst [vmem:[#allocation2 + $0x178] sm:$0xff] %v2488
        %2617 = vst [vmem:[#allocation2 + $0x180] sm:$0xff] %v2489
        %2618 = vst [vmem:[#allocation2 + $0x188] sm:$0xff] %v2490
        %2619 = vst [vmem:[#allocation2 + $0x190] sm:$0xff] %v2491
        %2620 = vst [vmem:[#allocation2 + $0x198] sm:$0xff] %v2492
        %2621 = vst [vmem:[#allocation2 + $0x1a0] sm:$0xff] %v2493
        %2622 = vst [vmem:[#allocation2 + $0x1a8] sm:$0xff] %v2494
        %2623 = vst [vmem:[#allocation2 + $0x1b0] sm:$0xff] %v2495
        %2624 = vst [vmem:[#allocation2 + $0x1b8] sm:$0xff] %v2496
        %2625 = vst [vmem:[#allocation2 + $0x1c0] sm:$0xff] %v2497
        %2626 = vst [vmem:[#allocation2 + $0x1c8] sm:$0xff] %v2498
        %2627 = vst [vmem:[#allocation2 + $0x1d0] sm:$0xff] %v2499
        %2628 = vst [vmem:[#allocation2 + $0x1d8] sm:$0xff] %v2500
        %2629 = vst [vmem:[#allocation2 + $0x1e0] sm:$0xff] %v2501
        %2630 = vst [vmem:[#allocation2 + $0x1e8] sm:$0xff] %v2502
        %2631 = vst [vmem:[#allocation2 + $0x1f0] sm:$0xff] %v2503
        %2632 = vst [vmem:[#allocation2 + $0x1f8] sm:$0xff] %v2504
        %2633 = vst [vmem:[#allocation2 + $0x200] sm:$0xff] %v2505
        %2634 = vst [vmem:[#allocation2 + $0x208] sm:$0xff] %v2506
        %2635 = vst [vmem:[#allocation2 + $0x210] sm:$0xff] %v2507
        %2636 = vst [vmem:[#allocation2 + $0x218] sm:$0xff] %v2508
        %2637 = vst [vmem:[#allocation2 + $0x220] sm:$0xff] %v2509
        %2638 = vst [vmem:[#allocation2 + $0x228] sm:$0xff] %v2510
        %2639 = vst [vmem:[#allocation2 + $0x230] sm:$0xff] %v2511
        %2640 = vst [vmem:[#allocation2 + $0x238] sm:$0xff] %v2512
        %2641 = vst [vmem:[#allocation2 + $0x240] sm:$0xff] %v2513
        %2642 = vst [vmem:[#allocation2 + $0x248] sm:$0xff] %v2514
        %2643 = vst [vmem:[#allocation2 + $0x250] sm:$0xff] %v2515
        %2644 = vst [vmem:[#allocation2 + $0x258] sm:$0xff] %v2516
        %2645 = vst [vmem:[#allocation2 + $0x260] sm:$0xff] %v2517
        %2646 = vst [vmem:[#allocation2 + $0x268] sm:$0xff] %v2518
        %2647 = vst [vmem:[#allocation2 + $0x270] sm:$0xff] %v2519
        %2648 = vst [vmem:[#allocation2 + $0x278] sm:$0xff] %v2520
        %2649 = vst [vmem:[#allocation2 + $0x280] sm:$0xff] %v2521
        %2650 = vst [vmem:[#allocation2 + $0x288] sm:$0xff] %v2522
        %2651 = vst [vmem:[#allocation2 + $0x290] sm:$0xff] %v2523
        %2652 = vst [vmem:[#allocation2 + $0x298] sm:$0xff] %v2524
        %2653 = vst [vmem:[#allocation2 + $0x2a0] sm:$0xff] %v2525
        %2654 = vst [vmem:[#allocation2 + $0x2a8] sm:$0xff] %v2526
        %2655 = vst [vmem:[#allocation2 + $0x2b0] sm:$0xff] %v2527
        %2656 = vst [vmem:[#allocation2 + $0x2b8] sm:$0xff] %v2528
        %2657 = vst [vmem:[#allocation2 + $0x2c0] sm:$0xff] %v2529
        %2658 = vst [vmem:[#allocation2 + $0x2c8] sm:$0xff] %v2530
        %2659 = vst [vmem:[#allocation2 + $0x2d0] sm:$0xff] %v2531
        %2660 = vst [vmem:[#allocation2 + $0x2d8] sm:$0xff] %v2532
        %2661 = vst [vmem:[#allocation2 + $0x2e0] sm:$0xff] %v2533
        %2662 = vst [vmem:[#allocation2 + $0x2e8] sm:$0xff] %v2534
        %2663 = vst [vmem:[#allocation2 + $0x2f0] sm:$0xff] %v2535
        %2664 = vst [vmem:[#allocation2 + $0x2f8] sm:$0xff] %v2536
        %2665 = vst [vmem:[#allocation2 + $0x300] sm:$0xff] %v2537
        %2666 = vst [vmem:[#allocation2 + $0x308] sm:$0xff] %v2538
        %2667 = vst [vmem:[#allocation2 + $0x310] sm:$0xff] %v2539
        %2668 = vst [vmem:[#allocation2 + $0x318] sm:$0xff] %v2540
        %2669 = vst [vmem:[#allocation2 + $0x320] sm:$0xff] %v2541
        %2670 = vst [vmem:[#allocation2 + $0x328] sm:$0xff] %v2542
        %2671 = vst [vmem:[#allocation2 + $0x330] sm:$0xff] %v2543
        %2672 = vst [vmem:[#allocation2 + $0x338] sm:$0xff] %v2544
        %2673 = vst [vmem:[#allocation2 + $0x340] sm:$0xff] %v2545
        %2674 = vst [vmem:[#allocation2 + $0x348] sm:$0xff] %v2546
        %2675 = vst [vmem:[#allocation2 + $0x350] sm:$0xff] %v2547
        %2676 = vst [vmem:[#allocation2 + $0x358] sm:$0xff] %v2548
        %2677 = vst [vmem:[#allocation2 + $0x360] sm:$0xff] %v2549
        %2678 = vst [vmem:[#allocation2 + $0x368] sm:$0xff] %v2550
        %2679 = vst [vmem:[#allocation2 + $0x370] sm:$0xff] %v2551
        %2680 = vst [vmem:[#allocation2 + $0x378] sm:$0xff] %v2552
        %2681 = vst [vmem:[#allocation2 + $0x380] sm:$0xff] %v2553
        %2682 = vst [vmem:[#allocation2 + $0x388] sm:$0xff] %v2554
        %2683 = vst [vmem:[#allocation2 + $0x390] sm:$0xff] %v2555
        %2684 = vst [vmem:[#allocation2 + $0x398] sm:$0xff] %v2556
        %2685 = vst [vmem:[#allocation2 + $0x3a0] sm:$0xff] %v2557
        %2686 = vst [vmem:[#allocation2 + $0x3a8] sm:$0xff] %v2558
        %2687 = vst [vmem:[#allocation2 + $0x3b0] sm:$0xff] %v2559
        %2688 = vst [vmem:[#allocation2 + $0x3b8] sm:$0xff] %v2560
        %2689 = vst [vmem:[#allocation2 + $0x3c0] sm:$0xff] %v2561
        %2690 = vst [vmem:[#allocation2 + $0x3c8] sm:$0xff] %v2562
        %2691 = vst [vmem:[#allocation2 + $0x3d0] sm:$0xff] %v2563
        %2692 = vst [vmem:[#allocation2 + $0x3d8] sm:$0xff] %v2564
        %2693 = vst [vmem:[#allocation2 + $0x3e0] sm:$0xff] %v2565
        %2694 = vst [vmem:[#allocation2 + $0x3e8] sm:$0xff] %v2566
        %2695 = vst [vmem:[#allocation2 + $0x3f0] sm:$0xff] %v2567
        %2696 = vst [vmem:[#allocation2 + $0x3f8] sm:$0xff] %v2568
        // Predicated region
        $region57: #{tpu_custom_call.1} parent=35 // pred_check
          %p2697 = pneg %p323
        $region58: #{tpu_custom_call.1} parent=35 // pred_check_branch
          %2699 = sbr.rel (%p2697) target = $region60
        $region59: #{tpu_custom_call.1} parent=35 // pred_region
          %v2700 = vld [vmem:[#allocation2] sm:$0xff]
          %v2701 = vld [vmem:[#allocation2 + $0x8] sm:$0xff]
          %v2702 = vld [vmem:[#allocation2 + $0x10] sm:$0xff]
          %v2703 = vld [vmem:[#allocation2 + $0x18] sm:$0xff]
          %v2704 = vld [vmem:[#allocation2 + $0x20] sm:$0xff]
          %v2705 = vld [vmem:[#allocation2 + $0x28] sm:$0xff]
          %v2706 = vld [vmem:[#allocation2 + $0x30] sm:$0xff]
          %v2707 = vld [vmem:[#allocation2 + $0x38] sm:$0xff]
          %v2708 = vld [vmem:[#allocation2 + $0x40] sm:$0xff]
          %v2709 = vld [vmem:[#allocation2 + $0x48] sm:$0xff]
          %v2710 = vld [vmem:[#allocation2 + $0x50] sm:$0xff]
          %v2711 = vld [vmem:[#allocation2 + $0x58] sm:$0xff]
          %v2712 = vld [vmem:[#allocation2 + $0x60] sm:$0xff]
          %v2713 = vld [vmem:[#allocation2 + $0x68] sm:$0xff]
          %v2714 = vld [vmem:[#allocation2 + $0x70] sm:$0xff]
          %v2715 = vld [vmem:[#allocation2 + $0x78] sm:$0xff]
          %v2716 = vld [vmem:[#allocation2 + $0x80] sm:$0xff]
          %v2717 = vld [vmem:[#allocation2 + $0x88] sm:$0xff]
          %v2718 = vld [vmem:[#allocation2 + $0x90] sm:$0xff]
          %v2719 = vld [vmem:[#allocation2 + $0x98] sm:$0xff]
          %v2720 = vld [vmem:[#allocation2 + $0xa0] sm:$0xff]
          %v2721 = vld [vmem:[#allocation2 + $0xa8] sm:$0xff]
          %v2722 = vld [vmem:[#allocation2 + $0xb0] sm:$0xff]
          %v2723 = vld [vmem:[#allocation2 + $0xb8] sm:$0xff]
          %v2724 = vld [vmem:[#allocation2 + $0xc0] sm:$0xff]
          %v2725 = vld [vmem:[#allocation2 + $0xc8] sm:$0xff]
          %v2726 = vld [vmem:[#allocation2 + $0xd0] sm:$0xff]
          %v2727 = vld [vmem:[#allocation2 + $0xd8] sm:$0xff]
          %v2728 = vld [vmem:[#allocation2 + $0xe0] sm:$0xff]
          %v2729 = vld [vmem:[#allocation2 + $0xe8] sm:$0xff]
          %v2730 = vld [vmem:[#allocation2 + $0xf0] sm:$0xff]
          %v2731 = vld [vmem:[#allocation2 + $0xf8] sm:$0xff]
          %v2732 = vld [vmem:[#allocation2 + $0x100] sm:$0xff]
          %v2733 = vld [vmem:[#allocation2 + $0x108] sm:$0xff]
          %v2734 = vld [vmem:[#allocation2 + $0x110] sm:$0xff]
          %v2735 = vld [vmem:[#allocation2 + $0x118] sm:$0xff]
          %v2736 = vld [vmem:[#allocation2 + $0x120] sm:$0xff]
          %v2737 = vld [vmem:[#allocation2 + $0x128] sm:$0xff]
          %v2738 = vld [vmem:[#allocation2 + $0x130] sm:$0xff]
          %v2739 = vld [vmem:[#allocation2 + $0x138] sm:$0xff]
          %v2740 = vld [vmem:[#allocation2 + $0x140] sm:$0xff]
          %v2741 = vld [vmem:[#allocation2 + $0x148] sm:$0xff]
          %v2742 = vld [vmem:[#allocation2 + $0x150] sm:$0xff]
          %v2743 = vld [vmem:[#allocation2 + $0x158] sm:$0xff]
          %v2744 = vld [vmem:[#allocation2 + $0x160] sm:$0xff]
          %v2745 = vld [vmem:[#allocation2 + $0x168] sm:$0xff]
          %v2746 = vld [vmem:[#allocation2 + $0x170] sm:$0xff]
          %v2747 = vld [vmem:[#allocation2 + $0x178] sm:$0xff]
          %v2748 = vld [vmem:[#allocation2 + $0x180] sm:$0xff]
          %v2749 = vld [vmem:[#allocation2 + $0x188] sm:$0xff]
          %v2750 = vld [vmem:[#allocation2 + $0x190] sm:$0xff]
          %v2751 = vld [vmem:[#allocation2 + $0x198] sm:$0xff]
          %v2752 = vld [vmem:[#allocation2 + $0x1a0] sm:$0xff]
          %v2753 = vld [vmem:[#allocation2 + $0x1a8] sm:$0xff]
          %v2754 = vld [vmem:[#allocation2 + $0x1b0] sm:$0xff]
          %v2755 = vld [vmem:[#allocation2 + $0x1b8] sm:$0xff]
          %v2756 = vld [vmem:[#allocation2 + $0x1c0] sm:$0xff]
          %v2757 = vld [vmem:[#allocation2 + $0x1c8] sm:$0xff]
          %v2758 = vld [vmem:[#allocation2 + $0x1d0] sm:$0xff]
          %v2759 = vld [vmem:[#allocation2 + $0x1d8] sm:$0xff]
          %v2760 = vld [vmem:[#allocation2 + $0x1e0] sm:$0xff]
          %v2761 = vld [vmem:[#allocation2 + $0x1e8] sm:$0xff]
          %v2762 = vld [vmem:[#allocation2 + $0x1f0] sm:$0xff]
          %v2763 = vld [vmem:[#allocation2 + $0x1f8] sm:$0xff]
          %v2764 = vld [vmem:[#allocation2 + $0x200] sm:$0xff]
          %v2765 = vld [vmem:[#allocation2 + $0x208] sm:$0xff]
          %v2766 = vld [vmem:[#allocation2 + $0x210] sm:$0xff]
          %v2767 = vld [vmem:[#allocation2 + $0x218] sm:$0xff]
          %v2768 = vld [vmem:[#allocation2 + $0x220] sm:$0xff]
          %v2769 = vld [vmem:[#allocation2 + $0x228] sm:$0xff]
          %v2770 = vld [vmem:[#allocation2 + $0x230] sm:$0xff]
          %v2771 = vld [vmem:[#allocation2 + $0x238] sm:$0xff]
          %v2772 = vld [vmem:[#allocation2 + $0x240] sm:$0xff]
          %v2773 = vld [vmem:[#allocation2 + $0x248] sm:$0xff]
          %v2774 = vld [vmem:[#allocation2 + $0x250] sm:$0xff]
          %v2775 = vld [vmem:[#allocation2 + $0x258] sm:$0xff]
          %v2776 = vld [vmem:[#allocation2 + $0x260] sm:$0xff]
          %v2777 = vld [vmem:[#allocation2 + $0x268] sm:$0xff]
          %v2778 = vld [vmem:[#allocation2 + $0x270] sm:$0xff]
          %v2779 = vld [vmem:[#allocation2 + $0x278] sm:$0xff]
          %v2780 = vld [vmem:[#allocation2 + $0x280] sm:$0xff]
          %v2781 = vld [vmem:[#allocation2 + $0x288] sm:$0xff]
          %v2782 = vld [vmem:[#allocation2 + $0x290] sm:$0xff]
          %v2783 = vld [vmem:[#allocation2 + $0x298] sm:$0xff]
          %v2784 = vld [vmem:[#allocation2 + $0x2a0] sm:$0xff]
          %v2785 = vld [vmem:[#allocation2 + $0x2a8] sm:$0xff]
          %v2786 = vld [vmem:[#allocation2 + $0x2b0] sm:$0xff]
          %v2787 = vld [vmem:[#allocation2 + $0x2b8] sm:$0xff]
          %v2788 = vld [vmem:[#allocation2 + $0x2c0] sm:$0xff]
          %v2789 = vld [vmem:[#allocation2 + $0x2c8] sm:$0xff]
          %v2790 = vld [vmem:[#allocation2 + $0x2d0] sm:$0xff]
          %v2791 = vld [vmem:[#allocation2 + $0x2d8] sm:$0xff]
          %v2792 = vld [vmem:[#allocation2 + $0x2e0] sm:$0xff]
          %v2793 = vld [vmem:[#allocation2 + $0x2e8] sm:$0xff]
          %v2794 = vld [vmem:[#allocation2 + $0x2f0] sm:$0xff]
          %v2795 = vld [vmem:[#allocation2 + $0x2f8] sm:$0xff]
          %v2796 = vld [vmem:[#allocation2 + $0x300] sm:$0xff]
          %v2797 = vld [vmem:[#allocation2 + $0x308] sm:$0xff]
          %v2798 = vld [vmem:[#allocation2 + $0x310] sm:$0xff]
          %v2799 = vld [vmem:[#allocation2 + $0x318] sm:$0xff]
          %v2800 = vld [vmem:[#allocation2 + $0x320] sm:$0xff]
          %v2801 = vld [vmem:[#allocation2 + $0x328] sm:$0xff]
          %v2802 = vld [vmem:[#allocation2 + $0x330] sm:$0xff]
          %v2803 = vld [vmem:[#allocation2 + $0x338] sm:$0xff]
          %v2804 = vld [vmem:[#allocation2 + $0x340] sm:$0xff]
          %v2805 = vld [vmem:[#allocation2 + $0x348] sm:$0xff]
          %v2806 = vld [vmem:[#allocation2 + $0x350] sm:$0xff]
          %v2807 = vld [vmem:[#allocation2 + $0x358] sm:$0xff]
          %v2808 = vld [vmem:[#allocation2 + $0x360] sm:$0xff]
          %v2809 = vld [vmem:[#allocation2 + $0x368] sm:$0xff]
          %v2810 = vld [vmem:[#allocation2 + $0x370] sm:$0xff]
          %v2811 = vld [vmem:[#allocation2 + $0x378] sm:$0xff]
          %v2812 = vld [vmem:[#allocation2 + $0x380] sm:$0xff]
          %v2813 = vld [vmem:[#allocation2 + $0x388] sm:$0xff]
          %v2814 = vld [vmem:[#allocation2 + $0x390] sm:$0xff]
          %v2815 = vld [vmem:[#allocation2 + $0x398] sm:$0xff]
          %v2816 = vld [vmem:[#allocation2 + $0x3a0] sm:$0xff]
          %v2817 = vld [vmem:[#allocation2 + $0x3a8] sm:$0xff]
          %v2818 = vld [vmem:[#allocation2 + $0x3b0] sm:$0xff]
          %v2819 = vld [vmem:[#allocation2 + $0x3b8] sm:$0xff]
          %v2820 = vld [vmem:[#allocation2 + $0x3c0] sm:$0xff]
          %v2821 = vld [vmem:[#allocation2 + $0x3c8] sm:$0xff]
          %v2822 = vld [vmem:[#allocation2 + $0x3d0] sm:$0xff]
          %v2823 = vld [vmem:[#allocation2 + $0x3d8] sm:$0xff]
          %v2824 = vld [vmem:[#allocation2 + $0x3e0] sm:$0xff]
          %v2825 = vld [vmem:[#allocation2 + $0x3e8] sm:$0xff]
          %v2826 = vld [vmem:[#allocation2 + $0x3f0] sm:$0xff]
          %v2827 = vld [vmem:[#allocation2 + $0x3f8] sm:$0xff]
          %v2828 = vld [vmem:[#allocation8] sm:$0xff]
          %v2829 = vld [vmem:[#allocation8 + $0x8] sm:$0xff]
          %v2830 = vld [vmem:[#allocation8 + $0x10] sm:$0xff]
          %v2831 = vld [vmem:[#allocation8 + $0x18] sm:$0xff]
          %v2832 = vld [vmem:[#allocation8 + $0x20] sm:$0xff]
          %v2833 = vld [vmem:[#allocation8 + $0x28] sm:$0xff]
          %v2834 = vld [vmem:[#allocation8 + $0x30] sm:$0xff]
          %v2835 = vld [vmem:[#allocation8 + $0x38] sm:$0xff]
          %v2836 = vld [vmem:[#allocation8 + $0x40] sm:$0xff]
          %v2837 = vld [vmem:[#allocation8 + $0x48] sm:$0xff]
          %v2838 = vld [vmem:[#allocation8 + $0x50] sm:$0xff]
          %v2839 = vld [vmem:[#allocation8 + $0x58] sm:$0xff]
          %v2840 = vld [vmem:[#allocation8 + $0x60] sm:$0xff]
          %v2841 = vld [vmem:[#allocation8 + $0x68] sm:$0xff]
          %v2842 = vld [vmem:[#allocation8 + $0x70] sm:$0xff]
          %v2843 = vld [vmem:[#allocation8 + $0x78] sm:$0xff]
          %v2844 = vld [vmem:[#allocation8 + $0x80] sm:$0xff]
          %v2845 = vld [vmem:[#allocation8 + $0x88] sm:$0xff]
          %v2846 = vld [vmem:[#allocation8 + $0x90] sm:$0xff]
          %v2847 = vld [vmem:[#allocation8 + $0x98] sm:$0xff]
          %v2848 = vld [vmem:[#allocation8 + $0xa0] sm:$0xff]
          %v2849 = vld [vmem:[#allocation8 + $0xa8] sm:$0xff]
          %v2850 = vld [vmem:[#allocation8 + $0xb0] sm:$0xff]
          %v2851 = vld [vmem:[#allocation8 + $0xb8] sm:$0xff]
          %v2852 = vld [vmem:[#allocation8 + $0xc0] sm:$0xff]
          %v2853 = vld [vmem:[#allocation8 + $0xc8] sm:$0xff]
          %v2854 = vld [vmem:[#allocation8 + $0xd0] sm:$0xff]
          %v2855 = vld [vmem:[#allocation8 + $0xd8] sm:$0xff]
          %v2856 = vld [vmem:[#allocation8 + $0xe0] sm:$0xff]
          %v2857 = vld [vmem:[#allocation8 + $0xe8] sm:$0xff]
          %v2858 = vld [vmem:[#allocation8 + $0xf0] sm:$0xff]
          %v2859 = vld [vmem:[#allocation8 + $0xf8] sm:$0xff]
          %v2860 = vld [vmem:[#allocation8 + $0x100] sm:$0xff]
          %v2861 = vld [vmem:[#allocation8 + $0x108] sm:$0xff]
          %v2862 = vld [vmem:[#allocation8 + $0x110] sm:$0xff]
          %v2863 = vld [vmem:[#allocation8 + $0x118] sm:$0xff]
          %v2864 = vld [vmem:[#allocation8 + $0x120] sm:$0xff]
          %v2865 = vld [vmem:[#allocation8 + $0x128] sm:$0xff]
          %v2866 = vld [vmem:[#allocation8 + $0x130] sm:$0xff]
          %v2867 = vld [vmem:[#allocation8 + $0x138] sm:$0xff]
          %v2868 = vld [vmem:[#allocation8 + $0x140] sm:$0xff]
          %v2869 = vld [vmem:[#allocation8 + $0x148] sm:$0xff]
          %v2870 = vld [vmem:[#allocation8 + $0x150] sm:$0xff]
          %v2871 = vld [vmem:[#allocation8 + $0x158] sm:$0xff]
          %v2872 = vld [vmem:[#allocation8 + $0x160] sm:$0xff]
          %v2873 = vld [vmem:[#allocation8 + $0x168] sm:$0xff]
          %v2874 = vld [vmem:[#allocation8 + $0x170] sm:$0xff]
          %v2875 = vld [vmem:[#allocation8 + $0x178] sm:$0xff]
          %v2876 = vld [vmem:[#allocation8 + $0x180] sm:$0xff]
          %v2877 = vld [vmem:[#allocation8 + $0x188] sm:$0xff]
          %v2878 = vld [vmem:[#allocation8 + $0x190] sm:$0xff]
          %v2879 = vld [vmem:[#allocation8 + $0x198] sm:$0xff]
          %v2880 = vld [vmem:[#allocation8 + $0x1a0] sm:$0xff]
          %v2881 = vld [vmem:[#allocation8 + $0x1a8] sm:$0xff]
          %v2882 = vld [vmem:[#allocation8 + $0x1b0] sm:$0xff]
          %v2883 = vld [vmem:[#allocation8 + $0x1b8] sm:$0xff]
          %v2884 = vld [vmem:[#allocation8 + $0x1c0] sm:$0xff]
          %v2885 = vld [vmem:[#allocation8 + $0x1c8] sm:$0xff]
          %v2886 = vld [vmem:[#allocation8 + $0x1d0] sm:$0xff]
          %v2887 = vld [vmem:[#allocation8 + $0x1d8] sm:$0xff]
          %v2888 = vld [vmem:[#allocation8 + $0x1e0] sm:$0xff]
          %v2889 = vld [vmem:[#allocation8 + $0x1e8] sm:$0xff]
          %v2890 = vld [vmem:[#allocation8 + $0x1f0] sm:$0xff]
          %v2891 = vld [vmem:[#allocation8 + $0x1f8] sm:$0xff]
          %v2892 = vld [vmem:[#allocation9] sm:$0xff]
          %v2893 = vld [vmem:[#allocation9 + $0x8] sm:$0xff]
          %v2894 = vld [vmem:[#allocation9 + $0x10] sm:$0xff]
          %v2895 = vld [vmem:[#allocation9 + $0x18] sm:$0xff]
          %v2896 = vld [vmem:[#allocation9 + $0x20] sm:$0xff]
          %v2897 = vld [vmem:[#allocation9 + $0x28] sm:$0xff]
          %v2898 = vld [vmem:[#allocation9 + $0x30] sm:$0xff]
          %v2899 = vld [vmem:[#allocation9 + $0x38] sm:$0xff]
          %v2900 = vld [vmem:[#allocation9 + $0x40] sm:$0xff]
          %v2901 = vld [vmem:[#allocation9 + $0x48] sm:$0xff]
          %v2902 = vld [vmem:[#allocation9 + $0x50] sm:$0xff]
          %v2903 = vld [vmem:[#allocation9 + $0x58] sm:$0xff]
          %v2904 = vld [vmem:[#allocation9 + $0x60] sm:$0xff]
          %v2905 = vld [vmem:[#allocation9 + $0x68] sm:$0xff]
          %v2906 = vld [vmem:[#allocation9 + $0x70] sm:$0xff]
          %v2907 = vld [vmem:[#allocation9 + $0x78] sm:$0xff]
          %v2908 = vld [vmem:[#allocation9 + $0x80] sm:$0xff]
          %v2909 = vld [vmem:[#allocation9 + $0x88] sm:$0xff]
          %v2910 = vld [vmem:[#allocation9 + $0x90] sm:$0xff]
          %v2911 = vld [vmem:[#allocation9 + $0x98] sm:$0xff]
          %v2912 = vld [vmem:[#allocation9 + $0xa0] sm:$0xff]
          %v2913 = vld [vmem:[#allocation9 + $0xa8] sm:$0xff]
          %v2914 = vld [vmem:[#allocation9 + $0xb0] sm:$0xff]
          %v2915 = vld [vmem:[#allocation9 + $0xb8] sm:$0xff]
          %v2916 = vld [vmem:[#allocation9 + $0xc0] sm:$0xff]
          %v2917 = vld [vmem:[#allocation9 + $0xc8] sm:$0xff]
          %v2918 = vld [vmem:[#allocation9 + $0xd0] sm:$0xff]
          %v2919 = vld [vmem:[#allocation9 + $0xd8] sm:$0xff]
          %v2920 = vld [vmem:[#allocation9 + $0xe0] sm:$0xff]
          %v2921 = vld [vmem:[#allocation9 + $0xe8] sm:$0xff]
          %v2922 = vld [vmem:[#allocation9 + $0xf0] sm:$0xff]
          %v2923 = vld [vmem:[#allocation9 + $0xf8] sm:$0xff]
          %v2924 = vld [vmem:[#allocation9 + $0x100] sm:$0xff]
          %v2925 = vld [vmem:[#allocation9 + $0x108] sm:$0xff]
          %v2926 = vld [vmem:[#allocation9 + $0x110] sm:$0xff]
          %v2927 = vld [vmem:[#allocation9 + $0x118] sm:$0xff]
          %v2928 = vld [vmem:[#allocation9 + $0x120] sm:$0xff]
          %v2929 = vld [vmem:[#allocation9 + $0x128] sm:$0xff]
          %v2930 = vld [vmem:[#allocation9 + $0x130] sm:$0xff]
          %v2931 = vld [vmem:[#allocation9 + $0x138] sm:$0xff]
          %v2932 = vld [vmem:[#allocation9 + $0x140] sm:$0xff]
          %v2933 = vld [vmem:[#allocation9 + $0x148] sm:$0xff]
          %v2934 = vld [vmem:[#allocation9 + $0x150] sm:$0xff]
          %v2935 = vld [vmem:[#allocation9 + $0x158] sm:$0xff]
          %v2936 = vld [vmem:[#allocation9 + $0x160] sm:$0xff]
          %v2937 = vld [vmem:[#allocation9 + $0x168] sm:$0xff]
          %v2938 = vld [vmem:[#allocation9 + $0x170] sm:$0xff]
          %v2939 = vld [vmem:[#allocation9 + $0x178] sm:$0xff]
          %v2940 = vld [vmem:[#allocation9 + $0x180] sm:$0xff]
          %v2941 = vld [vmem:[#allocation9 + $0x188] sm:$0xff]
          %v2942 = vld [vmem:[#allocation9 + $0x190] sm:$0xff]
          %v2943 = vld [vmem:[#allocation9 + $0x198] sm:$0xff]
          %v2944 = vld [vmem:[#allocation9 + $0x1a0] sm:$0xff]
          %v2945 = vld [vmem:[#allocation9 + $0x1a8] sm:$0xff]
          %v2946 = vld [vmem:[#allocation9 + $0x1b0] sm:$0xff]
          %v2947 = vld [vmem:[#allocation9 + $0x1b8] sm:$0xff]
          %v2948 = vld [vmem:[#allocation9 + $0x1c0] sm:$0xff]
          %v2949 = vld [vmem:[#allocation9 + $0x1c8] sm:$0xff]
          %v2950 = vld [vmem:[#allocation9 + $0x1d0] sm:$0xff]
          %v2951 = vld [vmem:[#allocation9 + $0x1d8] sm:$0xff]
          %v2952 = vld [vmem:[#allocation9 + $0x1e0] sm:$0xff]
          %v2953 = vld [vmem:[#allocation9 + $0x1e8] sm:$0xff]
          %v2954 = vld [vmem:[#allocation9 + $0x1f0] sm:$0xff]
          %v2955 = vld [vmem:[#allocation9 + $0x1f8] sm:$0xff]
          %2956 = vrot.lane.b32.xlu0 %v2700, 64
          %v2957 = vpop.permute.xlu0 %2956
          %2958 = vrot.lane.b32.xlu0 %v2702, 64
          %v2959 = vpop.permute.xlu0 %2958
          %2960 = vrot.lane.b32.xlu0 %v2704, 64
          %v2961 = vpop.permute.xlu0 %2960
          %2962 = vrot.lane.b32.xlu0 %v2706, 64
          %v2963 = vpop.permute.xlu0 %2962
          %2964 = vrot.lane.b32.xlu0 %v2708, 64
          %v2965 = vpop.permute.xlu0 %2964
          %2966 = vrot.lane.b32.xlu0 %v2710, 64
          %v2967 = vpop.permute.xlu0 %2966
          %2968 = vrot.lane.b32.xlu0 %v2712, 64
          %v2969 = vpop.permute.xlu0 %2968
          %2970 = vrot.lane.b32.xlu0 %v2714, 64
          %v2971 = vpop.permute.xlu0 %2970
          %2972 = vrot.lane.b32.xlu0 %v2716, 64
          %v2973 = vpop.permute.xlu0 %2972
          %2974 = vrot.lane.b32.xlu0 %v2718, 64
          %v2975 = vpop.permute.xlu0 %2974
          %2976 = vrot.lane.b32.xlu0 %v2720, 64
          %v2977 = vpop.permute.xlu0 %2976
          %2978 = vrot.lane.b32.xlu0 %v2722, 64
          %v2979 = vpop.permute.xlu0 %2978
          %2980 = vrot.lane.b32.xlu0 %v2724, 64
          %v2981 = vpop.permute.xlu0 %2980
          %2982 = vrot.lane.b32.xlu0 %v2726, 64
          %v2983 = vpop.permute.xlu0 %2982
          %2984 = vrot.lane.b32.xlu0 %v2728, 64
          %v2985 = vpop.permute.xlu0 %2984
          %2986 = vrot.lane.b32.xlu0 %v2730, 64
          %v2987 = vpop.permute.xlu0 %2986
          %2988 = vrot.lane.b32.xlu0 %v2732, 64
          %v2989 = vpop.permute.xlu0 %2988
          %2990 = vrot.lane.b32.xlu0 %v2734, 64
          %v2991 = vpop.permute.xlu0 %2990
          %2992 = vrot.lane.b32.xlu0 %v2736, 64
          %v2993 = vpop.permute.xlu0 %2992
          %2994 = vrot.lane.b32.xlu0 %v2738, 64
          %v2995 = vpop.permute.xlu0 %2994
          %2996 = vrot.lane.b32.xlu0 %v2740, 64
          %v2997 = vpop.permute.xlu0 %2996
          %2998 = vrot.lane.b32.xlu0 %v2742, 64
          %v2999 = vpop.permute.xlu0 %2998
          %3000 = vrot.lane.b32.xlu0 %v2744, 64
          %v3001 = vpop.permute.xlu0 %3000
          %3002 = vrot.lane.b32.xlu0 %v2746, 64
          %v3003 = vpop.permute.xlu0 %3002
          %3004 = vrot.lane.b32.xlu0 %v2748, 64
          %v3005 = vpop.permute.xlu0 %3004
          %3006 = vrot.lane.b32.xlu0 %v2750, 64
          %v3007 = vpop.permute.xlu0 %3006
          %3008 = vrot.lane.b32.xlu0 %v2752, 64
          %v3009 = vpop.permute.xlu0 %3008
          %3010 = vrot.lane.b32.xlu0 %v2754, 64
          %v3011 = vpop.permute.xlu0 %3010
          %3012 = vrot.lane.b32.xlu0 %v2756, 64
          %v3013 = vpop.permute.xlu0 %3012
          %3014 = vrot.lane.b32.xlu0 %v2758, 64
          %v3015 = vpop.permute.xlu0 %3014
          %3016 = vrot.lane.b32.xlu0 %v2760, 64
          %v3017 = vpop.permute.xlu0 %3016
          %3018 = vrot.lane.b32.xlu0 %v2762, 64
          %v3019 = vpop.permute.xlu0 %3018
          %3020 = vrot.lane.b32.xlu0 %v2764, 64
          %v3021 = vpop.permute.xlu0 %3020
          %3022 = vrot.lane.b32.xlu0 %v2766, 64
          %v3023 = vpop.permute.xlu0 %3022
          %3024 = vrot.lane.b32.xlu0 %v2768, 64
          %v3025 = vpop.permute.xlu0 %3024
          %3026 = vrot.lane.b32.xlu0 %v2770, 64
          %v3027 = vpop.permute.xlu0 %3026
          %3028 = vrot.lane.b32.xlu0 %v2772, 64
          %v3029 = vpop.permute.xlu0 %3028
          %3030 = vrot.lane.b32.xlu0 %v2774, 64
          %v3031 = vpop.permute.xlu0 %3030
          %3032 = vrot.lane.b32.xlu0 %v2776, 64
          %v3033 = vpop.permute.xlu0 %3032
          %3034 = vrot.lane.b32.xlu0 %v2778, 64
          %v3035 = vpop.permute.xlu0 %3034
          %3036 = vrot.lane.b32.xlu0 %v2780, 64
          %v3037 = vpop.permute.xlu0 %3036
          %3038 = vrot.lane.b32.xlu0 %v2782, 64
          %v3039 = vpop.permute.xlu0 %3038
          %3040 = vrot.lane.b32.xlu0 %v2784, 64
          %v3041 = vpop.permute.xlu0 %3040
          %3042 = vrot.lane.b32.xlu0 %v2786, 64
          %v3043 = vpop.permute.xlu0 %3042
          %3044 = vrot.lane.b32.xlu0 %v2788, 64
          %v3045 = vpop.permute.xlu0 %3044
          %3046 = vrot.lane.b32.xlu0 %v2790, 64
          %v3047 = vpop.permute.xlu0 %3046
          %3048 = vrot.lane.b32.xlu0 %v2792, 64
          %v3049 = vpop.permute.xlu0 %3048
          %3050 = vrot.lane.b32.xlu0 %v2794, 64
          %v3051 = vpop.permute.xlu0 %3050
          %3052 = vrot.lane.b32.xlu0 %v2796, 64
          %v3053 = vpop.permute.xlu0 %3052
          %3054 = vrot.lane.b32.xlu0 %v2798, 64
          %v3055 = vpop.permute.xlu0 %3054
          %3056 = vrot.lane.b32.xlu0 %v2800, 64
          %v3057 = vpop.permute.xlu0 %3056
          %3058 = vrot.lane.b32.xlu0 %v2802, 64
          %v3059 = vpop.permute.xlu0 %3058
          %3060 = vrot.lane.b32.xlu0 %v2804, 64
          %v3061 = vpop.permute.xlu0 %3060
          %3062 = vrot.lane.b32.xlu0 %v2806, 64
          %v3063 = vpop.permute.xlu0 %3062
          %3064 = vrot.lane.b32.xlu0 %v2808, 64
          %v3065 = vpop.permute.xlu0 %3064
          %3066 = vrot.lane.b32.xlu0 %v2810, 64
          %v3067 = vpop.permute.xlu0 %3066
          %3068 = vrot.lane.b32.xlu0 %v2812, 64
          %v3069 = vpop.permute.xlu0 %3068
          %3070 = vrot.lane.b32.xlu0 %v2814, 64
          %v3071 = vpop.permute.xlu0 %3070
          %3072 = vrot.lane.b32.xlu0 %v2816, 64
          %v3073 = vpop.permute.xlu0 %3072
          %3074 = vrot.lane.b32.xlu0 %v2818, 64
          %v3075 = vpop.permute.xlu0 %3074
          %3076 = vrot.lane.b32.xlu0 %v2820, 64
          %v3077 = vpop.permute.xlu0 %3076
          %3078 = vrot.lane.b32.xlu0 %v2822, 64
          %v3079 = vpop.permute.xlu0 %3078
          %3080 = vrot.lane.b32.xlu0 %v2824, 64
          %v3081 = vpop.permute.xlu0 %3080
          %3082 = vrot.lane.b32.xlu0 %v2826, 64
          %v3083 = vpop.permute.xlu0 %3082
          %v3084 = vmul.f32 %v2700, %v2828
          %v3085 = vmul.f32 %v2702, %v2829
          %v3086 = vmul.f32 %v2704, %v2830
          %v3087 = vmul.f32 %v2706, %v2831
          %v3088 = vmul.f32 %v2708, %v2832
          %v3089 = vmul.f32 %v2710, %v2833
          %v3090 = vmul.f32 %v2712, %v2834
          %v3091 = vmul.f32 %v2714, %v2835
          %v3092 = vmul.f32 %v2716, %v2836
          %v3093 = vmul.f32 %v2718, %v2837
          %v3094 = vmul.f32 %v2720, %v2838
          %v3095 = vmul.f32 %v2722, %v2839
          %v3096 = vmul.f32 %v2724, %v2840
          %v3097 = vmul.f32 %v2726, %v2841
          %v3098 = vmul.f32 %v2728, %v2842
          %v3099 = vmul.f32 %v2730, %v2843
          %v3100 = vmul.f32 %v2732, %v2844
          %v3101 = vmul.f32 %v2734, %v2845
          %v3102 = vmul.f32 %v2736, %v2846
          %v3103 = vmul.f32 %v2738, %v2847
          %v3104 = vmul.f32 %v2740, %v2848
          %v3105 = vmul.f32 %v2742, %v2849
          %v3106 = vmul.f32 %v2744, %v2850
          %v3107 = vmul.f32 %v2746, %v2851
          %v3108 = vmul.f32 %v2748, %v2852
          %v3109 = vmul.f32 %v2750, %v2853
          %v3110 = vmul.f32 %v2752, %v2854
          %v3111 = vmul.f32 %v2754, %v2855
          %v3112 = vmul.f32 %v2756, %v2856
          %v3113 = vmul.f32 %v2758, %v2857
          %v3114 = vmul.f32 %v2760, %v2858
          %v3115 = vmul.f32 %v2762, %v2859
          %v3116 = vmul.f32 %v2764, %v2860
          %v3117 = vmul.f32 %v2766, %v2861
          %v3118 = vmul.f32 %v2768, %v2862
          %v3119 = vmul.f32 %v2770, %v2863
          %v3120 = vmul.f32 %v2772, %v2864
          %v3121 = vmul.f32 %v2774, %v2865
          %v3122 = vmul.f32 %v2776, %v2866
          %v3123 = vmul.f32 %v2778, %v2867
          %v3124 = vmul.f32 %v2780, %v2868
          %v3125 = vmul.f32 %v2782, %v2869
          %v3126 = vmul.f32 %v2784, %v2870
          %v3127 = vmul.f32 %v2786, %v2871
          %v3128 = vmul.f32 %v2788, %v2872
          %v3129 = vmul.f32 %v2790, %v2873
          %v3130 = vmul.f32 %v2792, %v2874
          %v3131 = vmul.f32 %v2794, %v2875
          %v3132 = vmul.f32 %v2796, %v2876
          %v3133 = vmul.f32 %v2798, %v2877
          %v3134 = vmul.f32 %v2800, %v2878
          %v3135 = vmul.f32 %v2802, %v2879
          %v3136 = vmul.f32 %v2804, %v2880
          %v3137 = vmul.f32 %v2806, %v2881
          %v3138 = vmul.f32 %v2808, %v2882
          %v3139 = vmul.f32 %v2810, %v2883
          %v3140 = vmul.f32 %v2812, %v2884
          %v3141 = vmul.f32 %v2814, %v2885
          %v3142 = vmul.f32 %v2816, %v2886
          %v3143 = vmul.f32 %v2818, %v2887
          %v3144 = vmul.f32 %v2820, %v2888
          %v3145 = vmul.f32 %v2822, %v2889
          %v3146 = vmul.f32 %v2824, %v2890
          %v3147 = vmul.f32 %v2826, %v2891
          %v3148 = vmul.f32 %v2957, %v2892
          %v3149 = vmul.f32 %v2959, %v2893
          %v3150 = vmul.f32 %v2961, %v2894
          %v3151 = vmul.f32 %v2963, %v2895
          %v3152 = vmul.f32 %v2965, %v2896
          %v3153 = vmul.f32 %v2967, %v2897
          %v3154 = vmul.f32 %v2969, %v2898
          %v3155 = vmul.f32 %v2971, %v2899
          %v3156 = vmul.f32 %v2973, %v2900
          %v3157 = vmul.f32 %v2975, %v2901
          %v3158 = vmul.f32 %v2977, %v2902
          %v3159 = vmul.f32 %v2979, %v2903
          %v3160 = vmul.f32 %v2981, %v2904
          %v3161 = vmul.f32 %v2983, %v2905
          %v3162 = vmul.f32 %v2985, %v2906
          %v3163 = vmul.f32 %v2987, %v2907
          %v3164 = vmul.f32 %v2989, %v2908
          %v3165 = vmul.f32 %v2991, %v2909
          %v3166 = vmul.f32 %v2993, %v2910
          %v3167 = vmul.f32 %v2995, %v2911
          %v3168 = vmul.f32 %v2997, %v2912
          %v3169 = vmul.f32 %v2999, %v2913
          %v3170 = vmul.f32 %v3001, %v2914
          %v3171 = vmul.f32 %v3003, %v2915
          %v3172 = vmul.f32 %v3005, %v2916
          %v3173 = vmul.f32 %v3007, %v2917
          %v3174 = vmul.f32 %v3009, %v2918
          %v3175 = vmul.f32 %v3011, %v2919
          %v3176 = vmul.f32 %v3013, %v2920
          %v3177 = vmul.f32 %v3015, %v2921
          %v3178 = vmul.f32 %v3017, %v2922
          %v3179 = vmul.f32 %v3019, %v2923
          %v3180 = vmul.f32 %v3021, %v2924
          %v3181 = vmul.f32 %v3023, %v2925
          %v3182 = vmul.f32 %v3025, %v2926
          %v3183 = vmul.f32 %v3027, %v2927
          %v3184 = vmul.f32 %v3029, %v2928
          %v3185 = vmul.f32 %v3031, %v2929
          %v3186 = vmul.f32 %v3033, %v2930
          %v3187 = vmul.f32 %v3035, %v2931
          %v3188 = vmul.f32 %v3037, %v2932
          %v3189 = vmul.f32 %v3039, %v2933
          %v3190 = vmul.f32 %v3041, %v2934
          %v3191 = vmul.f32 %v3043, %v2935
          %v3192 = vmul.f32 %v3045, %v2936
          %v3193 = vmul.f32 %v3047, %v2937
          %v3194 = vmul.f32 %v3049, %v2938
          %v3195 = vmul.f32 %v3051, %v2939
          %v3196 = vmul.f32 %v3053, %v2940
          %v3197 = vmul.f32 %v3055, %v2941
          %v3198 = vmul.f32 %v3057, %v2942
          %v3199 = vmul.f32 %v3059, %v2943
          %v3200 = vmul.f32 %v3061, %v2944
          %v3201 = vmul.f32 %v3063, %v2945
          %v3202 = vmul.f32 %v3065, %v2946
          %v3203 = vmul.f32 %v3067, %v2947
          %v3204 = vmul.f32 %v3069, %v2948
          %v3205 = vmul.f32 %v3071, %v2949
          %v3206 = vmul.f32 %v3073, %v2950
          %v3207 = vmul.f32 %v3075, %v2951
          %v3208 = vmul.f32 %v3077, %v2952
          %v3209 = vmul.f32 %v3079, %v2953
          %v3210 = vmul.f32 %v3081, %v2954
          %v3211 = vmul.f32 %v3083, %v2955
          %v3212 = vadd.f32 %v3084, %v3148
          %v3213 = vadd.f32 %v3085, %v3149
          %v3214 = vadd.f32 %v3086, %v3150
          %v3215 = vadd.f32 %v3087, %v3151
          %v3216 = vadd.f32 %v3088, %v3152
          %v3217 = vadd.f32 %v3089, %v3153
          %v3218 = vadd.f32 %v3090, %v3154
          %v3219 = vadd.f32 %v3091, %v3155
          %v3220 = vadd.f32 %v3092, %v3156
          %v3221 = vadd.f32 %v3093, %v3157
          %v3222 = vadd.f32 %v3094, %v3158
          %v3223 = vadd.f32 %v3095, %v3159
          %v3224 = vadd.f32 %v3096, %v3160
          %v3225 = vadd.f32 %v3097, %v3161
          %v3226 = vadd.f32 %v3098, %v3162
          %v3227 = vadd.f32 %v3099, %v3163
          %v3228 = vadd.f32 %v3100, %v3164
          %v3229 = vadd.f32 %v3101, %v3165
          %v3230 = vadd.f32 %v3102, %v3166
          %v3231 = vadd.f32 %v3103, %v3167
          %v3232 = vadd.f32 %v3104, %v3168
          %v3233 = vadd.f32 %v3105, %v3169
          %v3234 = vadd.f32 %v3106, %v3170
          %v3235 = vadd.f32 %v3107, %v3171
          %v3236 = vadd.f32 %v3108, %v3172
          %v3237 = vadd.f32 %v3109, %v3173
          %v3238 = vadd.f32 %v3110, %v3174
          %v3239 = vadd.f32 %v3111, %v3175
          %v3240 = vadd.f32 %v3112, %v3176
          %v3241 = vadd.f32 %v3113, %v3177
          %v3242 = vadd.f32 %v3114, %v3178
          %v3243 = vadd.f32 %v3115, %v3179
          %v3244 = vadd.f32 %v3116, %v3180
          %v3245 = vadd.f32 %v3117, %v3181
          %v3246 = vadd.f32 %v3118, %v3182
          %v3247 = vadd.f32 %v3119, %v3183
          %v3248 = vadd.f32 %v3120, %v3184
          %v3249 = vadd.f32 %v3121, %v3185
          %v3250 = vadd.f32 %v3122, %v3186
          %v3251 = vadd.f32 %v3123, %v3187
          %v3252 = vadd.f32 %v3124, %v3188
          %v3253 = vadd.f32 %v3125, %v3189
          %v3254 = vadd.f32 %v3126, %v3190
          %v3255 = vadd.f32 %v3127, %v3191
          %v3256 = vadd.f32 %v3128, %v3192
          %v3257 = vadd.f32 %v3129, %v3193
          %v3258 = vadd.f32 %v3130, %v3194
          %v3259 = vadd.f32 %v3131, %v3195
          %v3260 = vadd.f32 %v3132, %v3196
          %v3261 = vadd.f32 %v3133, %v3197
          %v3262 = vadd.f32 %v3134, %v3198
          %v3263 = vadd.f32 %v3135, %v3199
          %v3264 = vadd.f32 %v3136, %v3200
          %v3265 = vadd.f32 %v3137, %v3201
          %v3266 = vadd.f32 %v3138, %v3202
          %v3267 = vadd.f32 %v3139, %v3203
          %v3268 = vadd.f32 %v3140, %v3204
          %v3269 = vadd.f32 %v3141, %v3205
          %v3270 = vadd.f32 %v3142, %v3206
          %v3271 = vadd.f32 %v3143, %v3207
          %v3272 = vadd.f32 %v3144, %v3208
          %v3273 = vadd.f32 %v3145, %v3209
          %v3274 = vadd.f32 %v3146, %v3210
          %v3275 = vadd.f32 %v3147, %v3211
          %3276 = vrot.lane.b32.xlu0 %v2701, 64
          %v3277 = vpop.permute.xlu0 %3276
          %3278 = vrot.lane.b32.xlu0 %v2703, 64
          %v3279 = vpop.permute.xlu0 %3278
          %3280 = vrot.lane.b32.xlu0 %v2705, 64
          %v3281 = vpop.permute.xlu0 %3280
          %3282 = vrot.lane.b32.xlu0 %v2707, 64
          %v3283 = vpop.permute.xlu0 %3282
          %3284 = vrot.lane.b32.xlu0 %v2709, 64
          %v3285 = vpop.permute.xlu0 %3284
          %3286 = vrot.lane.b32.xlu0 %v2711, 64
          %v3287 = vpop.permute.xlu0 %3286
          %3288 = vrot.lane.b32.xlu0 %v2713, 64
          %v3289 = vpop.permute.xlu0 %3288
          %3290 = vrot.lane.b32.xlu0 %v2715, 64
          %v3291 = vpop.permute.xlu0 %3290
          %3292 = vrot.lane.b32.xlu0 %v2717, 64
          %v3293 = vpop.permute.xlu0 %3292
          %3294 = vrot.lane.b32.xlu0 %v2719, 64
          %v3295 = vpop.permute.xlu0 %3294
          %3296 = vrot.lane.b32.xlu0 %v2721, 64
          %v3297 = vpop.permute.xlu0 %3296
          %3298 = vrot.lane.b32.xlu0 %v2723, 64
          %v3299 = vpop.permute.xlu0 %3298
          %3300 = vrot.lane.b32.xlu0 %v2725, 64
          %v3301 = vpop.permute.xlu0 %3300
          %3302 = vrot.lane.b32.xlu0 %v2727, 64
          %v3303 = vpop.permute.xlu0 %3302
          %3304 = vrot.lane.b32.xlu0 %v2729, 64
          %v3305 = vpop.permute.xlu0 %3304
          %3306 = vrot.lane.b32.xlu0 %v2731, 64
          %v3307 = vpop.permute.xlu0 %3306
          %3308 = vrot.lane.b32.xlu0 %v2733, 64
          %v3309 = vpop.permute.xlu0 %3308
          %3310 = vrot.lane.b32.xlu0 %v2735, 64
          %v3311 = vpop.permute.xlu0 %3310
          %3312 = vrot.lane.b32.xlu0 %v2737, 64
          %v3313 = vpop.permute.xlu0 %3312
          %3314 = vrot.lane.b32.xlu0 %v2739, 64
          %v3315 = vpop.permute.xlu0 %3314
          %3316 = vrot.lane.b32.xlu0 %v2741, 64
          %v3317 = vpop.permute.xlu0 %3316
          %3318 = vrot.lane.b32.xlu0 %v2743, 64
          %v3319 = vpop.permute.xlu0 %3318
          %3320 = vrot.lane.b32.xlu0 %v2745, 64
          %v3321 = vpop.permute.xlu0 %3320
          %3322 = vrot.lane.b32.xlu0 %v2747, 64
          %v3323 = vpop.permute.xlu0 %3322
          %3324 = vrot.lane.b32.xlu0 %v2749, 64
          %v3325 = vpop.permute.xlu0 %3324
          %3326 = vrot.lane.b32.xlu0 %v2751, 64
          %v3327 = vpop.permute.xlu0 %3326
          %3328 = vrot.lane.b32.xlu0 %v2753, 64
          %v3329 = vpop.permute.xlu0 %3328
          %3330 = vrot.lane.b32.xlu0 %v2755, 64
          %v3331 = vpop.permute.xlu0 %3330
          %3332 = vrot.lane.b32.xlu0 %v2757, 64
          %v3333 = vpop.permute.xlu0 %3332
          %3334 = vrot.lane.b32.xlu0 %v2759, 64
          %v3335 = vpop.permute.xlu0 %3334
          %3336 = vrot.lane.b32.xlu0 %v2761, 64
          %v3337 = vpop.permute.xlu0 %3336
          %3338 = vrot.lane.b32.xlu0 %v2763, 64
          %v3339 = vpop.permute.xlu0 %3338
          %3340 = vrot.lane.b32.xlu0 %v2765, 64
          %v3341 = vpop.permute.xlu0 %3340
          %3342 = vrot.lane.b32.xlu0 %v2767, 64
          %v3343 = vpop.permute.xlu0 %3342
          %3344 = vrot.lane.b32.xlu0 %v2769, 64
          %v3345 = vpop.permute.xlu0 %3344
          %3346 = vrot.lane.b32.xlu0 %v2771, 64
          %v3347 = vpop.permute.xlu0 %3346
          %3348 = vrot.lane.b32.xlu0 %v2773, 64
          %v3349 = vpop.permute.xlu0 %3348
          %3350 = vrot.lane.b32.xlu0 %v2775, 64
          %v3351 = vpop.permute.xlu0 %3350
          %3352 = vrot.lane.b32.xlu0 %v2777, 64
          %v3353 = vpop.permute.xlu0 %3352
          %3354 = vrot.lane.b32.xlu0 %v2779, 64
          %v3355 = vpop.permute.xlu0 %3354
          %3356 = vrot.lane.b32.xlu0 %v2781, 64
          %v3357 = vpop.permute.xlu0 %3356
          %3358 = vrot.lane.b32.xlu0 %v2783, 64
          %v3359 = vpop.permute.xlu0 %3358
          %3360 = vrot.lane.b32.xlu0 %v2785, 64
          %v3361 = vpop.permute.xlu0 %3360
          %3362 = vrot.lane.b32.xlu0 %v2787, 64
          %v3363 = vpop.permute.xlu0 %3362
          %3364 = vrot.lane.b32.xlu0 %v2789, 64
          %v3365 = vpop.permute.xlu0 %3364
          %3366 = vrot.lane.b32.xlu0 %v2791, 64
          %v3367 = vpop.permute.xlu0 %3366
          %3368 = vrot.lane.b32.xlu0 %v2793, 64
          %v3369 = vpop.permute.xlu0 %3368
          %3370 = vrot.lane.b32.xlu0 %v2795, 64
          %v3371 = vpop.permute.xlu0 %3370
          %3372 = vrot.lane.b32.xlu0 %v2797, 64
          %v3373 = vpop.permute.xlu0 %3372
          %3374 = vrot.lane.b32.xlu0 %v2799, 64
          %v3375 = vpop.permute.xlu0 %3374
          %3376 = vrot.lane.b32.xlu0 %v2801, 64
          %v3377 = vpop.permute.xlu0 %3376
          %3378 = vrot.lane.b32.xlu0 %v2803, 64
          %v3379 = vpop.permute.xlu0 %3378
          %3380 = vrot.lane.b32.xlu0 %v2805, 64
          %v3381 = vpop.permute.xlu0 %3380
          %3382 = vrot.lane.b32.xlu0 %v2807, 64
          %v3383 = vpop.permute.xlu0 %3382
          %3384 = vrot.lane.b32.xlu0 %v2809, 64
          %v3385 = vpop.permute.xlu0 %3384
          %3386 = vrot.lane.b32.xlu0 %v2811, 64
          %v3387 = vpop.permute.xlu0 %3386
          %3388 = vrot.lane.b32.xlu0 %v2813, 64
          %v3389 = vpop.permute.xlu0 %3388
          %3390 = vrot.lane.b32.xlu0 %v2815, 64
          %v3391 = vpop.permute.xlu0 %3390
          %3392 = vrot.lane.b32.xlu0 %v2817, 64
          %v3393 = vpop.permute.xlu0 %3392
          %3394 = vrot.lane.b32.xlu0 %v2819, 64
          %v3395 = vpop.permute.xlu0 %3394
          %3396 = vrot.lane.b32.xlu0 %v2821, 64
          %v3397 = vpop.permute.xlu0 %3396
          %3398 = vrot.lane.b32.xlu0 %v2823, 64
          %v3399 = vpop.permute.xlu0 %3398
          %3400 = vrot.lane.b32.xlu0 %v2825, 64
          %v3401 = vpop.permute.xlu0 %3400
          %3402 = vrot.lane.b32.xlu0 %v2827, 64
          %v3403 = vpop.permute.xlu0 %3402
          %v3404 = vmul.f32 %v2701, %v2828
          %v3405 = vmul.f32 %v2703, %v2829
          %v3406 = vmul.f32 %v2705, %v2830
          %v3407 = vmul.f32 %v2707, %v2831
          %v3408 = vmul.f32 %v2709, %v2832
          %v3409 = vmul.f32 %v2711, %v2833
          %v3410 = vmul.f32 %v2713, %v2834
          %v3411 = vmul.f32 %v2715, %v2835
          %v3412 = vmul.f32 %v2717, %v2836
          %v3413 = vmul.f32 %v2719, %v2837
          %v3414 = vmul.f32 %v2721, %v2838
          %v3415 = vmul.f32 %v2723, %v2839
          %v3416 = vmul.f32 %v2725, %v2840
          %v3417 = vmul.f32 %v2727, %v2841
          %v3418 = vmul.f32 %v2729, %v2842
          %v3419 = vmul.f32 %v2731, %v2843
          %v3420 = vmul.f32 %v2733, %v2844
          %v3421 = vmul.f32 %v2735, %v2845
          %v3422 = vmul.f32 %v2737, %v2846
          %v3423 = vmul.f32 %v2739, %v2847
          %v3424 = vmul.f32 %v2741, %v2848
          %v3425 = vmul.f32 %v2743, %v2849
          %v3426 = vmul.f32 %v2745, %v2850
          %v3427 = vmul.f32 %v2747, %v2851
          %v3428 = vmul.f32 %v2749, %v2852
          %v3429 = vmul.f32 %v2751, %v2853
          %v3430 = vmul.f32 %v2753, %v2854
          %v3431 = vmul.f32 %v2755, %v2855
          %v3432 = vmul.f32 %v2757, %v2856
          %v3433 = vmul.f32 %v2759, %v2857
          %v3434 = vmul.f32 %v2761, %v2858
          %v3435 = vmul.f32 %v2763, %v2859
          %v3436 = vmul.f32 %v2765, %v2860
          %v3437 = vmul.f32 %v2767, %v2861
          %v3438 = vmul.f32 %v2769, %v2862
          %v3439 = vmul.f32 %v2771, %v2863
          %v3440 = vmul.f32 %v2773, %v2864
          %v3441 = vmul.f32 %v2775, %v2865
          %v3442 = vmul.f32 %v2777, %v2866
          %v3443 = vmul.f32 %v2779, %v2867
          %v3444 = vmul.f32 %v2781, %v2868
          %v3445 = vmul.f32 %v2783, %v2869
          %v3446 = vmul.f32 %v2785, %v2870
          %v3447 = vmul.f32 %v2787, %v2871
          %v3448 = vmul.f32 %v2789, %v2872
          %v3449 = vmul.f32 %v2791, %v2873
          %v3450 = vmul.f32 %v2793, %v2874
          %v3451 = vmul.f32 %v2795, %v2875
          %v3452 = vmul.f32 %v2797, %v2876
          %v3453 = vmul.f32 %v2799, %v2877
          %v3454 = vmul.f32 %v2801, %v2878
          %v3455 = vmul.f32 %v2803, %v2879
          %v3456 = vmul.f32 %v2805, %v2880
          %v3457 = vmul.f32 %v2807, %v2881
          %v3458 = vmul.f32 %v2809, %v2882
          %v3459 = vmul.f32 %v2811, %v2883
          %v3460 = vmul.f32 %v2813, %v2884
          %v3461 = vmul.f32 %v2815, %v2885
          %v3462 = vmul.f32 %v2817, %v2886
          %v3463 = vmul.f32 %v2819, %v2887
          %v3464 = vmul.f32 %v2821, %v2888
          %v3465 = vmul.f32 %v2823, %v2889
          %v3466 = vmul.f32 %v2825, %v2890
          %v3467 = vmul.f32 %v2827, %v2891
          %v3468 = vmul.f32 %v3277, %v2892
          %v3469 = vmul.f32 %v3279, %v2893
          %v3470 = vmul.f32 %v3281, %v2894
          %v3471 = vmul.f32 %v3283, %v2895
          %v3472 = vmul.f32 %v3285, %v2896
          %v3473 = vmul.f32 %v3287, %v2897
          %v3474 = vmul.f32 %v3289, %v2898
          %v3475 = vmul.f32 %v3291, %v2899
          %v3476 = vmul.f32 %v3293, %v2900
          %v3477 = vmul.f32 %v3295, %v2901
          %v3478 = vmul.f32 %v3297, %v2902
          %v3479 = vmul.f32 %v3299, %v2903
          %v3480 = vmul.f32 %v3301, %v2904
          %v3481 = vmul.f32 %v3303, %v2905
          %v3482 = vmul.f32 %v3305, %v2906
          %v3483 = vmul.f32 %v3307, %v2907
          %v3484 = vmul.f32 %v3309, %v2908
          %v3485 = vmul.f32 %v3311, %v2909
          %v3486 = vmul.f32 %v3313, %v2910
          %v3487 = vmul.f32 %v3315, %v2911
          %v3488 = vmul.f32 %v3317, %v2912
          %v3489 = vmul.f32 %v3319, %v2913
          %v3490 = vmul.f32 %v3321, %v2914
          %v3491 = vmul.f32 %v3323, %v2915
          %v3492 = vmul.f32 %v3325, %v2916
          %v3493 = vmul.f32 %v3327, %v2917
          %v3494 = vmul.f32 %v3329, %v2918
          %v3495 = vmul.f32 %v3331, %v2919
          %v3496 = vmul.f32 %v3333, %v2920
          %v3497 = vmul.f32 %v3335, %v2921
          %v3498 = vmul.f32 %v3337, %v2922
          %v3499 = vmul.f32 %v3339, %v2923
          %v3500 = vmul.f32 %v3341, %v2924
          %v3501 = vmul.f32 %v3343, %v2925
          %v3502 = vmul.f32 %v3345, %v2926
          %v3503 = vmul.f32 %v3347, %v2927
          %v3504 = vmul.f32 %v3349, %v2928
          %v3505 = vmul.f32 %v3351, %v2929
          %v3506 = vmul.f32 %v3353, %v2930
          %v3507 = vmul.f32 %v3355, %v2931
          %v3508 = vmul.f32 %v3357, %v2932
          %v3509 = vmul.f32 %v3359, %v2933
          %v3510 = vmul.f32 %v3361, %v2934
          %v3511 = vmul.f32 %v3363, %v2935
          %v3512 = vmul.f32 %v3365, %v2936
          %v3513 = vmul.f32 %v3367, %v2937
          %v3514 = vmul.f32 %v3369, %v2938
          %v3515 = vmul.f32 %v3371, %v2939
          %v3516 = vmul.f32 %v3373, %v2940
          %v3517 = vmul.f32 %v3375, %v2941
          %v3518 = vmul.f32 %v3377, %v2942
          %v3519 = vmul.f32 %v3379, %v2943
          %v3520 = vmul.f32 %v3381, %v2944
          %v3521 = vmul.f32 %v3383, %v2945
          %v3522 = vmul.f32 %v3385, %v2946
          %v3523 = vmul.f32 %v3387, %v2947
          %v3524 = vmul.f32 %v3389, %v2948
          %v3525 = vmul.f32 %v3391, %v2949
          %v3526 = vmul.f32 %v3393, %v2950
          %v3527 = vmul.f32 %v3395, %v2951
          %v3528 = vmul.f32 %v3397, %v2952
          %v3529 = vmul.f32 %v3399, %v2953
          %v3530 = vmul.f32 %v3401, %v2954
          %v3531 = vmul.f32 %v3403, %v2955
          %v3532 = vadd.f32 %v3404, %v3468
          %v3533 = vadd.f32 %v3405, %v3469
          %v3534 = vadd.f32 %v3406, %v3470
          %v3535 = vadd.f32 %v3407, %v3471
          %v3536 = vadd.f32 %v3408, %v3472
          %v3537 = vadd.f32 %v3409, %v3473
          %v3538 = vadd.f32 %v3410, %v3474
          %v3539 = vadd.f32 %v3411, %v3475
          %v3540 = vadd.f32 %v3412, %v3476
          %v3541 = vadd.f32 %v3413, %v3477
          %v3542 = vadd.f32 %v3414, %v3478
          %v3543 = vadd.f32 %v3415, %v3479
          %v3544 = vadd.f32 %v3416, %v3480
          %v3545 = vadd.f32 %v3417, %v3481
          %v3546 = vadd.f32 %v3418, %v3482
          %v3547 = vadd.f32 %v3419, %v3483
          %v3548 = vadd.f32 %v3420, %v3484
          %v3549 = vadd.f32 %v3421, %v3485
          %v3550 = vadd.f32 %v3422, %v3486
          %v3551 = vadd.f32 %v3423, %v3487
          %v3552 = vadd.f32 %v3424, %v3488
          %v3553 = vadd.f32 %v3425, %v3489
          %v3554 = vadd.f32 %v3426, %v3490
          %v3555 = vadd.f32 %v3427, %v3491
          %v3556 = vadd.f32 %v3428, %v3492
          %v3557 = vadd.f32 %v3429, %v3493
          %v3558 = vadd.f32 %v3430, %v3494
          %v3559 = vadd.f32 %v3431, %v3495
          %v3560 = vadd.f32 %v3432, %v3496
          %v3561 = vadd.f32 %v3433, %v3497
          %v3562 = vadd.f32 %v3434, %v3498
          %v3563 = vadd.f32 %v3435, %v3499
          %v3564 = vadd.f32 %v3436, %v3500
          %v3565 = vadd.f32 %v3437, %v3501
          %v3566 = vadd.f32 %v3438, %v3502
          %v3567 = vadd.f32 %v3439, %v3503
          %v3568 = vadd.f32 %v3440, %v3504
          %v3569 = vadd.f32 %v3441, %v3505
          %v3570 = vadd.f32 %v3442, %v3506
          %v3571 = vadd.f32 %v3443, %v3507
          %v3572 = vadd.f32 %v3444, %v3508
          %v3573 = vadd.f32 %v3445, %v3509
          %v3574 = vadd.f32 %v3446, %v3510
          %v3575 = vadd.f32 %v3447, %v3511
          %v3576 = vadd.f32 %v3448, %v3512
          %v3577 = vadd.f32 %v3449, %v3513
          %v3578 = vadd.f32 %v3450, %v3514
          %v3579 = vadd.f32 %v3451, %v3515
          %v3580 = vadd.f32 %v3452, %v3516
          %v3581 = vadd.f32 %v3453, %v3517
          %v3582 = vadd.f32 %v3454, %v3518
          %v3583 = vadd.f32 %v3455, %v3519
          %v3584 = vadd.f32 %v3456, %v3520
          %v3585 = vadd.f32 %v3457, %v3521
          %v3586 = vadd.f32 %v3458, %v3522
          %v3587 = vadd.f32 %v3459, %v3523
          %v3588 = vadd.f32 %v3460, %v3524
          %v3589 = vadd.f32 %v3461, %v3525
          %v3590 = vadd.f32 %v3462, %v3526
          %v3591 = vadd.f32 %v3463, %v3527
          %v3592 = vadd.f32 %v3464, %v3528
          %v3593 = vadd.f32 %v3465, %v3529
          %v3594 = vadd.f32 %v3466, %v3530
          %v3595 = vadd.f32 %v3467, %v3531
          %v3596 = vpack.c.bf16 %v3213, %v3212
          %v3597 = vpack.c.bf16 %v3533, %v3532
          %v3598 = vpack.c.bf16 %v3215, %v3214
          %v3599 = vpack.c.bf16 %v3535, %v3534
          %v3600 = vpack.c.bf16 %v3217, %v3216
          %v3601 = vpack.c.bf16 %v3537, %v3536
          %v3602 = vpack.c.bf16 %v3219, %v3218
          %v3603 = vpack.c.bf16 %v3539, %v3538
          %v3604 = vpack.c.bf16 %v3221, %v3220
          %v3605 = vpack.c.bf16 %v3541, %v3540
          %v3606 = vpack.c.bf16 %v3223, %v3222
          %v3607 = vpack.c.bf16 %v3543, %v3542
          %v3608 = vpack.c.bf16 %v3225, %v3224
          %v3609 = vpack.c.bf16 %v3545, %v3544
          %v3610 = vpack.c.bf16 %v3227, %v3226
          %v3611 = vpack.c.bf16 %v3547, %v3546
          %v3612 = vpack.c.bf16 %v3229, %v3228
          %v3613 = vpack.c.bf16 %v3549, %v3548
          %v3614 = vpack.c.bf16 %v3231, %v3230
          %v3615 = vpack.c.bf16 %v3551, %v3550
          %v3616 = vpack.c.bf16 %v3233, %v3232
          %v3617 = vpack.c.bf16 %v3553, %v3552
          %v3618 = vpack.c.bf16 %v3235, %v3234
          %v3619 = vpack.c.bf16 %v3555, %v3554
          %v3620 = vpack.c.bf16 %v3237, %v3236
          %v3621 = vpack.c.bf16 %v3557, %v3556
          %v3622 = vpack.c.bf16 %v3239, %v3238
          %v3623 = vpack.c.bf16 %v3559, %v3558
          %v3624 = vpack.c.bf16 %v3241, %v3240
          %v3625 = vpack.c.bf16 %v3561, %v3560
          %v3626 = vpack.c.bf16 %v3243, %v3242
          %v3627 = vpack.c.bf16 %v3563, %v3562
          %v3628 = vpack.c.bf16 %v3245, %v3244
          %v3629 = vpack.c.bf16 %v3565, %v3564
          %v3630 = vpack.c.bf16 %v3247, %v3246
          %v3631 = vpack.c.bf16 %v3567, %v3566
          %v3632 = vpack.c.bf16 %v3249, %v3248
          %v3633 = vpack.c.bf16 %v3569, %v3568
          %v3634 = vpack.c.bf16 %v3251, %v3250
          %v3635 = vpack.c.bf16 %v3571, %v3570
          %v3636 = vpack.c.bf16 %v3253, %v3252
          %v3637 = vpack.c.bf16 %v3573, %v3572
          %v3638 = vpack.c.bf16 %v3255, %v3254
          %v3639 = vpack.c.bf16 %v3575, %v3574
          %v3640 = vpack.c.bf16 %v3257, %v3256
          %v3641 = vpack.c.bf16 %v3577, %v3576
          %v3642 = vpack.c.bf16 %v3259, %v3258
          %v3643 = vpack.c.bf16 %v3579, %v3578
          %v3644 = vpack.c.bf16 %v3261, %v3260
          %v3645 = vpack.c.bf16 %v3581, %v3580
          %v3646 = vpack.c.bf16 %v3263, %v3262
          %v3647 = vpack.c.bf16 %v3583, %v3582
          %v3648 = vpack.c.bf16 %v3265, %v3264
          %v3649 = vpack.c.bf16 %v3585, %v3584
          %v3650 = vpack.c.bf16 %v3267, %v3266
          %v3651 = vpack.c.bf16 %v3587, %v3586
          %v3652 = vpack.c.bf16 %v3269, %v3268
          %v3653 = vpack.c.bf16 %v3589, %v3588
          %v3654 = vpack.c.bf16 %v3271, %v3270
          %v3655 = vpack.c.bf16 %v3591, %v3590
          %v3656 = vpack.c.bf16 %v3273, %v3272
          %v3657 = vpack.c.bf16 %v3593, %v3592
          %v3658 = vpack.c.bf16 %v3275, %v3274
          %v3659 = vpack.c.bf16 %v3595, %v3594
          %v3724 = vunpack.c.l.b16 %v3596
          %v3725 = vunpack.c.l.b16 %v3597
          %v3726 = vunpack.c.h.b16 %v3596
          %v3727 = vunpack.c.h.b16 %v3597
          %v3728 = vunpack.c.l.b16 %v3598
          %v3729 = vunpack.c.l.b16 %v3599
          %v3730 = vunpack.c.h.b16 %v3598
          %v3731 = vunpack.c.h.b16 %v3599
          %v3732 = vunpack.c.l.b16 %v3600
          %v3733 = vunpack.c.l.b16 %v3601
          %v3734 = vunpack.c.h.b16 %v3600
          %v3735 = vunpack.c.h.b16 %v3601
          %v3736 = vunpack.c.l.b16 %v3602
          %v3737 = vunpack.c.l.b16 %v3603
          %v3738 = vunpack.c.h.b16 %v3602
          %v3739 = vunpack.c.h.b16 %v3603
          %v3740 = vunpack.c.l.b16 %v3604
          %v3741 = vunpack.c.l.b16 %v3605
          %v3742 = vunpack.c.h.b16 %v3604
          %v3743 = vunpack.c.h.b16 %v3605
          %v3744 = vunpack.c.l.b16 %v3606
          %v3745 = vunpack.c.l.b16 %v3607
          %v3746 = vunpack.c.h.b16 %v3606
          %v3747 = vunpack.c.h.b16 %v3607
          %v3748 = vunpack.c.l.b16 %v3608
          %v3749 = vunpack.c.l.b16 %v3609
          %v3750 = vunpack.c.h.b16 %v3608
          %v3751 = vunpack.c.h.b16 %v3609
          %v3752 = vunpack.c.l.b16 %v3610
          %v3753 = vunpack.c.l.b16 %v3611
          %v3754 = vunpack.c.h.b16 %v3610
          %v3755 = vunpack.c.h.b16 %v3611
          %v3756 = vunpack.c.l.b16 %v3612
          %v3757 = vunpack.c.l.b16 %v3613
          %v3758 = vunpack.c.h.b16 %v3612
          %v3759 = vunpack.c.h.b16 %v3613
          %v3760 = vunpack.c.l.b16 %v3614
          %v3761 = vunpack.c.l.b16 %v3615
          %v3762 = vunpack.c.h.b16 %v3614
          %v3763 = vunpack.c.h.b16 %v3615
          %v3764 = vunpack.c.l.b16 %v3616
          %v3765 = vunpack.c.l.b16 %v3617
          %v3766 = vunpack.c.h.b16 %v3616
          %v3767 = vunpack.c.h.b16 %v3617
          %v3768 = vunpack.c.l.b16 %v3618
          %v3769 = vunpack.c.l.b16 %v3619
          %v3770 = vunpack.c.h.b16 %v3618
          %v3771 = vunpack.c.h.b16 %v3619
          %v3772 = vunpack.c.l.b16 %v3620
          %v3773 = vunpack.c.l.b16 %v3621
          %v3774 = vunpack.c.h.b16 %v3620
          %v3775 = vunpack.c.h.b16 %v3621
          %v3776 = vunpack.c.l.b16 %v3622
          %v3777 = vunpack.c.l.b16 %v3623
          %v3778 = vunpack.c.h.b16 %v3622
          %v3779 = vunpack.c.h.b16 %v3623
          %v3780 = vunpack.c.l.b16 %v3624
          %v3781 = vunpack.c.l.b16 %v3625
          %v3782 = vunpack.c.h.b16 %v3624
          %v3783 = vunpack.c.h.b16 %v3625
          %v3784 = vunpack.c.l.b16 %v3626
          %v3785 = vunpack.c.l.b16 %v3627
          %v3786 = vunpack.c.h.b16 %v3626
          %v3787 = vunpack.c.h.b16 %v3627
          %v3788 = vunpack.c.l.b16 %v3628
          %v3789 = vunpack.c.l.b16 %v3629
          %v3790 = vunpack.c.h.b16 %v3628
          %v3791 = vunpack.c.h.b16 %v3629
          %v3792 = vunpack.c.l.b16 %v3630
          %v3793 = vunpack.c.l.b16 %v3631
          %v3794 = vunpack.c.h.b16 %v3630
          %v3795 = vunpack.c.h.b16 %v3631
          %v3796 = vunpack.c.l.b16 %v3632
          %v3797 = vunpack.c.l.b16 %v3633
          %v3798 = vunpack.c.h.b16 %v3632
          %v3799 = vunpack.c.h.b16 %v3633
          %v3800 = vunpack.c.l.b16 %v3634
          %v3801 = vunpack.c.l.b16 %v3635
          %v3802 = vunpack.c.h.b16 %v3634
          %v3803 = vunpack.c.h.b16 %v3635
          %v3804 = vunpack.c.l.b16 %v3636
          %v3805 = vunpack.c.l.b16 %v3637
          %v3806 = vunpack.c.h.b16 %v3636
          %v3807 = vunpack.c.h.b16 %v3637
          %v3808 = vunpack.c.l.b16 %v3638
          %v3809 = vunpack.c.l.b16 %v3639
          %v3810 = vunpack.c.h.b16 %v3638
          %v3811 = vunpack.c.h.b16 %v3639
          %v3812 = vunpack.c.l.b16 %v3640
          %v3813 = vunpack.c.l.b16 %v3641
          %v3814 = vunpack.c.h.b16 %v3640
          %v3815 = vunpack.c.h.b16 %v3641
          %v3816 = vunpack.c.l.b16 %v3642
          %v3817 = vunpack.c.l.b16 %v3643
          %v3818 = vunpack.c.h.b16 %v3642
          %v3819 = vunpack.c.h.b16 %v3643
          %v3820 = vunpack.c.l.b16 %v3644
          %v3821 = vunpack.c.l.b16 %v3645
          %v3822 = vunpack.c.h.b16 %v3644
          %v3823 = vunpack.c.h.b16 %v3645
          %v3824 = vunpack.c.l.b16 %v3646
          %v3825 = vunpack.c.l.b16 %v3647
          %v3826 = vunpack.c.h.b16 %v3646
          %v3827 = vunpack.c.h.b16 %v3647
          %v3828 = vunpack.c.l.b16 %v3648
          %v3829 = vunpack.c.l.b16 %v3649
          %v3830 = vunpack.c.h.b16 %v3648
          %v3831 = vunpack.c.h.b16 %v3649
          %v3832 = vunpack.c.l.b16 %v3650
          %v3833 = vunpack.c.l.b16 %v3651
          %v3834 = vunpack.c.h.b16 %v3650
          %v3835 = vunpack.c.h.b16 %v3651
          %v3836 = vunpack.c.l.b16 %v3652
          %v3837 = vunpack.c.l.b16 %v3653
          %v3838 = vunpack.c.h.b16 %v3652
          %v3839 = vunpack.c.h.b16 %v3653
          %v3840 = vunpack.c.l.b16 %v3654
          %v3841 = vunpack.c.l.b16 %v3655
          %v3842 = vunpack.c.h.b16 %v3654
          %v3843 = vunpack.c.h.b16 %v3655
          %v3844 = vunpack.c.l.b16 %v3656
          %v3845 = vunpack.c.l.b16 %v3657
          %v3846 = vunpack.c.h.b16 %v3656
          %v3847 = vunpack.c.h.b16 %v3657
          %v3848 = vunpack.c.l.b16 %v3658
          %v3849 = vunpack.c.l.b16 %v3659
          %v3850 = vunpack.c.h.b16 %v3658
          %v3851 = vunpack.c.h.b16 %v3659
          %v3852 = vpack.c.b16 %v3725, %v3724
          %v3853 = vpack.c.b16 %v3727, %v3726
          %v3854 = vpack.c.b16 %v3729, %v3728
          %v3855 = vpack.c.b16 %v3731, %v3730
          %v3856 = vpack.c.b16 %v3733, %v3732
          %v3857 = vpack.c.b16 %v3735, %v3734
          %v3858 = vpack.c.b16 %v3737, %v3736
          %v3859 = vpack.c.b16 %v3739, %v3738
          %v3860 = vpack.c.b16 %v3741, %v3740
          %v3861 = vpack.c.b16 %v3743, %v3742
          %v3862 = vpack.c.b16 %v3745, %v3744
          %v3863 = vpack.c.b16 %v3747, %v3746
          %v3864 = vpack.c.b16 %v3749, %v3748
          %v3865 = vpack.c.b16 %v3751, %v3750
          %v3866 = vpack.c.b16 %v3753, %v3752
          %v3867 = vpack.c.b16 %v3755, %v3754
          %v3868 = vpack.c.b16 %v3757, %v3756
          %v3869 = vpack.c.b16 %v3759, %v3758
          %v3870 = vpack.c.b16 %v3761, %v3760
          %v3871 = vpack.c.b16 %v3763, %v3762
          %v3872 = vpack.c.b16 %v3765, %v3764
          %v3873 = vpack.c.b16 %v3767, %v3766
          %v3874 = vpack.c.b16 %v3769, %v3768
          %v3875 = vpack.c.b16 %v3771, %v3770
          %v3876 = vpack.c.b16 %v3773, %v3772
          %v3877 = vpack.c.b16 %v3775, %v3774
          %v3878 = vpack.c.b16 %v3777, %v3776
          %v3879 = vpack.c.b16 %v3779, %v3778
          %v3880 = vpack.c.b16 %v3781, %v3780
          %v3881 = vpack.c.b16 %v3783, %v3782
          %v3882 = vpack.c.b16 %v3785, %v3784
          %v3883 = vpack.c.b16 %v3787, %v3786
          %v3884 = vpack.c.b16 %v3789, %v3788
          %v3885 = vpack.c.b16 %v3791, %v3790
          %v3886 = vpack.c.b16 %v3793, %v3792
          %v3887 = vpack.c.b16 %v3795, %v3794
          %v3888 = vpack.c.b16 %v3797, %v3796
          %v3889 = vpack.c.b16 %v3799, %v3798
          %v3890 = vpack.c.b16 %v3801, %v3800
          %v3891 = vpack.c.b16 %v3803, %v3802
          %v3892 = vpack.c.b16 %v3805, %v3804
          %v3893 = vpack.c.b16 %v3807, %v3806
          %v3894 = vpack.c.b16 %v3809, %v3808
          %v3895 = vpack.c.b16 %v3811, %v3810
          %v3896 = vpack.c.b16 %v3813, %v3812
          %v3897 = vpack.c.b16 %v3815, %v3814
          %v3898 = vpack.c.b16 %v3817, %v3816
          %v3899 = vpack.c.b16 %v3819, %v3818
          %v3900 = vpack.c.b16 %v3821, %v3820
          %v3901 = vpack.c.b16 %v3823, %v3822
          %v3902 = vpack.c.b16 %v3825, %v3824
          %v3903 = vpack.c.b16 %v3827, %v3826
          %v3904 = vpack.c.b16 %v3829, %v3828
          %v3905 = vpack.c.b16 %v3831, %v3830
          %v3906 = vpack.c.b16 %v3833, %v3832
          %v3907 = vpack.c.b16 %v3835, %v3834
          %v3908 = vpack.c.b16 %v3837, %v3836
          %v3909 = vpack.c.b16 %v3839, %v3838
          %v3910 = vpack.c.b16 %v3841, %v3840
          %v3911 = vpack.c.b16 %v3843, %v3842
          %v3912 = vpack.c.b16 %v3845, %v3844
          %v3913 = vpack.c.b16 %v3847, %v3846
          %v3914 = vpack.c.b16 %v3849, %v3848
          %v3915 = vpack.c.b16 %v3851, %v3850
          %3980 = vst [vmem:[%s314] sm:$0xff] %v3852
          %3981 = vst [vmem:[%s314 + $0x8] sm:$0xff] %v3853
          %3982 = vst [vmem:[%s314 + $0x10] sm:$0xff] %v3854
          %3983 = vst [vmem:[%s314 + $0x18] sm:$0xff] %v3855
          %3984 = vst [vmem:[%s314 + $0x20] sm:$0xff] %v3856
          %3985 = vst [vmem:[%s314 + $0x28] sm:$0xff] %v3857
          %3986 = vst [vmem:[%s314 + $0x30] sm:$0xff] %v3858
          %3987 = vst [vmem:[%s314 + $0x38] sm:$0xff] %v3859
          %3988 = vst [vmem:[%s314 + $0x40] sm:$0xff] %v3860
          %3989 = vst [vmem:[%s314 + $0x48] sm:$0xff] %v3861
          %3990 = vst [vmem:[%s314 + $0x50] sm:$0xff] %v3862
          %3991 = vst [vmem:[%s314 + $0x58] sm:$0xff] %v3863
          %3992 = vst [vmem:[%s314 + $0x60] sm:$0xff] %v3864
          %3993 = vst [vmem:[%s314 + $0x68] sm:$0xff] %v3865
          %3994 = vst [vmem:[%s314 + $0x70] sm:$0xff] %v3866
          %3995 = vst [vmem:[%s314 + $0x78] sm:$0xff] %v3867
          %3996 = vst [vmem:[%s314 + $0x80] sm:$0xff] %v3868
          %3997 = vst [vmem:[%s314 + $0x88] sm:$0xff] %v3869
          %3998 = vst [vmem:[%s314 + $0x90] sm:$0xff] %v3870
          %3999 = vst [vmem:[%s314 + $0x98] sm:$0xff] %v3871
          %4000 = vst [vmem:[%s314 + $0xa0] sm:$0xff] %v3872
          %4001 = vst [vmem:[%s314 + $0xa8] sm:$0xff] %v3873
          %4002 = vst [vmem:[%s314 + $0xb0] sm:$0xff] %v3874
          %4003 = vst [vmem:[%s314 + $0xb8] sm:$0xff] %v3875
          %4004 = vst [vmem:[%s314 + $0xc0] sm:$0xff] %v3876
          %4005 = vst [vmem:[%s314 + $0xc8] sm:$0xff] %v3877
          %4006 = vst [vmem:[%s314 + $0xd0] sm:$0xff] %v3878
          %4007 = vst [vmem:[%s314 + $0xd8] sm:$0xff] %v3879
          %4008 = vst [vmem:[%s314 + $0xe0] sm:$0xff] %v3880
          %4009 = vst [vmem:[%s314 + $0xe8] sm:$0xff] %v3881
          %4010 = vst [vmem:[%s314 + $0xf0] sm:$0xff] %v3882
          %4011 = vst [vmem:[%s314 + $0xf8] sm:$0xff] %v3883
          %4012 = vst [vmem:[%s314 + $0x100] sm:$0xff] %v3884
          %4013 = vst [vmem:[%s314 + $0x108] sm:$0xff] %v3885
          %4014 = vst [vmem:[%s314 + $0x110] sm:$0xff] %v3886
          %4015 = vst [vmem:[%s314 + $0x118] sm:$0xff] %v3887
          %4016 = vst [vmem:[%s314 + $0x120] sm:$0xff] %v3888
          %4017 = vst [vmem:[%s314 + $0x128] sm:$0xff] %v3889
          %4018 = vst [vmem:[%s314 + $0x130] sm:$0xff] %v3890
          %4019 = vst [vmem:[%s314 + $0x138] sm:$0xff] %v3891
          %4020 = vst [vmem:[%s314 + $0x140] sm:$0xff] %v3892
          %4021 = vst [vmem:[%s314 + $0x148] sm:$0xff] %v3893
          %4022 = vst [vmem:[%s314 + $0x150] sm:$0xff] %v3894
          %4023 = vst [vmem:[%s314 + $0x158] sm:$0xff] %v3895
          %4024 = vst [vmem:[%s314 + $0x160] sm:$0xff] %v3896
          %4025 = vst [vmem:[%s314 + $0x168] sm:$0xff] %v3897
          %4026 = vst [vmem:[%s314 + $0x170] sm:$0xff] %v3898
          %4027 = vst [vmem:[%s314 + $0x178] sm:$0xff] %v3899
          %4028 = vst [vmem:[%s314 + $0x180] sm:$0xff] %v3900
          %4029 = vst [vmem:[%s314 + $0x188] sm:$0xff] %v3901
          %4030 = vst [vmem:[%s314 + $0x190] sm:$0xff] %v3902
          %4031 = vst [vmem:[%s314 + $0x198] sm:$0xff] %v3903
          %4032 = vst [vmem:[%s314 + $0x1a0] sm:$0xff] %v3904
          %4033 = vst [vmem:[%s314 + $0x1a8] sm:$0xff] %v3905
          %4034 = vst [vmem:[%s314 + $0x1b0] sm:$0xff] %v3906
          %4035 = vst [vmem:[%s314 + $0x1b8] sm:$0xff] %v3907
          %4036 = vst [vmem:[%s314 + $0x1c0] sm:$0xff] %v3908
          %4037 = vst [vmem:[%s314 + $0x1c8] sm:$0xff] %v3909
          %4038 = vst [vmem:[%s314 + $0x1d0] sm:$0xff] %v3910
          %4039 = vst [vmem:[%s314 + $0x1d8] sm:$0xff] %v3911
          %4040 = vst [vmem:[%s314 + $0x1e0] sm:$0xff] %v3912
          %4041 = vst [vmem:[%s314 + $0x1e8] sm:$0xff] %v3913
          %4042 = vst [vmem:[%s314 + $0x1f0] sm:$0xff] %v3914
          %4043 = vst [vmem:[%s314 + $0x1f8] sm:$0xff] %v3915
        $region60: #{tpu_custom_call.1} parent=35 // pred_fallthru
          _
        %s4044 = sand.u32 %s160, 1
        %s4045 = scalar_lea.sflag [#allocation5], %s4044
        %s4046 = sand.u32 %s160, 1
        %s4047 = smul.addr %s4046, 512
        %s4048 = scalar_lea.vmem [#allocation11], %s4047
        // Predicated region
        $region61: #{tpu_custom_call.1} parent=35 // pred_check
          %p4049 = pneg %p170
        $region62: #{tpu_custom_call.1} parent=35 // pred_check_branch
          %4051 = sbr.rel (%p4049) target = $region64
        $region63: #{tpu_custom_call.1} parent=35 // pred_region
          %s4052 = smul.u32 64, %s28
          %s4053 = smul.u32 2, %s29
          %s4055 = ssub.s32 8192, 8192
          %4056 = vsyncadd %s4045, %s4055
          %s4057 = smul.addr %s4052, 4
          %s4058 = sadd.s32 %s4053, %s4057
          %s4059 = smul.addr %s4058, 64
          %s4060 = scalar_lea.hbm %s4, %s4059
          %s4061 = sshll.u32 %s4048, 4
          %s4062 = int_to_ptr.vmem [resolvable:$true] %s4061
          %4067 = dma.vmem_to_hbm [thread:$0]  %s4062, 8192, %s4060, %s4045, 128, 256, 8
        $region64: #{tpu_custom_call.1} parent=35 // pred_fallthru
          _
      $region36: #{tpu_custom_call.1} parent=5 // pred_fallthru
        _
      %p4068 = scmp.le.s32.totalorder 2, %s18
      // Predicated region
      $region65: #{tpu_custom_call.1} parent=5 // pred_check
        %p4069 = pneg %p4068
      $region66: #{tpu_custom_call.1} parent=5 // pred_check_branch
        %4071 = sbr.rel (%p4069) target = $region68
      $region67: #{tpu_custom_call.1} parent=5 // pred_region
        %s4072 = ssub.s32 %s18, 2
        // Predicated region
        $region69: #{tpu_custom_call.1} parent=67 // pred_check
          %p4073 = pneg %p176
        $region70: #{tpu_custom_call.1} parent=67 // pred_check_branch
          %4075 = sbr.rel (%p4073) target = $region72
        $region71: #{tpu_custom_call.1} parent=67 // pred_region
          %s4076 = sand.u32 %s161, 1
          %s4077 = scalar_lea.sflag [#allocation5], %s4076
          %s4078 = sand.u32 %s161, 1
          %s4079 = smul.addr %s4078, 512
          %s4080 = scalar_lea.vmem [#allocation11], %s4079
          %4081 = dma.done %s4077, 8192
        $region72: #{tpu_custom_call.1} parent=67 // pred_fallthru
          _
      $region68: #{tpu_custom_call.1} parent=5 // pred_fallthru
        _
    $region6: #{tpu_custom_call.1} parent=1 // loop_footer
      %s22 = sadd.s32 1, %s18
    $region7: #{tpu_custom_call.1} parent=1 // loop_footer_branch
      %17 = sbr.rel target = $region3
    $region8: #{tpu_custom_call.1} parent=1 // loop_exit
      _
    %4082 = vsyncpa [#allocation4], 1
    %s4083 = scalar_lea.sflag [#allocation4], 1
    %4084 = vsyncpa %s4083, 1
    %4085 = vsyncpa [#allocation7], 1
    %s4086 = scalar_lea.sflag [#allocation7], 1
    %4087 = vsyncpa %s4086, 1
    %4088 = vsyncpa [#allocation10], 1
    %4089 = vsyncpa [#allocation5], 1
    %s4090 = scalar_lea.sflag [#allocation5], 1
    %4091 = vsyncpa %s4090, 1

</llo_original>
